<compile_context>
chip_gen: v7x
topology: tpu7x:2x2x1
jax: 0.10.0
libtpu: 0.0.40
codegen_flags: <defaults>
</compile_context>

<pallas_src>
import functools

import jax
import jax.numpy as jnp
from jax.experimental import pallas as pl
from jax.experimental.pallas import tpu as pltpu


def mha_kernel(
    xq_ref,    # (1, TQ, C)    bf16  query rows of x for this tile
    y_ref,     # (1, M, Cr)    bf16  key/value source (== x for self-attention)
    wq_ref,    # (C, C)        bf16  query weight, softmax scale folded in
    bq_ref,    # (1, C)        f32   query bias, scale folded in
    wkv_ref,   # (Cr, 2C)      bf16  fused [Wk | Wv], stored (in, out)
    bkv_ref,   # (1, 2C)       f32
    wp_ref,    # (C, C)        bf16  output projection
    bp_ref,    # (1, C)        f32
    o_ref,     # (1, TQ, C)    f32
    attn_ref,  # (1, H, TQ, M) f32   head-major softmax probabilities
    q_sc,      # scratch (TQ, C)   bf16
    kv_sc,     # scratch (M, 2C)   bf16  [K | V]; persists across query tiles
    acc_sc,    # scratch (TQ, C)   bf16  concatenated per-head attn @ V
    *, num_heads,
):
    C = xq_ref.shape[2]
    M = y_ref.shape[1]
    d = C // num_heads

    # ---- K/V projection: once per batch element (first query tile only) ----
    @pl.when(pl.program_id(1) == 0)
    def _():
        kv_sc[...] = (
            jnp.dot(y_ref[0], wkv_ref[...], preferred_element_type=jnp.float32)
            + bkv_ref[...]
        ).astype(jnp.bfloat16)

    # ---- Q projection for this query tile (scale already folded in) -------
    q_sc[...] = (
        jnp.dot(xq_ref[0], wq_ref[...], preferred_element_type=jnp.float32)
        + bq_ref[...]
    ).astype(jnp.bfloat16)

    # ---- per-head attention; heads grouped so acc stores are lane-dense ---
    if d >= 128:
        group = 1
    else:
        group = max(1, min(num_heads, 128 // d))
        while num_heads % group != 0:
            group -= 1
    nt_dims = (((1,), (1,)), ((), ()))   # contract last dims of q and k (no kh.T)

    for g0 in range(0, num_heads, group):
        pvs = []
        for h in range(g0, g0 + group):
            qh = q_sc[:, h * d:(h + 1) * d]                  # (TQ, d) bf16
            kh = kv_sc[:, h * d:(h + 1) * d]                 # (M, d)  bf16
            vh = kv_sc[:, C + h * d:C + (h + 1) * d]         # (M, d)  bf16
            s = jax.lax.dot_general(qh, kh, nt_dims,
                                    preferred_element_type=jnp.float32)  # (TQ, M)
            s = s - jnp.max(s, axis=-1, keepdims=True)
            p = jnp.exp(s)
            # Exact reciprocal: only TQ scalars -> negligible cost, and rows of
            # the returned attention sum to 1 within f32 rounding.
            p = p * (1.0 / jnp.sum(p, axis=-1, keepdims=True))
            attn_ref[0, h] = p                               # lane-dense over M
            pvs.append(jnp.dot(p.astype(jnp.bfloat16), vh,
                               preferred_element_type=jnp.float32))      # (TQ, d)
        blk = pvs[0] if len(pvs) == 1 else jnp.concatenate(pvs, axis=-1)
        acc_sc[:, g0 * d:(g0 + group) * d] = blk.astype(jnp.bfloat16)

    # ---- output projection over the full (TQ, C) accumulator --------------
    o_ref[0] = (
        jnp.dot(acc_sc[...], wp_ref[...], preferred_element_type=jnp.float32)
        + bp_ref[...]
    ).astype(o_ref.dtype)


def prepare_params(params, *, num_heads):
    """One-time weight prep: fold softmax scale into Q, cast matmul weights to bf16."""
    C = params["wq"].shape[0]
    scale = (C // num_heads) ** -0.5
    return {
        "wq": (params["wq"] * scale).astype(jnp.bfloat16),   # (C, C)
        "bq": params["bq"] * scale,                          # (1, C) f32
        "wkv": params["wkv"].astype(jnp.bfloat16),           # (Cr, 2C)
        "bkv": params["bkv"],                                 # (1, 2C) f32
        "wp": params["wp"].astype(jnp.bfloat16),             # (C, C)
        "bp": params["bp"],                                   # (1, C) f32
    }


def multi_head_attention(x, fused_params, *, num_heads, y=None):
    """Forward pass (mask=None). Returns (out, attn) with attn in (b, n, m, h)."""
    if y is None:
        y = x
    B, N, C = x.shape
    _, M, Cr = y.shape
    H = num_heads

    # Query-tile size: largest of {256, 128, N} that divides N.
    if N % 256 == 0:
        tq = 256
    elif N % 128 == 0:
        tq = 128
    else:
        tq = N
    n_qt = N // tq

    x_bf = x.astype(jnp.bfloat16)
    y_bf = x_bf if y is x else y.astype(jnp.bfloat16)
    wq, bq = fused_params["wq"], fused_params["bq"]
    wkv, bkv = fused_params["wkv"], fused_params["bkv"]
    wp, bp = fused_params["wp"], fused_params["bp"]

    # Honest VMEM budget: weights (possibly double-buffered in the fallback) +
    # double-buffered activation blocks + persistent scratch, clamped to 85% of
    # the device's physical per-core VMEM.
    weight_bytes = (wq.size + wkv.size + wp.size) * 2 + (bq.size + bkv.size + bp.size) * 4
    act_bytes = 2 * (tq * C * 2 + M * Cr * 2 + tq * C * 4 + H * tq * M * 4)
    scratch_bytes = (2 * tq * C + 2 * M * C) * 2
    need = 2 * weight_bytes + act_bytes + scratch_bytes
    try:
        cap = pltpu.get_tpu_info().vmem_capacity_bytes
    except Exception:
        cap = 64 * 1024 * 1024
    vmem_limit = int(min(0.85 * cap, max(32 * 1024 * 1024, 2 * need)))

    kernel = functools.partial(mha_kernel, num_heads=H)

    def run(single_buffer_weights):
        def const_spec(shape):
            idx = lambda b, qi: (0,) * len(shape)
            if single_buffer_weights:
                return pl.BlockSpec(shape, idx, pipeline_mode=pl.Buffered(1))
            return pl.BlockSpec(shape, idx)

        call = pl.pallas_call(
            kernel,
            out_shape=(
                jax.ShapeDtypeStruct((B, N, C), jnp.float32),
                jax.ShapeDtypeStruct((B, H, N, M), jnp.float32),
            ),
            grid=(B, n_qt),
            in_specs=[
                pl.BlockSpec((1, tq, C), lambda b, qi: (b, qi, 0)),   # x (queries)
                pl.BlockSpec((1, M, Cr), lambda b, qi: (b, 0, 0)),    # y (keys/values)
                const_spec((C, C)),        # wq (bf16, scale folded)
                const_spec((1, C)),        # bq
                const_spec((Cr, 2 * C)),   # wkv (bf16)
                const_spec((1, 2 * C)),    # bkv
                const_spec((C, C)),        # wp (bf16)
                const_spec((1, C)),        # bp
            ],
            out_specs=(
                pl.BlockSpec((1, tq, C), lambda b, qi: (b, qi, 0)),
                pl.BlockSpec((1, H, tq, M), lambda b, qi: (b, 0, qi, 0)),
            ),
            scratch_shapes=[
                pltpu.VMEM((tq, C), jnp.bfloat16),       # q tile
                pltpu.VMEM((M, 2 * C), jnp.bfloat16),    # [K|V], persists across qi
                pltpu.VMEM((tq, C), jnp.bfloat16),       # per-head output accumulator
            ],
            compiler_params=pltpu.CompilerParams(
                dimension_semantics=("parallel", "arbitrary"),
                vmem_limit_bytes=vmem_limit,
            ),
        )
        return call(x_bf, y_bf, wq, bq, wkv, bkv, wp, bp)

    try:
        out, attn_hm = run(True)
    except Exception:
        # Fallback: some JAX versions reject pl.Buffered(1) on pallas_call
        # BlockSpecs -> use default (double) buffering for the constant weights.
        out, attn_hm = run(False)

    # PyTorch layout is (b, n, m, h); kernel wrote head-major for lane-dense
    # stores -> transpose in the wrapper (pure layout plumbing).
    attn = jnp.transpose(attn_hm, (0, 2, 3, 1))
    return out.astype(x.dtype), attn


def mha_ref(x, params, *, num_heads, y=None):
    """Pure-JAX f32 reference mirroring the PyTorch module (eval, no mask)."""
    if y is None:
        y = x
    B, N, C = x.shape
    _, M, _ = y.shape
    d = C // num_heads
    scale = d ** -0.5
    q = (x @ params["wq"] + params["bq"][0]).reshape(B, N, num_heads, d)
    kv = (y @ params["wkv"] + params["bkv"][0]).reshape(B, M, 2, num_heads, d)
    k, v = kv[:, :, 0], kv[:, :, 1]
    att = jnp.einsum("bnhd,bmhd->bnmh", q, k) * scale
    att = jax.nn.softmax(att, axis=2)
    out = jnp.einsum("bnmh,bmhd->bnhd", att, v).reshape(B, N, C)
    out = out @ params["wp"] + params["bp"][0]
    return out, att


def init_params(key, dim_self):
    C = dim_self
    ks = jax.random.split(key, 6)
    s = 0.05
    return {
        "wq": s * jax.random.normal(ks[0], (C, C), jnp.float32),
        "bq": s * jax.random.normal(ks[1], (1, C), jnp.float32),
        "wkv": s * jax.random.normal(ks[2], (C, 2 * C), jnp.float32),
        "bkv": s * jax.random.normal(ks[3], (1, 2 * C), jnp.float32),
        "wp": s * jax.random.normal(ks[4], (C, C), jnp.float32),
        "bp": s * jax.random.normal(ks[5], (1, C), jnp.float32),
    }


if __name__ == "__main__":
    # Small, module-consistent shapes: batch=2, seq=8, dim_self=32, heads=4.
    B, N, C, NUM_HEADS = 2, 8, 32, 4
    key = jax.random.PRNGKey(0)
    kx, kp = jax.random.split(key)
    x = jax.random.normal(kx, (B, N, C), jnp.float32)
    params = init_params(kp, C)

    fused = prepare_params(params, num_heads=NUM_HEADS)   # one-time weight prep
    out, attn = multi_head_attention(x, fused, num_heads=NUM_HEADS)
    out = jax.block_until_ready(out)
    attn = jax.block_until_ready(attn)

    ref_out, ref_attn = mha_ref(x, params, num_heads=NUM_HEADS)
    assert out.shape == (B, N, C)
    assert attn.shape == (B, N, N, NUM_HEADS)
    # bf16 inputs/weights with f32 accumulation -> relaxed tolerance vs f32 ref.
    assert jnp.allclose(out, ref_out, rtol=2e-2, atol=2e-2), "output mismatch"
    assert jnp.allclose(attn, ref_attn, rtol=2e-2, atol=2e-2), "attention mismatch"

    print("KERNEL_OK")
</pallas_src>

<mosaic_0001>
module attributes {stable_mosaic.version = 11 : i64} {
  func.func @mha_kernel(%arg0: i32, %arg1: i32, %arg2: memref<1x8x32xbf16, #tpu.memory_space<vmem>>, %arg3: memref<1x8x32xbf16, #tpu.memory_space<vmem>>, %arg4: memref<32x32xbf16, #tpu.memory_space<vmem>>, %arg5: memref<1x32xf32, #tpu.memory_space<vmem>>, %arg6: memref<32x64xbf16, #tpu.memory_space<vmem>>, %arg7: memref<1x64xf32, #tpu.memory_space<vmem>>, %arg8: memref<32x32xbf16, #tpu.memory_space<vmem>>, %arg9: memref<1x32xf32, #tpu.memory_space<vmem>>, %arg10: memref<1x8x32xf32, #tpu.memory_space<vmem>>, %arg11: memref<1x4x8x8xf32, #tpu.memory_space<vmem>>, %arg12: memref<8x32xbf16, #tpu.memory_space<vmem>>, %arg13: memref<8x64xbf16, #tpu.memory_space<vmem>>, %arg14: memref<8x32xbf16, #tpu.memory_space<vmem>>) attributes {dimension_semantics = [#tpu.dimension_semantics<parallel>, #tpu.dimension_semantics<arbitrary>], iteration_bounds = array<i64: 2, 1>, scalar_prefetch = 0 : i64, scratch_operands = 3 : i64, tpu.core_type = #tpu.core_type<tc>, window_params = [{transform_indices = @transform_0, window_bounds = array<i64: 1, 8, 32>}, {transform_indices = @transform_1, window_bounds = array<i64: 1, 8, 32>}, {pipeline_mode = #tpu.pipeline_mode<synchronous>, transform_indices = @transform_2, window_bounds = array<i64: 32, 32>}, {pipeline_mode = #tpu.pipeline_mode<synchronous>, transform_indices = @transform_3, window_bounds = array<i64: 1, 32>}, {pipeline_mode = #tpu.pipeline_mode<synchronous>, transform_indices = @transform_4, window_bounds = array<i64: 32, 64>}, {pipeline_mode = #tpu.pipeline_mode<synchronous>, transform_indices = @transform_5, window_bounds = array<i64: 1, 64>}, {pipeline_mode = #tpu.pipeline_mode<synchronous>, transform_indices = @transform_6, window_bounds = array<i64: 32, 32>}, {pipeline_mode = #tpu.pipeline_mode<synchronous>, transform_indices = @transform_7, window_bounds = array<i64: 1, 32>}, {transform_indices = @transform_8, window_bounds = array<i64: 1, 8, 32>}, {transform_indices = @transform_9, window_bounds = array<i64: 1, 4, 8, 8>}]} {
    %c0_i32 = arith.constant 0 : i32
    %0 = arith.cmpi eq, %arg1, %c0_i32 : i32
    %1 = arith.extui %0 : i1 to i32
    %c0_i32_0 = arith.constant 0 : i32
    %2 = arith.cmpi ne, %1, %c0_i32_0 : i32
    scf.if %2 {
      %c0_71 = arith.constant 0 : index
      %c0_72 = arith.constant 0 : index
      %c0_73 = arith.constant 0 : index
      %104 = vector.load %arg3[%c0_71, %c0_72, %c0_73] : memref<1x8x32xbf16, #tpu.memory_space<vmem>>, vector<1x8x32xbf16>
      %105 = vector.shape_cast %104 : vector<1x8x32xbf16> to vector<8x32xbf16>
      %c0_74 = arith.constant 0 : index
      %c0_75 = arith.constant 0 : index
      %106 = vector.load %arg6[%c0_74, %c0_75] : memref<32x64xbf16, #tpu.memory_space<vmem>>, vector<32x64xbf16>
      %cst_76 = arith.constant dense<0.000000e+00> : vector<8x64xf32>
      %107 = tpu.matmul %105, %106, %cst_76 {dimension_numbers = #tpu.dot_dimension_numbers<[1], [0], [0], [1], [0, 0, 1, 1], [], []>} : vector<8x32xbf16>, vector<32x64xbf16>, vector<8x64xf32> -> vector<8x64xf32>
      %c0_77 = arith.constant 0 : index
      %c0_78 = arith.constant 0 : index
      %108 = vector.load %arg7[%c0_77, %c0_78] : memref<1x64xf32, #tpu.memory_space<vmem>>, vector<1x64xf32>
      %109 = vector.broadcast %108 : vector<1x64xf32> to vector<8x64xf32>
      %110 = arith.addf %107, %109 : vector<8x64xf32>
      %111 = arith.truncf %110 : vector<8x64xf32> to vector<8x64xbf16>
      %c0_79 = arith.constant 0 : index
      %c0_80 = arith.constant 0 : index
      %112 = vector.load %arg13[%c0_79, %c0_80] : memref<8x64xbf16, #tpu.memory_space<vmem>>, vector<8x64xbf16>
      tpu.vector_store %arg13[%c0_79, %c0_80], %111 {strides = array<i32>} : memref<8x64xbf16, #tpu.memory_space<vmem>>, vector<8x64xbf16>,
    } else {
    }
    %c0 = arith.constant 0 : index
    %c0_1 = arith.constant 0 : index
    %c0_2 = arith.constant 0 : index
    %3 = vector.load %arg2[%c0, %c0_1, %c0_2] : memref<1x8x32xbf16, #tpu.memory_space<vmem>>, vector<1x8x32xbf16>
    %4 = vector.shape_cast %3 : vector<1x8x32xbf16> to vector<8x32xbf16>
    %c0_3 = arith.constant 0 : index
    %c0_4 = arith.constant 0 : index
    %5 = vector.load %arg4[%c0_3, %c0_4] : memref<32x32xbf16, #tpu.memory_space<vmem>>, vector<32x32xbf16>
    %cst = arith.constant dense<0.000000e+00> : vector<8x32xf32>
    %6 = tpu.matmul %4, %5, %cst {dimension_numbers = #tpu.dot_dimension_numbers<[1], [0], [0], [1], [0, 0, 1, 1], [], []>} : vector<8x32xbf16>, vector<32x32xbf16>, vector<8x32xf32> -> vector<8x32xf32>
    %c0_5 = arith.constant 0 : index
    %c0_6 = arith.constant 0 : index
    %7 = vector.load %arg5[%c0_5, %c0_6] : memref<1x32xf32, #tpu.memory_space<vmem>>, vector<1x32xf32>
    %8 = vector.broadcast %7 : vector<1x32xf32> to vector<8x32xf32>
    %9 = arith.addf %6, %8 : vector<8x32xf32>
    %10 = arith.truncf %9 : vector<8x32xf32> to vector<8x32xbf16>
    %c0_7 = arith.constant 0 : index
    %c0_8 = arith.constant 0 : index
    %11 = vector.load %arg12[%c0_7, %c0_8] : memref<8x32xbf16, #tpu.memory_space<vmem>>, vector<8x32xbf16>
    tpu.vector_store %arg12[%c0_7, %c0_8], %10 {strides = array<i32>} : memref<8x32xbf16, #tpu.memory_space<vmem>>, vector<8x32xbf16>,
    %c0_9 = arith.constant 0 : index
    %c0_10 = arith.constant 0 : index
    %12 = vector.load %arg12[%c0_9, %c0_10] : memref<8x32xbf16, #tpu.memory_space<vmem>>, vector<8x8xbf16>
    %c0_11 = arith.constant 0 : index
    %c0_12 = arith.constant 0 : index
    %13 = vector.load %arg13[%c0_11, %c0_12] : memref<8x64xbf16, #tpu.memory_space<vmem>>, vector<8x8xbf16>
    %c0_13 = arith.constant 0 : index
    %c32 = arith.constant 32 : index
    %14 = vector.load %arg13[%c0_13, %c32] : memref<8x64xbf16, #tpu.memory_space<vmem>>, vector<8x8xbf16>
    %cst_14 = arith.constant dense<0.000000e+00> : vector<8x8xf32>
    %15 = tpu.matmul %12, %13, %cst_14 {dimension_numbers = #tpu.dot_dimension_numbers<[1], [1], [0], [0], [0, 0, 1, 0], [], []>} : vector<8x8xbf16>, vector<8x8xbf16>, vector<8x8xf32> -> vector<8x8xf32>
    %cst_15 = arith.constant dense<0xFF800000> : vector<8xf32>
    %16 = vector.multi_reduction <maximumf>, %15, %cst_15 [1] : vector<8x8xf32> to vector<8xf32>
    %17 = vector.shape_cast %16 : vector<8xf32> to vector<8x1xf32>
    %18 = vector.broadcast %17 : vector<8x1xf32> to vector<8x8xf32>
    %19 = arith.subf %15, %18 : vector<8x8xf32>
    %20 = math.exp %19 : vector<8x8xf32>
    %cst_16 = arith.constant dense<0.000000e+00> : vector<8xf32>
    %21 = vector.multi_reduction <add>, %20, %cst_16 [1] : vector<8x8xf32> to vector<8xf32>
    %22 = vector.shape_cast %21 : vector<8xf32> to vector<8x1xf32>
    %cst_17 = arith.constant 1.000000e+00 : f32
    %23 = vector.broadcast %cst_17 : f32 to vector<8x1xf32>
    %24 = arith.divf %23, %22 : vector<8x1xf32>
    %25 = vector.broadcast %24 : vector<8x1xf32> to vector<8x8xf32>
    %26 = arith.mulf %20, %25 : vector<8x8xf32>
    %c0_18 = arith.constant 0 : index
    %c0_19 = arith.constant 0 : index
    %c0_20 = arith.constant 0 : index
    %c0_21 = arith.constant 0 : index
    %27 = vector.load %arg11[%c0_18, %c0_19, %c0_20, %c0_21] : memref<1x4x8x8xf32, #tpu.memory_space<vmem>>, vector<1x1x8x8xf32>
    %28 = vector.shape_cast %27 : vector<1x1x8x8xf32> to vector<8x8xf32>
    %29 = vector.shape_cast %26 : vector<8x8xf32> to vector<1x1x8x8xf32>
    tpu.vector_store %arg11[%c0_18, %c0_19, %c0_20, %c0_21], %29 {strides = array<i32>} : memref<1x4x8x8xf32, #tpu.memory_space<vmem>>, vector<1x1x8x8xf32>,
    %30 = arith.truncf %26 : vector<8x8xf32> to vector<8x8xbf16>
    %cst_22 = arith.constant dense<0.000000e+00> : vector<8x8xf32>
    %31 = tpu.matmul %30, %14, %cst_22 {dimension_numbers = #tpu.dot_dimension_numbers<[1], [0], [0], [1], [0, 0, 1, 1], [], []>} : vector<8x8xbf16>, vector<8x8xbf16>, vector<8x8xf32> -> vector<8x8xf32>
    %c0_23 = arith.constant 0 : index
    %c8 = arith.constant 8 : index
    %32 = vector.load %arg12[%c0_23, %c8] : memref<8x32xbf16, #tpu.memory_space<vmem>>, vector<8x8xbf16>
    %c0_24 = arith.constant 0 : index
    %c8_25 = arith.constant 8 : index
    %33 = vector.load %arg13[%c0_24, %c8_25] : memref<8x64xbf16, #tpu.memory_space<vmem>>, vector<8x8xbf16>
    %c0_26 = arith.constant 0 : index
    %c40 = arith.constant 40 : index
    %34 = vector.load %arg13[%c0_26, %c40] : memref<8x64xbf16, #tpu.memory_space<vmem>>, vector<8x8xbf16>
    %cst_27 = arith.constant dense<0.000000e+00> : vector<8x8xf32>
    %35 = tpu.matmul %32, %33, %cst_27 {dimension_numbers = #tpu.dot_dimension_numbers<[1], [1], [0], [0], [0, 0, 1, 0], [], []>} : vector<8x8xbf16>, vector<8x8xbf16>, vector<8x8xf32> -> vector<8x8xf32>
    %cst_28 = arith.constant dense<0xFF800000> : vector<8xf32>
    %36 = vector.multi_reduction <maximumf>, %35, %cst_28 [1] : vector<8x8xf32> to vector<8xf32>
    %37 = vector.shape_cast %36 : vector<8xf32> to vector<8x1xf32>
    %38 = vector.broadcast %37 : vector<8x1xf32> to vector<8x8xf32>
    %39 = arith.subf %35, %38 : vector<8x8xf32>
    %40 = math.exp %39 : vector<8x8xf32>
    %cst_29 = arith.constant dense<0.000000e+00> : vector<8xf32>
    %41 = vector.multi_reduction <add>, %40, %cst_29 [1] : vector<8x8xf32> to vector<8xf32>
    %42 = vector.shape_cast %41 : vector<8xf32> to vector<8x1xf32>
    %cst_30 = arith.constant 1.000000e+00 : f32
    %43 = vector.broadcast %cst_30 : f32 to vector<8x1xf32>
    %44 = arith.divf %43, %42 : vector<8x1xf32>
    %45 = vector.broadcast %44 : vector<8x1xf32> to vector<8x8xf32>
    %46 = arith.mulf %40, %45 : vector<8x8xf32>
    %c0_31 = arith.constant 0 : index
    %c1 = arith.constant 1 : index
    %c0_32 = arith.constant 0 : index
    %c0_33 = arith.constant 0 : index
    %47 = vector.load %arg11[%c0_31, %c1, %c0_32, %c0_33] : memref<1x4x8x8xf32, #tpu.memory_space<vmem>>, vector<1x1x8x8xf32>
    %48 = vector.shape_cast %47 : vector<1x1x8x8xf32> to vector<8x8xf32>
    %49 = vector.shape_cast %46 : vector<8x8xf32> to vector<1x1x8x8xf32>
    tpu.vector_store %arg11[%c0_31, %c1, %c0_32, %c0_33], %49 {strides = array<i32>} : memref<1x4x8x8xf32, #tpu.memory_space<vmem>>, vector<1x1x8x8xf32>,
    %50 = arith.truncf %46 : vector<8x8xf32> to vector<8x8xbf16>
    %cst_34 = arith.constant dense<0.000000e+00> : vector<8x8xf32>
    %51 = tpu.matmul %50, %34, %cst_34 {dimension_numbers = #tpu.dot_dimension_numbers<[1], [0], [0], [1], [0, 0, 1, 1], [], []>} : vector<8x8xbf16>, vector<8x8xbf16>, vector<8x8xf32> -> vector<8x8xf32>
    %c0_35 = arith.constant 0 : index
    %c16 = arith.constant 16 : index
    %52 = vector.load %arg12[%c0_35, %c16] : memref<8x32xbf16, #tpu.memory_space<vmem>>, vector<8x8xbf16>
    %c0_36 = arith.constant 0 : index
    %c16_37 = arith.constant 16 : index
    %53 = vector.load %arg13[%c0_36, %c16_37] : memref<8x64xbf16, #tpu.memory_space<vmem>>, vector<8x8xbf16>
    %c0_38 = arith.constant 0 : index
    %c48 = arith.constant 48 : index
    %54 = vector.load %arg13[%c0_38, %c48] : memref<8x64xbf16, #tpu.memory_space<vmem>>, vector<8x8xbf16>
    %cst_39 = arith.constant dense<0.000000e+00> : vector<8x8xf32>
    %55 = tpu.matmul %52, %53, %cst_39 {dimension_numbers = #tpu.dot_dimension_numbers<[1], [1], [0], [0], [0, 0, 1, 0], [], []>} : vector<8x8xbf16>, vector<8x8xbf16>, vector<8x8xf32> -> vector<8x8xf32>
    %cst_40 = arith.constant dense<0xFF800000> : vector<8xf32>
    %56 = vector.multi_reduction <maximumf>, %55, %cst_40 [1] : vector<8x8xf32> to vector<8xf32>
    %57 = vector.shape_cast %56 : vector<8xf32> to vector<8x1xf32>
    %58 = vector.broadcast %57 : vector<8x1xf32> to vector<8x8xf32>
    %59 = arith.subf %55, %58 : vector<8x8xf32>
    %60 = math.exp %59 : vector<8x8xf32>
    %cst_41 = arith.constant dense<0.000000e+00> : vector<8xf32>
    %61 = vector.multi_reduction <add>, %60, %cst_41 [1] : vector<8x8xf32> to vector<8xf32>
    %62 = vector.shape_cast %61 : vector<8xf32> to vector<8x1xf32>
    %cst_42 = arith.constant 1.000000e+00 : f32
    %63 = vector.broadcast %cst_42 : f32 to vector<8x1xf32>
    %64 = arith.divf %63, %62 : vector<8x1xf32>
    %65 = vector.broadcast %64 : vector<8x1xf32> to vector<8x8xf32>
    %66 = arith.mulf %60, %65 : vector<8x8xf32>
    %c0_43 = arith.constant 0 : index
    %c2 = arith.constant 2 : index
    %c0_44 = arith.constant 0 : index
    %c0_45 = arith.constant 0 : index
    %67 = vector.load %arg11[%c0_43, %c2, %c0_44, %c0_45] : memref<1x4x8x8xf32, #tpu.memory_space<vmem>>, vector<1x1x8x8xf32>
    %68 = vector.shape_cast %67 : vector<1x1x8x8xf32> to vector<8x8xf32>
    %69 = vector.shape_cast %66 : vector<8x8xf32> to vector<1x1x8x8xf32>
    tpu.vector_store %arg11[%c0_43, %c2, %c0_44, %c0_45], %69 {strides = array<i32>} : memref<1x4x8x8xf32, #tpu.memory_space<vmem>>, vector<1x1x8x8xf32>,
    %70 = arith.truncf %66 : vector<8x8xf32> to vector<8x8xbf16>
    %cst_46 = arith.constant dense<0.000000e+00> : vector<8x8xf32>
    %71 = tpu.matmul %70, %54, %cst_46 {dimension_numbers = #tpu.dot_dimension_numbers<[1], [0], [0], [1], [0, 0, 1, 1], [], []>} : vector<8x8xbf16>, vector<8x8xbf16>, vector<8x8xf32> -> vector<8x8xf32>
    %c0_47 = arith.constant 0 : index
    %c24 = arith.constant 24 : index
    %72 = vector.load %arg12[%c0_47, %c24] : memref<8x32xbf16, #tpu.memory_space<vmem>>, vector<8x8xbf16>
    %c0_48 = arith.constant 0 : index
    %c24_49 = arith.constant 24 : index
    %73 = vector.load %arg13[%c0_48, %c24_49] : memref<8x64xbf16, #tpu.memory_space<vmem>>, vector<8x8xbf16>
    %c0_50 = arith.constant 0 : index
    %c56 = arith.constant 56 : index
    %74 = vector.load %arg13[%c0_50, %c56] : memref<8x64xbf16, #tpu.memory_space<vmem>>, vector<8x8xbf16>
    %cst_51 = arith.constant dense<0.000000e+00> : vector<8x8xf32>
    %75 = tpu.matmul %72, %73, %cst_51 {dimension_numbers = #tpu.dot_dimension_numbers<[1], [1], [0], [0], [0, 0, 1, 0], [], []>} : vector<8x8xbf16>, vector<8x8xbf16>, vector<8x8xf32> -> vector<8x8xf32>
    %cst_52 = arith.constant dense<0xFF800000> : vector<8xf32>
    %76 = vector.multi_reduction <maximumf>, %75, %cst_52 [1] : vector<8x8xf32> to vector<8xf32>
    %77 = vector.shape_cast %76 : vector<8xf32> to vector<8x1xf32>
    %78 = vector.broadcast %77 : vector<8x1xf32> to vector<8x8xf32>
    %79 = arith.subf %75, %78 : vector<8x8xf32>
    %80 = math.exp %79 : vector<8x8xf32>
    %cst_53 = arith.constant dense<0.000000e+00> : vector<8xf32>
    %81 = vector.multi_reduction <add>, %80, %cst_53 [1] : vector<8x8xf32> to vector<8xf32>
    %82 = vector.shape_cast %81 : vector<8xf32> to vector<8x1xf32>
    %cst_54 = arith.constant 1.000000e+00 : f32
    %83 = vector.broadcast %cst_54 : f32 to vector<8x1xf32>
    %84 = arith.divf %83, %82 : vector<8x1xf32>
    %85 = vector.broadcast %84 : vector<8x1xf32> to vector<8x8xf32>
    %86 = arith.mulf %80, %85 : vector<8x8xf32>
    %c0_55 = arith.constant 0 : index
    %c3 = arith.constant 3 : index
    %c0_56 = arith.constant 0 : index
    %c0_57 = arith.constant 0 : index
    %87 = vector.load %arg11[%c0_55, %c3, %c0_56, %c0_57] : memref<1x4x8x8xf32, #tpu.memory_space<vmem>>, vector<1x1x8x8xf32>
    %88 = vector.shape_cast %87 : vector<1x1x8x8xf32> to vector<8x8xf32>
    %89 = vector.shape_cast %86 : vector<8x8xf32> to vector<1x1x8x8xf32>
    tpu.vector_store %arg11[%c0_55, %c3, %c0_56, %c0_57], %89 {strides = array<i32>} : memref<1x4x8x8xf32, #tpu.memory_space<vmem>>, vector<1x1x8x8xf32>,
    %90 = arith.truncf %86 : vector<8x8xf32> to vector<8x8xbf16>
    %cst_58 = arith.constant dense<0.000000e+00> : vector<8x8xf32>
    %91 = tpu.matmul %90, %74, %cst_58 {dimension_numbers = #tpu.dot_dimension_numbers<[1], [0], [0], [1], [0, 0, 1, 1], [], []>} : vector<8x8xbf16>, vector<8x8xbf16>, vector<8x8xf32> -> vector<8x8xf32>
    %92 = tpu.concatenate %31, %51, %71, %91 in 1 : vector<8x8xf32>, vector<8x8xf32>, vector<8x8xf32>, vector<8x8xf32> -> vector<8x32xf32>
    %93 = arith.truncf %92 : vector<8x32xf32> to vector<8x32xbf16>
    %c0_59 = arith.constant 0 : index
    %c0_60 = arith.constant 0 : index
    %94 = vector.load %arg14[%c0_59, %c0_60] : memref<8x32xbf16, #tpu.memory_space<vmem>>, vector<8x32xbf16>
    tpu.vector_store %arg14[%c0_59, %c0_60], %93 {strides = array<i32>} : memref<8x32xbf16, #tpu.memory_space<vmem>>, vector<8x32xbf16>,
    %c0_61 = arith.constant 0 : index
    %c0_62 = arith.constant 0 : index
    %95 = vector.load %arg14[%c0_61, %c0_62] : memref<8x32xbf16, #tpu.memory_space<vmem>>, vector<8x32xbf16>
    %c0_63 = arith.constant 0 : index
    %c0_64 = arith.constant 0 : index
    %96 = vector.load %arg8[%c0_63, %c0_64] : memref<32x32xbf16, #tpu.memory_space<vmem>>, vector<32x32xbf16>
    %cst_65 = arith.constant dense<0.000000e+00> : vector<8x32xf32>
    %97 = tpu.matmul %95, %96, %cst_65 {dimension_numbers = #tpu.dot_dimension_numbers<[1], [0], [0], [1], [0, 0, 1, 1], [], []>} : vector<8x32xbf16>, vector<32x32xbf16>, vector<8x32xf32> -> vector<8x32xf32>
    %c0_66 = arith.constant 0 : index
    %c0_67 = arith.constant 0 : index
    %98 = vector.load %arg9[%c0_66, %c0_67] : memref<1x32xf32, #tpu.memory_space<vmem>>, vector<1x32xf32>
    %99 = vector.broadcast %98 : vector<1x32xf32> to vector<8x32xf32>
    %100 = arith.addf %97, %99 : vector<8x32xf32>
    %c0_68 = arith.constant 0 : index
    %c0_69 = arith.constant 0 : index
    %c0_70 = arith.constant 0 : index
    %101 = vector.load %arg10[%c0_68, %c0_69, %c0_70] : memref<1x8x32xf32, #tpu.memory_space<vmem>>, vector<1x8x32xf32>
    %102 = vector.shape_cast %101 : vector<1x8x32xf32> to vector<8x32xf32>
    %103 = vector.shape_cast %100 : vector<8x32xf32> to vector<1x8x32xf32>
    tpu.vector_store %arg10[%c0_68, %c0_69, %c0_70], %103 {strides = array<i32>} : memref<1x8x32xf32, #tpu.memory_space<vmem>>, vector<1x8x32xf32>,
    return
  }
  func.func @transform_0(%arg0: i32, %arg1: i32) -> (i32, i32, i32) {
    %c0_i32 = arith.constant 0 : i32
    %c0_i32_0 = arith.constant 0 : i32
    return %arg0, %arg1, %c0_i32 : i32, i32, i32
  }
  func.func @transform_1(%arg0: i32, %arg1: i32) -> (i32, i32, i32) {
    %c0_i32 = arith.constant 0 : i32
    %c0_i32_0 = arith.constant 0 : i32
    %c0_i32_1 = arith.constant 0 : i32
    return %arg0, %c0_i32, %c0_i32_0 : i32, i32, i32
  }
  func.func @transform_2(%arg0: i32, %arg1: i32) -> (i32, i32) {
    %c0_i32 = arith.constant 0 : i32
    %c0_i32_0 = arith.constant 0 : i32
    %c0_i32_1 = arith.constant 0 : i32
    return %c0_i32, %c0_i32_0 : i32, i32
  }
  func.func @transform_3(%arg0: i32, %arg1: i32) -> (i32, i32) {
    %c0_i32 = arith.constant 0 : i32
    %c0_i32_0 = arith.constant 0 : i32
    %c0_i32_1 = arith.constant 0 : i32
    return %c0_i32, %c0_i32_0 : i32, i32
  }
  func.func @transform_4(%arg0: i32, %arg1: i32) -> (i32, i32) {
    %c0_i32 = arith.constant 0 : i32
    %c0_i32_0 = arith.constant 0 : i32
    %c0_i32_1 = arith.constant 0 : i32
    return %c0_i32, %c0_i32_0 : i32, i32
  }
  func.func @transform_5(%arg0: i32, %arg1: i32) -> (i32, i32) {
    %c0_i32 = arith.constant 0 : i32
    %c0_i32_0 = arith.constant 0 : i32
    %c0_i32_1 = arith.constant 0 : i32
    return %c0_i32, %c0_i32_0 : i32, i32
  }
  func.func @transform_6(%arg0: i32, %arg1: i32) -> (i32, i32) {
    %c0_i32 = arith.constant 0 : i32
    %c0_i32_0 = arith.constant 0 : i32
    %c0_i32_1 = arith.constant 0 : i32
    return %c0_i32, %c0_i32_0 : i32, i32
  }
  func.func @transform_7(%arg0: i32, %arg1: i32) -> (i32, i32) {
    %c0_i32 = arith.constant 0 : i32
    %c0_i32_0 = arith.constant 0 : i32
    %c0_i32_1 = arith.constant 0 : i32
    return %c0_i32, %c0_i32_0 : i32, i32
  }
  func.func @transform_8(%arg0: i32, %arg1: i32) -> (i32, i32, i32) {
    %c0_i32 = arith.constant 0 : i32
    %c0_i32_0 = arith.constant 0 : i32
    return %arg0, %arg1, %c0_i32 : i32, i32, i32
  }
  func.func @transform_9(%arg0: i32, %arg1: i32) -> (i32, i32, i32, i32) {
    %c0_i32 = arith.constant 0 : i32
    %c0_i32_0 = arith.constant 0 : i32
    %c0_i32_1 = arith.constant 0 : i32
    return %arg0, %c0_i32, %arg1, %c0_i32_0 : i32, i32, i32, i32
  }
}

module attributes {stable_mosaic.version = 11 : i64} {
  func.func @mha_kernel(%arg0: i32, %arg1: i32, %arg2: memref<1x8x32xbf16, #tpu.memory_space<vmem>>, %arg3: memref<1x8x32xbf16, #tpu.memory_space<vmem>>, %arg4: memref<32x32xbf16, #tpu.memory_space<vmem>>, %arg5: memref<1x32xf32, #tpu.memory_space<vmem>>, %arg6: memref<32x64xbf16, #tpu.memory_space<vmem>>, %arg7: memref<1x64xf32, #tpu.memory_space<vmem>>, %arg8: memref<32x32xbf16, #tpu.memory_space<vmem>>, %arg9: memref<1x32xf32, #tpu.memory_space<vmem>>, %arg10: memref<1x8x32xf32, #tpu.memory_space<vmem>>, %arg11: memref<1x4x8x8xf32, #tpu.memory_space<vmem>>, %arg12: memref<8x32xbf16, #tpu.memory_space<vmem>>, %arg13: memref<8x64xbf16, #tpu.memory_space<vmem>>, %arg14: memref<8x32xbf16, #tpu.memory_space<vmem>>) attributes {dimension_semantics = [#tpu.dimension_semantics<parallel>, #tpu.dimension_semantics<arbitrary>], iteration_bounds = array<i64: 2, 1>, scalar_prefetch = 0 : i64, scratch_operands = 3 : i64, tpu.core_type = #tpu.core_type<tc>, window_params = [{transform_indices = @transform_0, window_bounds = array<i64: 1, 8, 32>}, {transform_indices = @transform_1, window_bounds = array<i64: 1, 8, 32>}, {pipeline_mode = #tpu.pipeline_mode<synchronous>, transform_indices = @transform_2, window_bounds = array<i64: 32, 32>}, {pipeline_mode = #tpu.pipeline_mode<synchronous>, transform_indices = @transform_3, window_bounds = array<i64: 1, 32>}, {pipeline_mode = #tpu.pipeline_mode<synchronous>, transform_indices = @transform_4, window_bounds = array<i64: 32, 64>}, {pipeline_mode = #tpu.pipeline_mode<synchronous>, transform_indices = @transform_5, window_bounds = array<i64: 1, 64>}, {pipeline_mode = #tpu.pipeline_mode<synchronous>, transform_indices = @transform_6, window_bounds = array<i64: 32, 32>}, {pipeline_mode = #tpu.pipeline_mode<synchronous>, transform_indices = @transform_7, window_bounds = array<i64: 1, 32>}, {transform_indices = @transform_8, window_bounds = array<i64: 1, 8, 32>}, {transform_indices = @transform_9, window_bounds = array<i64: 1, 4, 8, 8>}]} {
    %c0_i32 = arith.constant 0 : i32
    %0 = arith.cmpi eq, %arg1, %c0_i32 : i32
    %1 = arith.extui %0 : i1 to i32
    %c0_i32_0 = arith.constant 0 : i32
    %2 = arith.cmpi ne, %1, %c0_i32_0 : i32
    scf.if %2 {
      %c0_71 = arith.constant 0 : index
      %c0_72 = arith.constant 0 : index
      %c0_73 = arith.constant 0 : index
      %104 = vector.load %arg3[%c0_71, %c0_72, %c0_73] : memref<1x8x32xbf16, #tpu.memory_space<vmem>>, vector<1x8x32xbf16>
      %105 = vector.shape_cast %104 : vector<1x8x32xbf16> to vector<8x32xbf16>
      %c0_74 = arith.constant 0 : index
      %c0_75 = arith.constant 0 : index
      %106 = vector.load %arg6[%c0_74, %c0_75] : memref<32x64xbf16, #tpu.memory_space<vmem>>, vector<32x64xbf16>
      %cst_76 = arith.constant dense<0.000000e+00> : vector<8x64xf32>
      %107 = tpu.matmul %105, %106, %cst_76 {dimension_numbers = #tpu.dot_dimension_numbers<[1], [0], [0], [1], [0, 0, 1, 1], [], []>} : vector<8x32xbf16>, vector<32x64xbf16>, vector<8x64xf32> -> vector<8x64xf32>
      %c0_77 = arith.constant 0 : index
      %c0_78 = arith.constant 0 : index
      %108 = vector.load %arg7[%c0_77, %c0_78] : memref<1x64xf32, #tpu.memory_space<vmem>>, vector<1x64xf32>
      %109 = vector.broadcast %108 : vector<1x64xf32> to vector<8x64xf32>
      %110 = arith.addf %107, %109 : vector<8x64xf32>
      %111 = arith.truncf %110 : vector<8x64xf32> to vector<8x64xbf16>
      %c0_79 = arith.constant 0 : index
      %c0_80 = arith.constant 0 : index
      %112 = vector.load %arg13[%c0_79, %c0_80] : memref<8x64xbf16, #tpu.memory_space<vmem>>, vector<8x64xbf16>
      tpu.vector_store %arg13[%c0_79, %c0_80], %111 {strides = array<i32>} : memref<8x64xbf16, #tpu.memory_space<vmem>>, vector<8x64xbf16>,
    } else {
    }
    %c0 = arith.constant 0 : index
    %c0_1 = arith.constant 0 : index
    %c0_2 = arith.constant 0 : index
    %3 = vector.load %arg2[%c0, %c0_1, %c0_2] : memref<1x8x32xbf16, #tpu.memory_space<vmem>>, vector<1x8x32xbf16>
    %4 = vector.shape_cast %3 : vector<1x8x32xbf16> to vector<8x32xbf16>
    %c0_3 = arith.constant 0 : index
    %c0_4 = arith.constant 0 : index
    %5 = vector.load %arg4[%c0_3, %c0_4] : memref<32x32xbf16, #tpu.memory_space<vmem>>, vector<32x32xbf16>
    %cst = arith.constant dense<0.000000e+00> : vector<8x32xf32>
    %6 = tpu.matmul %4, %5, %cst {dimension_numbers = #tpu.dot_dimension_numbers<[1], [0], [0], [1], [0, 0, 1, 1], [], []>} : vector<8x32xbf16>, vector<32x32xbf16>, vector<8x32xf32> -> vector<8x32xf32>
    %c0_5 = arith.constant 0 : index
    %c0_6 = arith.constant 0 : index
    %7 = vector.load %arg5[%c0_5, %c0_6] : memref<1x32xf32, #tpu.memory_space<vmem>>, vector<1x32xf32>
    %8 = vector.broadcast %7 : vector<1x32xf32> to vector<8x32xf32>
    %9 = arith.addf %6, %8 : vector<8x32xf32>
    %10 = arith.truncf %9 : vector<8x32xf32> to vector<8x32xbf16>
    %c0_7 = arith.constant 0 : index
    %c0_8 = arith.constant 0 : index
    %11 = vector.load %arg12[%c0_7, %c0_8] : memref<8x32xbf16, #tpu.memory_space<vmem>>, vector<8x32xbf16>
    tpu.vector_store %arg12[%c0_7, %c0_8], %10 {strides = array<i32>} : memref<8x32xbf16, #tpu.memory_space<vmem>>, vector<8x32xbf16>,
    %c0_9 = arith.constant 0 : index
    %c0_10 = arith.constant 0 : index
    %12 = vector.load %arg12[%c0_9, %c0_10] : memref<8x32xbf16, #tpu.memory_space<vmem>>, vector<8x8xbf16>
    %c0_11 = arith.constant 0 : index
    %c0_12 = arith.constant 0 : index
    %13 = vector.load %arg13[%c0_11, %c0_12] : memref<8x64xbf16, #tpu.memory_space<vmem>>, vector<8x8xbf16>
    %c0_13 = arith.constant 0 : index
    %c32 = arith.constant 32 : index
    %14 = vector.load %arg13[%c0_13, %c32] : memref<8x64xbf16, #tpu.memory_space<vmem>>, vector<8x8xbf16>
    %cst_14 = arith.constant dense<0.000000e+00> : vector<8x8xf32>
    %15 = tpu.matmul %12, %13, %cst_14 {dimension_numbers = #tpu.dot_dimension_numbers<[1], [1], [0], [0], [0, 0, 1, 0], [], []>} : vector<8x8xbf16>, vector<8x8xbf16>, vector<8x8xf32> -> vector<8x8xf32>
    %cst_15 = arith.constant dense<0xFF800000> : vector<8xf32>
    %16 = vector.multi_reduction <maximumf>, %15, %cst_15 [1] : vector<8x8xf32> to vector<8xf32>
    %17 = vector.shape_cast %16 : vector<8xf32> to vector<8x1xf32>
    %18 = vector.broadcast %17 : vector<8x1xf32> to vector<8x8xf32>
    %19 = arith.subf %15, %18 : vector<8x8xf32>
    %20 = math.exp %19 : vector<8x8xf32>
    %cst_16 = arith.constant dense<0.000000e+00> : vector<8xf32>
    %21 = vector.multi_reduction <add>, %20, %cst_16 [1] : vector<8x8xf32> to vector<8xf32>
    %22 = vector.shape_cast %21 : vector<8xf32> to vector<8x1xf32>
    %cst_17 = arith.constant 1.000000e+00 : f32
    %23 = vector.broadcast %cst_17 : f32 to vector<8x1xf32>
    %24 = arith.divf %23, %22 : vector<8x1xf32>
    %25 = vector.broadcast %24 : vector<8x1xf32> to vector<8x8xf32>
    %26 = arith.mulf %20, %25 : vector<8x8xf32>
    %c0_18 = arith.constant 0 : index
    %c0_19 = arith.constant 0 : index
    %c0_20 = arith.constant 0 : index
    %c0_21 = arith.constant 0 : index
    %27 = vector.load %arg11[%c0_18, %c0_19, %c0_20, %c0_21] : memref<1x4x8x8xf32, #tpu.memory_space<vmem>>, vector<1x1x8x8xf32>
    %28 = vector.shape_cast %27 : vector<1x1x8x8xf32> to vector<8x8xf32>
    %29 = vector.shape_cast %26 : vector<8x8xf32> to vector<1x1x8x8xf32>
    tpu.vector_store %arg11[%c0_18, %c0_19, %c0_20, %c0_21], %29 {strides = array<i32>} : memref<1x4x8x8xf32, #tpu.memory_space<vmem>>, vector<1x1x8x8xf32>,
    %30 = arith.truncf %26 : vector<8x8xf32> to vector<8x8xbf16>
    %cst_22 = arith.constant dense<0.000000e+00> : vector<8x8xf32>
    %31 = tpu.matmul %30, %14, %cst_22 {dimension_numbers = #tpu.dot_dimension_numbers<[1], [0], [0], [1], [0, 0, 1, 1], [], []>} : vector<8x8xbf16>, vector<8x8xbf16>, vector<8x8xf32> -> vector<8x8xf32>
    %c0_23 = arith.constant 0 : index
    %c8 = arith.constant 8 : index
    %32 = vector.load %arg12[%c0_23, %c8] : memref<8x32xbf16, #tpu.memory_space<vmem>>, vector<8x8xbf16>
    %c0_24 = arith.constant 0 : index
    %c8_25 = arith.constant 8 : index
    %33 = vector.load %arg13[%c0_24, %c8_25] : memref<8x64xbf16, #tpu.memory_space<vmem>>, vector<8x8xbf16>
    %c0_26 = arith.constant 0 : index
    %c40 = arith.constant 40 : index
    %34 = vector.load %arg13[%c0_26, %c40] : memref<8x64xbf16, #tpu.memory_space<vmem>>, vector<8x8xbf16>
    %cst_27 = arith.constant dense<0.000000e+00> : vector<8x8xf32>
    %35 = tpu.matmul %32, %33, %cst_27 {dimension_numbers = #tpu.dot_dimension_numbers<[1], [1], [0], [0], [0, 0, 1, 0], [], []>} : vector<8x8xbf16>, vector<8x8xbf16>, vector<8x8xf32> -> vector<8x8xf32>
    %cst_28 = arith.constant dense<0xFF800000> : vector<8xf32>
    %36 = vector.multi_reduction <maximumf>, %35, %cst_28 [1] : vector<8x8xf32> to vector<8xf32>
    %37 = vector.shape_cast %36 : vector<8xf32> to vector<8x1xf32>
    %38 = vector.broadcast %37 : vector<8x1xf32> to vector<8x8xf32>
    %39 = arith.subf %35, %38 : vector<8x8xf32>
    %40 = math.exp %39 : vector<8x8xf32>
    %cst_29 = arith.constant dense<0.000000e+00> : vector<8xf32>
    %41 = vector.multi_reduction <add>, %40, %cst_29 [1] : vector<8x8xf32> to vector<8xf32>
    %42 = vector.shape_cast %41 : vector<8xf32> to vector<8x1xf32>
    %cst_30 = arith.constant 1.000000e+00 : f32
    %43 = vector.broadcast %cst_30 : f32 to vector<8x1xf32>
    %44 = arith.divf %43, %42 : vector<8x1xf32>
    %45 = vector.broadcast %44 : vector<8x1xf32> to vector<8x8xf32>
    %46 = arith.mulf %40, %45 : vector<8x8xf32>
    %c0_31 = arith.constant 0 : index
    %c1 = arith.constant 1 : index
    %c0_32 = arith.constant 0 : index
    %c0_33 = arith.constant 0 : index
    %47 = vector.load %arg11[%c0_31, %c1, %c0_32, %c0_33] : memref<1x4x8x8xf32, #tpu.memory_space<vmem>>, vector<1x1x8x8xf32>
    %48 = vector.shape_cast %47 : vector<1x1x8x8xf32> to vector<8x8xf32>
    %49 = vector.shape_cast %46 : vector<8x8xf32> to vector<1x1x8x8xf32>
    tpu.vector_store %arg11[%c0_31, %c1, %c0_32, %c0_33], %49 {strides = array<i32>} : memref<1x4x8x8xf32, #tpu.memory_space<vmem>>, vector<1x1x8x8xf32>,
    %50 = arith.truncf %46 : vector<8x8xf32> to vector<8x8xbf16>
    %cst_34 = arith.constant dense<0.000000e+00> : vector<8x8xf32>
    %51 = tpu.matmul %50, %34, %cst_34 {dimension_numbers = #tpu.dot_dimension_numbers<[1], [0], [0], [1], [0, 0, 1, 1], [], []>} : vector<8x8xbf16>, vector<8x8xbf16>, vector<8x8xf32> -> vector<8x8xf32>
    %c0_35 = arith.constant 0 : index
    %c16 = arith.constant 16 : index
    %52 = vector.load %arg12[%c0_35, %c16] : memref<8x32xbf16, #tpu.memory_space<vmem>>, vector<8x8xbf16>
    %c0_36 = arith.constant 0 : index
    %c16_37 = arith.constant 16 : index
    %53 = vector.load %arg13[%c0_36, %c16_37] : memref<8x64xbf16, #tpu.memory_space<vmem>>, vector<8x8xbf16>
    %c0_38 = arith.constant 0 : index
    %c48 = arith.constant 48 : index
    %54 = vector.load %arg13[%c0_38, %c48] : memref<8x64xbf16, #tpu.memory_space<vmem>>, vector<8x8xbf16>
    %cst_39 = arith.constant dense<0.000000e+00> : vector<8x8xf32>
    %55 = tpu.matmul %52, %53, %cst_39 {dimension_numbers = #tpu.dot_dimension_numbers<[1], [1], [0], [0], [0, 0, 1, 0], [], []>} : vector<8x8xbf16>, vector<8x8xbf16>, vector<8x8xf32> -> vector<8x8xf32>
    %cst_40 = arith.constant dense<0xFF800000> : vector<8xf32>
    %56 = vector.multi_reduction <maximumf>, %55, %cst_40 [1] : vector<8x8xf32> to vector<8xf32>
    %57 = vector.shape_cast %56 : vector<8xf32> to vector<8x1xf32>
    %58 = vector.broadcast %57 : vector<8x1xf32> to vector<8x8xf32>
    %59 = arith.subf %55, %58 : vector<8x8xf32>
    %60 = math.exp %59 : vector<8x8xf32>
    %cst_41 = arith.constant dense<0.000000e+00> : vector<8xf32>
    %61 = vector.multi_reduction <add>, %60, %cst_41 [1] : vector<8x8xf32> to vector<8xf32>
    %62 = vector.shape_cast %61 : vector<8xf32> to vector<8x1xf32>
    %cst_42 = arith.constant 1.000000e+00 : f32
    %63 = vector.broadcast %cst_42 : f32 to vector<8x1xf32>
    %64 = arith.divf %63, %62 : vector<8x1xf32>
    %65 = vector.broadcast %64 : vector<8x1xf32> to vector<8x8xf32>
    %66 = arith.mulf %60, %65 : vector<8x8xf32>
    %c0_43 = arith.constant 0 : index
    %c2 = arith.constant 2 : index
    %c0_44 = arith.constant 0 : index
    %c0_45 = arith.constant 0 : index
    %67 = vector.load %arg11[%c0_43, %c2, %c0_44, %c0_45] : memref<1x4x8x8xf32, #tpu.memory_space<vmem>>, vector<1x1x8x8xf32>
    %68 = vector.shape_cast %67 : vector<1x1x8x8xf32> to vector<8x8xf32>
    %69 = vector.shape_cast %66 : vector<8x8xf32> to vector<1x1x8x8xf32>
    tpu.vector_store %arg11[%c0_43, %c2, %c0_44, %c0_45], %69 {strides = array<i32>} : memref<1x4x8x8xf32, #tpu.memory_space<vmem>>, vector<1x1x8x8xf32>,
    %70 = arith.truncf %66 : vector<8x8xf32> to vector<8x8xbf16>
    %cst_46 = arith.constant dense<0.000000e+00> : vector<8x8xf32>
    %71 = tpu.matmul %70, %54, %cst_46 {dimension_numbers = #tpu.dot_dimension_numbers<[1], [0], [0], [1], [0, 0, 1, 1], [], []>} : vector<8x8xbf16>, vector<8x8xbf16>, vector<8x8xf32> -> vector<8x8xf32>
    %c0_47 = arith.constant 0 : index
    %c24 = arith.constant 24 : index
    %72 = vector.load %arg12[%c0_47, %c24] : memref<8x32xbf16, #tpu.memory_space<vmem>>, vector<8x8xbf16>
    %c0_48 = arith.constant 0 : index
    %c24_49 = arith.constant 24 : index
    %73 = vector.load %arg13[%c0_48, %c24_49] : memref<8x64xbf16, #tpu.memory_space<vmem>>, vector<8x8xbf16>
    %c0_50 = arith.constant 0 : index
    %c56 = arith.constant 56 : index
    %74 = vector.load %arg13[%c0_50, %c56] : memref<8x64xbf16, #tpu.memory_space<vmem>>, vector<8x8xbf16>
    %cst_51 = arith.constant dense<0.000000e+00> : vector<8x8xf32>
    %75 = tpu.matmul %72, %73, %cst_51 {dimension_numbers = #tpu.dot_dimension_numbers<[1], [1], [0], [0], [0, 0, 1, 0], [], []>} : vector<8x8xbf16>, vector<8x8xbf16>, vector<8x8xf32> -> vector<8x8xf32>
    %cst_52 = arith.constant dense<0xFF800000> : vector<8xf32>
    %76 = vector.multi_reduction <maximumf>, %75, %cst_52 [1] : vector<8x8xf32> to vector<8xf32>
    %77 = vector.shape_cast %76 : vector<8xf32> to vector<8x1xf32>
    %78 = vector.broadcast %77 : vector<8x1xf32> to vector<8x8xf32>
    %79 = arith.subf %75, %78 : vector<8x8xf32>
    %80 = math.exp %79 : vector<8x8xf32>
    %cst_53 = arith.constant dense<0.000000e+00> : vector<8xf32>
    %81 = vector.multi_reduction <add>, %80, %cst_53 [1] : vector<8x8xf32> to vector<8xf32>
    %82 = vector.shape_cast %81 : vector<8xf32> to vector<8x1xf32>
    %cst_54 = arith.constant 1.000000e+00 : f32
    %83 = vector.broadcast %cst_54 : f32 to vector<8x1xf32>
    %84 = arith.divf %83, %82 : vector<8x1xf32>
    %85 = vector.broadcast %84 : vector<8x1xf32> to vector<8x8xf32>
    %86 = arith.mulf %80, %85 : vector<8x8xf32>
    %c0_55 = arith.constant 0 : index
    %c3 = arith.constant 3 : index
    %c0_56 = arith.constant 0 : index
    %c0_57 = arith.constant 0 : index
    %87 = vector.load %arg11[%c0_55, %c3, %c0_56, %c0_57] : memref<1x4x8x8xf32, #tpu.memory_space<vmem>>, vector<1x1x8x8xf32>
    %88 = vector.shape_cast %87 : vector<1x1x8x8xf32> to vector<8x8xf32>
    %89 = vector.shape_cast %86 : vector<8x8xf32> to vector<1x1x8x8xf32>
    tpu.vector_store %arg11[%c0_55, %c3, %c0_56, %c0_57], %89 {strides = array<i32>} : memref<1x4x8x8xf32, #tpu.memory_space<vmem>>, vector<1x1x8x8xf32>,
    %90 = arith.truncf %86 : vector<8x8xf32> to vector<8x8xbf16>
    %cst_58 = arith.constant dense<0.000000e+00> : vector<8x8xf32>
    %91 = tpu.matmul %90, %74, %cst_58 {dimension_numbers = #tpu.dot_dimension_numbers<[1], [0], [0], [1], [0, 0, 1, 1], [], []>} : vector<8x8xbf16>, vector<8x8xbf16>, vector<8x8xf32> -> vector<8x8xf32>
    %92 = tpu.concatenate %31, %51, %71, %91 in 1 : vector<8x8xf32>, vector<8x8xf32>, vector<8x8xf32>, vector<8x8xf32> -> vector<8x32xf32>
    %93 = arith.truncf %92 : vector<8x32xf32> to vector<8x32xbf16>
    %c0_59 = arith.constant 0 : index
    %c0_60 = arith.constant 0 : index
    %94 = vector.load %arg14[%c0_59, %c0_60] : memref<8x32xbf16, #tpu.memory_space<vmem>>, vector<8x32xbf16>
    tpu.vector_store %arg14[%c0_59, %c0_60], %93 {strides = array<i32>} : memref<8x32xbf16, #tpu.memory_space<vmem>>, vector<8x32xbf16>,
    %c0_61 = arith.constant 0 : index
    %c0_62 = arith.constant 0 : index
    %95 = vector.load %arg14[%c0_61, %c0_62] : memref<8x32xbf16, #tpu.memory_space<vmem>>, vector<8x32xbf16>
    %c0_63 = arith.constant 0 : index
    %c0_64 = arith.constant 0 : index
    %96 = vector.load %arg8[%c0_63, %c0_64] : memref<32x32xbf16, #tpu.memory_space<vmem>>, vector<32x32xbf16>
    %cst_65 = arith.constant dense<0.000000e+00> : vector<8x32xf32>
    %97 = tpu.matmul %95, %96, %cst_65 {dimension_numbers = #tpu.dot_dimension_numbers<[1], [0], [0], [1], [0, 0, 1, 1], [], []>} : vector<8x32xbf16>, vector<32x32xbf16>, vector<8x32xf32> -> vector<8x32xf32>
    %c0_66 = arith.constant 0 : index
    %c0_67 = arith.constant 0 : index
    %98 = vector.load %arg9[%c0_66, %c0_67] : memref<1x32xf32, #tpu.memory_space<vmem>>, vector<1x32xf32>
    %99 = vector.broadcast %98 : vector<1x32xf32> to vector<8x32xf32>
    %100 = arith.addf %97, %99 : vector<8x32xf32>
    %c0_68 = arith.constant 0 : index
    %c0_69 = arith.constant 0 : index
    %c0_70 = arith.constant 0 : index
    %101 = vector.load %arg10[%c0_68, %c0_69, %c0_70] : memref<1x8x32xf32, #tpu.memory_space<vmem>>, vector<1x8x32xf32>
    %102 = vector.shape_cast %101 : vector<1x8x32xf32> to vector<8x32xf32>
    %103 = vector.shape_cast %100 : vector<8x32xf32> to vector<1x8x32xf32>
    tpu.vector_store %arg10[%c0_68, %c0_69, %c0_70], %103 {strides = array<i32>} : memref<1x8x32xf32, #tpu.memory_space<vmem>>, vector<1x8x32xf32>,
    return
  }
  func.func @transform_0(%arg0: i32, %arg1: i32) -> (i32, i32, i32) {
    %c0_i32 = arith.constant 0 : i32
    %c0_i32_0 = arith.constant 0 : i32
    return %arg0, %arg1, %c0_i32 : i32, i32, i32
  }
  func.func @transform_1(%arg0: i32, %arg1: i32) -> (i32, i32, i32) {
    %c0_i32 = arith.constant 0 : i32
    %c0_i32_0 = arith.constant 0 : i32
    %c0_i32_1 = arith.constant 0 : i32
    return %arg0, %c0_i32, %c0_i32_0 : i32, i32, i32
  }
  func.func @transform_2(%arg0: i32, %arg1: i32) -> (i32, i32) {
    %c0_i32 = arith.constant 0 : i32
    %c0_i32_0 = arith.constant 0 : i32
    %c0_i32_1 = arith.constant 0 : i32
    return %c0_i32, %c0_i32_0 : i32, i32
  }
  func.func @transform_3(%arg0: i32, %arg1: i32) -> (i32, i32) {
    %c0_i32 = arith.constant 0 : i32
    %c0_i32_0 = arith.constant 0 : i32
    %c0_i32_1 = arith.constant 0 : i32
    return %c0_i32, %c0_i32_0 : i32, i32
  }
  func.func @transform_4(%arg0: i32, %arg1: i32) -> (i32, i32) {
    %c0_i32 = arith.constant 0 : i32
    %c0_i32_0 = arith.constant 0 : i32
    %c0_i32_1 = arith.constant 0 : i32
    return %c0_i32, %c0_i32_0 : i32, i32
  }
  func.func @transform_5(%arg0: i32, %arg1: i32) -> (i32, i32) {
    %c0_i32 = arith.constant 0 : i32
    %c0_i32_0 = arith.constant 0 : i32
    %c0_i32_1 = arith.constant 0 : i32
    return %c0_i32, %c0_i32_0 : i32, i32
  }
  func.func @transform_6(%arg0: i32, %arg1: i32) -> (i32, i32) {
    %c0_i32 = arith.constant 0 : i32
    %c0_i32_0 = arith.constant 0 : i32
    %c0_i32_1 = arith.constant 0 : i32
    return %c0_i32, %c0_i32_0 : i32, i32
  }
  func.func @transform_7(%arg0: i32, %arg1: i32) -> (i32, i32) {
    %c0_i32 = arith.constant 0 : i32
    %c0_i32_0 = arith.constant 0 : i32
    %c0_i32_1 = arith.constant 0 : i32
    return %c0_i32, %c0_i32_0 : i32, i32
  }
  func.func @transform_8(%arg0: i32, %arg1: i32) -> (i32, i32, i32) {
    %c0_i32 = arith.constant 0 : i32
    %c0_i32_0 = arith.constant 0 : i32
    return %arg0, %arg1, %c0_i32 : i32, i32, i32
  }
  func.func @transform_9(%arg0: i32, %arg1: i32) -> (i32, i32, i32, i32) {
    %c0_i32 = arith.constant 0 : i32
    %c0_i32_0 = arith.constant 0 : i32
    %c0_i32_1 = arith.constant 0 : i32
    return %arg0, %c0_i32, %arg1, %c0_i32_0 : i32, i32, i32, i32
  }
}

</mosaic_0001>

<llo_original>
// kernel: tpu_custom_call.1
$region0: #{tpu_custom_call.1}
  #allocation0 [shape = 'u32[]', space=smem, size = 0x4, offset = 0x4, fixed_abs, tag = 'smem constant byte address 0x4 - core index']
  #allocation1 [shape = 'u32[144,128]{1,0:T(1,128)}', space=vmem, size = 0x12000, scoped, tag = 'internal scratch']
  #allocation2 [shape = 'bf16[8,32]{1,0:T(8,128)(2,1)}', space=vmem, size = 0x800, scoped, tag = 'scratch operand']
  #allocation3 [shape = 'bf16[8,64]{1,0:T(8,128)(2,1)}', space=vmem, size = 0x800, scoped, tag = 'scratch operand']
  #allocation4 [shape = 'bf16[8,32]{1,0:T(8,128)(2,1)}', space=vmem, size = 0x800, scoped, tag = 'scratch operand']
  %s0 = inlined_call_operand.hbm [shape: bf16[2,8,32], index: 0, kind: input, shape index: {}]
  %s1 = inlined_call_operand.hbm [shape: bf16[2,8,32], index: 1, kind: input, shape index: {}]
  %s2 = inlined_call_operand.hbm [shape: bf16[32,32], index: 2, kind: input, shape index: {}]
  %s3 = inlined_call_operand.vmem [shape: f32[1,32], index: 3, kind: input, shape index: {}]
  %s4 = inlined_call_operand.hbm [shape: bf16[32,64], index: 4, kind: input, shape index: {}]
  %s5 = inlined_call_operand.vmem [shape: f32[1,64], index: 5, kind: input, shape index: {}]
  %s6 = inlined_call_operand.vmem [shape: bf16[32,32], index: 6, kind: input, shape index: {}]
  %s7 = inlined_call_operand.vmem [shape: f32[1,32], index: 7, kind: input, shape index: {}]
  %s8 = inlined_call_operand.hbm [shape: f32[2,8,32], index: 8, kind: output, shape index: {0}]
  %s9 = inlined_call_operand.hbm [shape: f32[2,4,8,8], index: 9, kind: output, shape index: {1}]
  %10 = xla_tuple %s8, %s9
  %s11 = sld [smem:[#allocation0]]
  $region93: #{tpu_custom_call.1} parent=0
    _
  %s13 = ssub.s32 1, %s11
  %s14 = scalar_select 0, %s13, %s11
  $region1: #{tpu_custom_call.1} parent=0
    #allocation5 [shape = 'u8[4096]{0}', space=vmem, size = 0x1000, scoped, tag = 'input window, operand 0']
    #allocation6 [shape = 's32[2]{0}', space=sflag, size = 0x8, scoped, tag = 'scoped memory for tpu_custom_call.1']
    #allocation7 [shape = 's32[2]{0}', space=sflag, size = 0x8, scoped, tag = 'scoped memory for tpu_custom_call.1']
    #allocation8 [shape = 'u8[4096]{0}', space=vmem, size = 0x1000, scoped, tag = 'input window, operand 1']
    #allocation9 [shape = 's32[2]{0}', space=sflag, size = 0x8, scoped, tag = 'scoped memory for tpu_custom_call.1']
    #allocation10 [shape = 'u8[8192]{0}', space=vmem, size = 0x2000, scoped, tag = 'input window, operand 2, single buffered']
    #allocation11 [shape = 'u8[8192]{0}', space=vmem, size = 0x2000, scoped, tag = 'input window, operand 4, single buffered']
    #allocation12 [shape = 's32[1]{0}', space=sflag, size = 0x4, scoped, tag = 'scoped memory for tpu_custom_call.1']
    #allocation13 [shape = 'u8[8192]{0}', space=vmem, size = 0x2000, scoped, tag = 'output window, operand 0']
    #allocation14 [shape = 'u8[32768]{0}', space=vmem, size = 0x8000, scoped, tag = 'output window, operand 1']
    #allocation15 [shape = 's32[2]{0}', space=sflag, size = 0x8, scoped, tag = 'scoped memory for tpu_custom_call.1']
    %15 = vsyncpa [#allocation6], 0
    %s16 = scalar_lea.sflag [#allocation6], 1
    %17 = vsyncpa %s16, 0
    %18 = vsyncpa [#allocation9], 0
    %s19 = scalar_lea.sflag [#allocation9], 1
    %20 = vsyncpa %s19, 0
    %21 = vsyncpa [#allocation12], 0
    %22 = vsyncpa [#allocation7], 0
    %s23 = scalar_lea.sflag [#allocation7], 1
    %24 = vsyncpa %s23, 0
    %25 = vsyncpa [#allocation15], 0
    %s26 = scalar_lea.sflag [#allocation15], 1
    %27 = vsyncpa %s26, 0
    loop: start=0, step=1, limit=4
    $region2: #{tpu_custom_call.1} parent=1 // loop_pre_header
      _
    $region3: #{tpu_custom_call.1} parent=1 // loop_header
      %s29 = sphi 0, %s33
      %p30 = scmp.ge.s32.totalorder %s29, 4
      %s36 = sphi 0, %s48
      %s37 = sphi 0, %s44
      %s38 = sphi 0, %s36
      %s39 = sphi 0, %s37
      %s40 = sphi 0, %s38
      %s41 = sphi 0, %s39
      %s53 = sphi 0, %s55
      %s56 = sphi 0, %s53
      %s57 = sphi 0, %s56
      %s73 = sphi 0, %s57
      %s79 = sphi 0, %s81
      %s82 = sphi 0, %s79
      %s83 = sphi 0, %s82
      %s99 = sphi 0, %s83
      %s103 = sphi 0, %s103
      %s105 = sphi 0, %s103
      %s106 = sphi 0, %s105
      %s120 = sphi 0, %s106
      %s124 = sphi 0, %s124
      %s126 = sphi 0, %s124
      %s127 = sphi 0, %s126
      %s141 = sphi 0, %s127
      %s145 = sphi 0, %s145
      %s147 = sphi 0, %s145
      %s148 = sphi 0, %s147
      %s162 = sphi 0, %s148
      %s166 = sphi 0, %s166
      %s168 = sphi 0, %s166
      %s169 = sphi 0, %s168
      %s183 = sphi 0, %s169
      %s187 = sphi 0, %s187
      %s189 = sphi 0, %s187
      %s190 = sphi 0, %s189
      %s204 = sphi 0, %s190
      %s208 = sphi 0, %s208
      %s210 = sphi 0, %s208
      %s211 = sphi 0, %s210
      %s225 = sphi 0, %s211
      %s233 = sphi 0, %s235
      %s236 = sphi 0, %s233
      %s237 = sphi 0, %s236
      %s253 = sphi 0, %s237
      %s261 = sphi 0, %s263
      %s264 = sphi 0, %s261
      %s265 = sphi 0, %s264
      %s281 = sphi 0, %s265
    $region4: #{tpu_custom_call.1} parent=1 // loop_header_branch
      %32 = sbr.rel (%p30) target = $region8
    $region5: #{tpu_custom_call.1} parent=1 // loop_body
      %s34 = ssub.s32 %s29, 1
      %s35 = ssub.s32 %s29, 2
      %s42 = sadd.s32 1, %s37
      %p43 = scmp.ge.s32.totalorder %s42, 1
      %s44 = scalar_select %p43, 0, %s42
      %s45 = sadd.s32 1, %s36
      %s46 = scalar_select %p43, %s45, %s36
      %p47 = scmp.ge.s32.totalorder %s46, 2
      %s48 = scalar_select %p47, 0, %s46
      %s49 = ssub.s32 %s36, %s48
      %s50 = ssub.s32 %s37, %s44
      %s51 = sor.u32 %s49, %s50
      %p52 = scmp.eq.s32.totalorder %s51, 0
      %s54 = sadd.s32 %s53, 1
      %s55 = scalar_select %p52, %s53, %s54
      %p58 = pneg %p52
      %p59 = scmp.eq.s32.totalorder %s29, 1
      %p60 = por %p58, %p59
      %p61 = scmp.ne.s32.totalorder %s53, %s56
      %p62 = scmp.eq.s32.totalorder %s29, 0
      %p63 = por %p61, %p62
      %p64 = scmp.ne.s32.totalorder %s53, %s56
      %p65 = scmp.eq.s32.totalorder %s34, 1
      %p66 = por %p64, %p65
      %p67 = scmp.ne.s32.totalorder %s56, %s57
      %p68 = scmp.eq.s32.totalorder %s34, 0
      %p69 = por %p67, %p68
      %p70 = scmp.ne.s32.totalorder %s56, %s57
      %p71 = scmp.eq.s32.totalorder %s35, 1
      %p72 = por %p70, %p71
      %p74 = scmp.ne.s32.totalorder %s57, %s73
      %p75 = scmp.eq.s32.totalorder %s35, 0
      %p76 = por %p74, %p75
      %s77 = ssub.s32 %s36, %s48
      %p78 = scmp.eq.s32.totalorder %s77, 0
      %s80 = sadd.s32 %s79, 1
      %s81 = scalar_select %p78, %s79, %s80
      %p84 = pneg %p78
      %p85 = scmp.eq.s32.totalorder %s29, 1
      %p86 = por %p84, %p85
      %p87 = scmp.ne.s32.totalorder %s79, %s82
      %p88 = scmp.eq.s32.totalorder %s29, 0
      %p89 = por %p87, %p88
      %p90 = scmp.ne.s32.totalorder %s79, %s82
      %p91 = scmp.eq.s32.totalorder %s34, 1
      %p92 = por %p90, %p91
      %p93 = scmp.ne.s32.totalorder %s82, %s83
      %p94 = scmp.eq.s32.totalorder %s34, 0
      %p95 = por %p93, %p94
      %p96 = scmp.ne.s32.totalorder %s82, %s83
      %p97 = scmp.eq.s32.totalorder %s35, 1
      %p98 = por %p96, %p97
      %p100 = scmp.ne.s32.totalorder %s83, %s99
      %p101 = scmp.eq.s32.totalorder %s35, 0
      %p102 = por %p100, %p101
      %s104 = sadd.s32 %s103, 1
      %p107 = scmp.eq.s32.totalorder %s29, 1
      %p108 = scmp.ne.s32.totalorder %s103, %s105
      %p109 = scmp.eq.s32.totalorder %s29, 0
      %p110 = por %p108, %p109
      %p111 = scmp.ne.s32.totalorder %s103, %s105
      %p112 = scmp.eq.s32.totalorder %s34, 1
      %p113 = por %p111, %p112
      %p114 = scmp.ne.s32.totalorder %s105, %s106
      %p115 = scmp.eq.s32.totalorder %s34, 0
      %p116 = por %p114, %p115
      %p117 = scmp.ne.s32.totalorder %s105, %s106
      %p118 = scmp.eq.s32.totalorder %s35, 1
      %p119 = por %p117, %p118
      %p121 = scmp.ne.s32.totalorder %s106, %s120
      %p122 = scmp.eq.s32.totalorder %s35, 0
      %p123 = por %p121, %p122
      %s125 = sadd.s32 %s124, 1
      %p128 = scmp.eq.s32.totalorder %s29, 1
      %p129 = scmp.ne.s32.totalorder %s124, %s126
      %p130 = scmp.eq.s32.totalorder %s29, 0
      %p131 = por %p129, %p130
      %p132 = scmp.ne.s32.totalorder %s124, %s126
      %p133 = scmp.eq.s32.totalorder %s34, 1
      %p134 = por %p132, %p133
      %p135 = scmp.ne.s32.totalorder %s126, %s127
      %p136 = scmp.eq.s32.totalorder %s34, 0
      %p137 = por %p135, %p136
      %p138 = scmp.ne.s32.totalorder %s126, %s127
      %p139 = scmp.eq.s32.totalorder %s35, 1
      %p140 = por %p138, %p139
      %p142 = scmp.ne.s32.totalorder %s127, %s141
      %p143 = scmp.eq.s32.totalorder %s35, 0
      %p144 = por %p142, %p143
      %s146 = sadd.s32 %s145, 1
      %p149 = scmp.eq.s32.totalorder %s29, 1
      %p150 = scmp.ne.s32.totalorder %s145, %s147
      %p151 = scmp.eq.s32.totalorder %s29, 0
      %p152 = por %p150, %p151
      %p153 = scmp.ne.s32.totalorder %s145, %s147
      %p154 = scmp.eq.s32.totalorder %s34, 1
      %p155 = por %p153, %p154
      %p156 = scmp.ne.s32.totalorder %s147, %s148
      %p157 = scmp.eq.s32.totalorder %s34, 0
      %p158 = por %p156, %p157
      %p159 = scmp.ne.s32.totalorder %s147, %s148
      %p160 = scmp.eq.s32.totalorder %s35, 1
      %p161 = por %p159, %p160
      %p163 = scmp.ne.s32.totalorder %s148, %s162
      %p164 = scmp.eq.s32.totalorder %s35, 0
      %p165 = por %p163, %p164
      %s167 = sadd.s32 %s166, 1
      %p170 = scmp.eq.s32.totalorder %s29, 1
      %p171 = scmp.ne.s32.totalorder %s166, %s168
      %p172 = scmp.eq.s32.totalorder %s29, 0
      %p173 = por %p171, %p172
      %p174 = scmp.ne.s32.totalorder %s166, %s168
      %p175 = scmp.eq.s32.totalorder %s34, 1
      %p176 = por %p174, %p175
      %p177 = scmp.ne.s32.totalorder %s168, %s169
      %p178 = scmp.eq.s32.totalorder %s34, 0
      %p179 = por %p177, %p178
      %p180 = scmp.ne.s32.totalorder %s168, %s169
      %p181 = scmp.eq.s32.totalorder %s35, 1
      %p182 = por %p180, %p181
      %p184 = scmp.ne.s32.totalorder %s169, %s183
      %p185 = scmp.eq.s32.totalorder %s35, 0
      %p186 = por %p184, %p185
      %s188 = sadd.s32 %s187, 1
      %p191 = scmp.eq.s32.totalorder %s29, 1
      %p192 = scmp.ne.s32.totalorder %s187, %s189
      %p193 = scmp.eq.s32.totalorder %s29, 0
      %p194 = por %p192, %p193
      %p195 = scmp.ne.s32.totalorder %s187, %s189
      %p196 = scmp.eq.s32.totalorder %s34, 1
      %p197 = por %p195, %p196
      %p198 = scmp.ne.s32.totalorder %s189, %s190
      %p199 = scmp.eq.s32.totalorder %s34, 0
      %p200 = por %p198, %p199
      %p201 = scmp.ne.s32.totalorder %s189, %s190
      %p202 = scmp.eq.s32.totalorder %s35, 1
      %p203 = por %p201, %p202
      %p205 = scmp.ne.s32.totalorder %s190, %s204
      %p206 = scmp.eq.s32.totalorder %s35, 0
      %p207 = por %p205, %p206
      %s209 = sadd.s32 %s208, 1
      %p212 = scmp.eq.s32.totalorder %s29, 1
      %p213 = scmp.ne.s32.totalorder %s208, %s210
      %p214 = scmp.eq.s32.totalorder %s29, 0
      %p215 = por %p213, %p214
      %p216 = scmp.ne.s32.totalorder %s208, %s210
      %p217 = scmp.eq.s32.totalorder %s34, 1
      %p218 = por %p216, %p217
      %p219 = scmp.ne.s32.totalorder %s210, %s211
      %p220 = scmp.eq.s32.totalorder %s34, 0
      %p221 = por %p219, %p220
      %p222 = scmp.ne.s32.totalorder %s210, %s211
      %p223 = scmp.eq.s32.totalorder %s35, 1
      %p224 = por %p222, %p223
      %p226 = scmp.ne.s32.totalorder %s211, %s225
      %p227 = scmp.eq.s32.totalorder %s35, 0
      %p228 = por %p226, %p227
      %s229 = ssub.s32 %s36, %s48
      %s230 = ssub.s32 %s37, %s44
      %s231 = sor.u32 %s229, %s230
      %p232 = scmp.eq.s32.totalorder %s231, 0
      %s234 = sadd.s32 %s233, 1
      %s235 = scalar_select %p232, %s233, %s234
      %p238 = pneg %p232
      %p239 = scmp.eq.s32.totalorder %s29, 1
      %p240 = por %p238, %p239
      %p241 = scmp.ne.s32.totalorder %s233, %s236
      %p242 = scmp.eq.s32.totalorder %s29, 0
      %p243 = por %p241, %p242
      %p244 = scmp.ne.s32.totalorder %s233, %s236
      %p245 = scmp.eq.s32.totalorder %s34, 1
      %p246 = por %p244, %p245
      %p247 = scmp.ne.s32.totalorder %s236, %s237
      %p248 = scmp.eq.s32.totalorder %s34, 0
      %p249 = por %p247, %p248
      %p250 = scmp.ne.s32.totalorder %s236, %s237
      %p251 = scmp.eq.s32.totalorder %s35, 1
      %p252 = por %p250, %p251
      %p254 = scmp.ne.s32.totalorder %s237, %s253
      %p255 = scmp.eq.s32.totalorder %s35, 0
      %p256 = por %p254, %p255
      %s257 = ssub.s32 %s36, %s48
      %s258 = ssub.s32 %s37, %s44
      %s259 = sor.u32 %s257, %s258
      %p260 = scmp.eq.s32.totalorder %s259, 0
      %s262 = sadd.s32 %s261, 1
      %s263 = scalar_select %p260, %s261, %s262
      %p266 = pneg %p260
      %p267 = scmp.eq.s32.totalorder %s29, 1
      %p268 = por %p266, %p267
      %p269 = scmp.ne.s32.totalorder %s261, %s264
      %p270 = scmp.eq.s32.totalorder %s29, 0
      %p271 = por %p269, %p270
      %p272 = scmp.ne.s32.totalorder %s261, %s264
      %p273 = scmp.eq.s32.totalorder %s34, 1
      %p274 = por %p272, %p273
      %p275 = scmp.ne.s32.totalorder %s264, %s265
      %p276 = scmp.eq.s32.totalorder %s34, 0
      %p277 = por %p275, %p276
      %p278 = scmp.ne.s32.totalorder %s264, %s265
      %p279 = scmp.eq.s32.totalorder %s35, 1
      %p280 = por %p278, %p279
      %p282 = scmp.ne.s32.totalorder %s265, %s281
      %p283 = scmp.eq.s32.totalorder %s35, 0
      %p284 = por %p282, %p283
      %p285 = scmp.le.s32.totalorder 1, %s29
      %p286 = scmp.lt.s32.totalorder %s29, 3
      %p287 = pnand %p285, %p286
      %p288 = pneg %p287
      // Predicated region
      $region9: #{tpu_custom_call.1} parent=5 // pred_check
        _
      $region10: #{tpu_custom_call.1} parent=5 // pred_check_branch
        %290 = sbr.rel (%p287) target = $region12
      $region11: #{tpu_custom_call.1} parent=5 // pred_region
        %s291 = ssub.s32 %s29, 1
        // Predicated region
        $region13: #{tpu_custom_call.1} parent=11 // pred_check
          %p292 = pneg %p116
        $region14: #{tpu_custom_call.1} parent=11 // pred_check_branch
          %294 = sbr.rel (%p292) target = $region16
        $region15: #{tpu_custom_call.1} parent=11 // pred_region
          %s296 = ssub.s32 256, 256
          %297 = vsyncadd [#allocation9], %s296
          %s298 = sshll.u32 [#allocation10], 4
          %s299 = int_to_ptr.vmem [resolvable:$true] %s298
          %304 = dma.hbm_to_vmem [thread:$0]  %s2, 256, %s299, [#allocation9], 64, 64, 4
        $region16: #{tpu_custom_call.1} parent=11 // pred_fallthru
          _
        // Predicated region
        $region17: #{tpu_custom_call.1} parent=11 // pred_check
          %p305 = pneg %p137
        $region18: #{tpu_custom_call.1} parent=11 // pred_check_branch
          %307 = sbr.rel (%p305) target = $region20
        $region19: #{tpu_custom_call.1} parent=11 // pred_region
          _
        $region20: #{tpu_custom_call.1} parent=11 // pred_fallthru
          _
        // Predicated region
        $region21: #{tpu_custom_call.1} parent=11 // pred_check
          %p308 = pneg %p158
        $region22: #{tpu_custom_call.1} parent=11 // pred_check_branch
          %310 = sbr.rel (%p308) target = $region24
        $region23: #{tpu_custom_call.1} parent=11 // pred_region
          %s312 = ssub.s32 256, 256
          %313 = vsyncadd [#allocation12], %s312
          %s314 = sshll.u32 [#allocation11], 4
          %s315 = int_to_ptr.vmem [resolvable:$true] %s314
          %320 = dma.hbm_to_vmem [thread:$0]  %s4, 256, %s315, [#allocation12], 64, 64, 4
        $region24: #{tpu_custom_call.1} parent=11 // pred_fallthru
          _
        // Predicated region
        $region25: #{tpu_custom_call.1} parent=11 // pred_check
          %p321 = pneg %p179
        $region26: #{tpu_custom_call.1} parent=11 // pred_check_branch
          %323 = sbr.rel (%p321) target = $region28
        $region27: #{tpu_custom_call.1} parent=11 // pred_region
          _
        $region28: #{tpu_custom_call.1} parent=11 // pred_fallthru
          _
        // Predicated region
        $region29: #{tpu_custom_call.1} parent=11 // pred_check
          %p324 = pneg %p200
        $region30: #{tpu_custom_call.1} parent=11 // pred_check_branch
          %326 = sbr.rel (%p324) target = $region32
        $region31: #{tpu_custom_call.1} parent=11 // pred_region
          _
        $region32: #{tpu_custom_call.1} parent=11 // pred_fallthru
          _
        // Predicated region
        $region33: #{tpu_custom_call.1} parent=11 // pred_check
          %p327 = pneg %p221
        $region34: #{tpu_custom_call.1} parent=11 // pred_check_branch
          %329 = sbr.rel (%p327) target = $region36
        $region35: #{tpu_custom_call.1} parent=11 // pred_region
          _
        $region36: #{tpu_custom_call.1} parent=11 // pred_fallthru
          _
      $region12: #{tpu_custom_call.1} parent=5 // pred_fallthru
        _
      %p330 = scmp.lt.s32.totalorder %s29, 2
      // Predicated region
      $region37: #{tpu_custom_call.1} parent=5 // pred_check
        %p331 = pneg %p330
      $region38: #{tpu_custom_call.1} parent=5 // pred_check_branch
        %333 = sbr.rel (%p331) target = $region40
      $region39: #{tpu_custom_call.1} parent=5 // pred_region
        // Predicated region
        $region41: #{tpu_custom_call.1} parent=39 // pred_check
          %p334 = pneg %p63
        $region42: #{tpu_custom_call.1} parent=39 // pred_check_branch
          %336 = sbr.rel (%p334) target = $region44
        $region43: #{tpu_custom_call.1} parent=39 // pred_region
          %s337 = sand.u32 %s53, 1
          %s338 = scalar_lea.sflag [#allocation6], %s337
          %s339 = sand.u32 %s53, 1
          %s340 = smul.addr %s339, 4
          %s341 = scalar_lea.vmem [#allocation5], %s340
          %s343 = ssub.s32 64, 64
          %344 = vsyncadd %s338, %s343
          %s345 = sadd.s32 %s37, %s36
          %s346 = smul.addr %s345, 64
          %s347 = scalar_lea.hbm %s0, %s346
          %s349 = sshll.u32 %s341, 4
          %s350 = int_to_ptr.vmem [resolvable:$true] %s349
          %352 = dma.hbm_to_vmem [thread:$0]  %s347, 64, %s350, %s338
        $region44: #{tpu_custom_call.1} parent=39 // pred_fallthru
          _
        // Predicated region
        $region45: #{tpu_custom_call.1} parent=39 // pred_check
          %p353 = pneg %p89
        $region46: #{tpu_custom_call.1} parent=39 // pred_check_branch
          %355 = sbr.rel (%p353) target = $region48
        $region47: #{tpu_custom_call.1} parent=39 // pred_region
          %s356 = sand.u32 %s29, 1
          %s357 = scalar_lea.sflag [#allocation9], %s356
          %s358 = sand.u32 %s79, 1
          %s359 = smul.addr %s358, 4
          %s360 = scalar_lea.vmem [#allocation8], %s359
          %s362 = ssub.s32 64, 64
          %363 = vsyncadd %s357, %s362
          %s364 = smul.addr %s36, 64
          %s365 = scalar_lea.hbm %s1, %s364
          %s367 = sshll.u32 %s360, 4
          %s368 = int_to_ptr.vmem [resolvable:$true] %s367
          %370 = dma.hbm_to_vmem [thread:$0]  %s365, 64, %s368, %s357
        $region48: #{tpu_custom_call.1} parent=39 // pred_fallthru
          _
      $region40: #{tpu_custom_call.1} parent=5 // pred_fallthru
        _
      %p371 = scmp.le.s32.totalorder 1, %s29
      %p372 = scmp.lt.s32.totalorder %s29, 3
      %p373 = pnand %p371, %p372
      %p374 = pneg %p373
      // Predicated region
      $region49: #{tpu_custom_call.1} parent=5 // pred_check
        _
      $region50: #{tpu_custom_call.1} parent=5 // pred_check_branch
        %376 = sbr.rel (%p373) target = $region52
      $region51: #{tpu_custom_call.1} parent=5 // pred_region
        %s377 = ssub.s32 %s29, 1
        %s378 = sand.u32 %s56, 1
        %s379 = scalar_lea.sflag [#allocation6], %s378
        %s380 = sand.u32 %s56, 1
        %s381 = smul.addr %s380, 4
        %s382 = scalar_lea.vmem [#allocation5], %s381
        // Predicated region
        $region53: #{tpu_custom_call.1} parent=51 // pred_check
          %p383 = pneg %p69
        $region54: #{tpu_custom_call.1} parent=51 // pred_check_branch
          %385 = sbr.rel (%p383) target = $region56
        $region55: #{tpu_custom_call.1} parent=51 // pred_region
          %386 = dma.done %s379, 64
        $region56: #{tpu_custom_call.1} parent=51 // pred_fallthru
          _
        %s387 = sand.u32 %s34, 1
        %s388 = scalar_lea.sflag [#allocation9], %s387
        %s389 = sand.u32 %s82, 1
        %s390 = smul.addr %s389, 4
        %s391 = scalar_lea.vmem [#allocation8], %s390
        // Predicated region
        $region57: #{tpu_custom_call.1} parent=51 // pred_check
          %p392 = pneg %p95
        $region58: #{tpu_custom_call.1} parent=51 // pred_check_branch
          %394 = sbr.rel (%p392) target = $region60
        $region59: #{tpu_custom_call.1} parent=51 // pred_region
          %395 = dma.done %s388, 64
        $region60: #{tpu_custom_call.1} parent=51 // pred_fallthru
          _
        // Predicated region
        $region61: #{tpu_custom_call.1} parent=51 // pred_check
          %p396 = pneg %p116
        $region62: #{tpu_custom_call.1} parent=51 // pred_check_branch
          %398 = sbr.rel (%p396) target = $region64
        $region63: #{tpu_custom_call.1} parent=51 // pred_region
          %399 = dma.done [#allocation9], 256
        $region64: #{tpu_custom_call.1} parent=51 // pred_fallthru
          _
        // Predicated region
        $region65: #{tpu_custom_call.1} parent=51 // pred_check
          %p400 = pneg %p158
        $region66: #{tpu_custom_call.1} parent=51 // pred_check_branch
          %402 = sbr.rel (%p400) target = $region68
        $region67: #{tpu_custom_call.1} parent=51 // pred_region
          %403 = dma.done [#allocation12], 256
        $region68: #{tpu_custom_call.1} parent=51 // pred_fallthru
          _
        %s404 = sand.u32 %s56, 1
        %s405 = scalar_lea.sflag [#allocation6], %s404
        %s406 = sand.u32 %s56, 1
        %s407 = smul.addr %s406, 4
        %s408 = scalar_lea.vmem [#allocation5], %s407
        %p409 = pneg %p69
        %p410 = pneg %p66
        %s411 = sand.u32 %s34, 1
        %s412 = scalar_lea.sflag [#allocation9], %s411
        %s413 = sand.u32 %s82, 1
        %s414 = smul.addr %s413, 4
        %s415 = scalar_lea.vmem [#allocation8], %s414
        %p416 = pneg %p95
        %p417 = pneg %p92
        %p418 = pneg %p116
        %p419 = pneg %p113
        %p420 = pneg %p137
        %p421 = pneg %p134
        %p422 = pneg %p158
        %p423 = pneg %p155
        %p424 = pneg %p179
        %p425 = pneg %p176
        %p426 = pneg %p200
        %p427 = pneg %p197
        %p428 = pneg %p221
        %p429 = pneg %p218
        %p430 = pneg %p249
        %p431 = pneg %p246
        %s432 = sand.u32 %s236, 1
        %s433 = scalar_lea.sflag [#allocation7], %s432
        %s434 = sand.u32 %s236, 1
        %s435 = smul.addr %s434, 8
        %s436 = scalar_lea.vmem [#allocation13], %s435
        %p437 = pneg %p277
        %p438 = pneg %p274
        %s439 = sand.u32 %s264, 1
        %s440 = scalar_lea.sflag [#allocation15], %s439
        %s441 = sand.u32 %s264, 1
        %s442 = smul.addr %s441, 32
        %s443 = scalar_lea.vmem [#allocation14], %s442
        %p445 = scmp.eq.s32.totalorder %s39, 0
        // Predicated region
        $region69: #{tpu_custom_call.1} parent=51 // pred_check
          %p446 = pneg %p445
        $region70: #{tpu_custom_call.1} parent=51 // pred_check_branch
          %448 = sbr.rel (%p446) target = $region72
        $region71: #{tpu_custom_call.1} parent=51 // pred_region
          %v449 = vld [vmem:[%s391] sm:$0xf]
          %v450 = vld [vmem:[#allocation11] sm:$0xf]
          %v451 = vld [vmem:[#allocation11 + $0x4] sm:$0xf]
          %v452 = vld [vmem:[#allocation11 + $0x8] sm:$0xf]
          %v453 = vld [vmem:[#allocation11 + $0xc] sm:$0xf]
          %v454 = vld [vmem:[%s5] sm:$0x1]
          %v456 = vlaneseq
          %v457 = vshrl.u32 %v456, 7
          %v458 = vsub.s32 0, %v457
          %v459 = vrot.slane %v454, %v458
          %v465 = vunpack.c.l.b16 %v450
          %v466 = vunpack.c.l.b16 %v451
          %v467 = vunpack.c.l.b16 %v452
          %v468 = vunpack.c.l.b16 %v453
          %v469 = vpack.c.b16 %v466, %v465
          %v470 = vpack.c.b16 %v468, %v467
          %vm473 = vcmask 261120
          %v475 = vsel %vm473, %v449, 0
          %477 = vmatprep.subr.bf16.mxu0 0
          %478 = vmatpush1.bf16.msra.mxu0 %v469
          %479 = vmatprep.subr.bf16.mxu0 0
          %480 = vmatpush1.bf16.msra.mxu0 %v470
          %481 = vmatprep.subr.bf16.mxu0 0
          %482 = vmatpush1.bf16.msra.mxu0 0
          %483 = vmatprep.subr.bf16.mxu0 0
          %484 = vmatpush1.bf16.msra.mxu0 0
          %485 = vmatprep.subr.bf16.mxu0 0
          %486 = vmatpush1.bf16.msra.mxu0 0
          %487 = vmatprep.subr.bf16.mxu0 0
          %488 = vmatpush1.bf16.msra.mxu0 0
          %489 = vmatprep.subr.bf16.mxu0 0
          %490 = vmatpush1.bf16.msra.mxu0 0
          %491 = vmatprep.subr.bf16.mxu0 0
          %492 = vmatpush1.bf16.msra.mxu0 0
          %493 = vmatprep.subr.bf16.mxu0 0
          %494 = vmatpush1.bf16.msra.mxu0 0
          %495 = vmatprep.subr.bf16.mxu0 0
          %496 = vmatpush1.bf16.msra.mxu0 0
          %497 = vmatprep.subr.bf16.mxu0 0
          %498 = vmatpush1.bf16.msra.mxu0 0
          %499 = vmatprep.subr.bf16.mxu0 0
          %500 = vmatpush1.bf16.msra.mxu0 0
          %501 = vmatprep.subr.bf16.mxu0 0
          %502 = vmatpush1.bf16.msra.mxu0 0
          %503 = vmatprep.subr.bf16.mxu0 0
          %504 = vmatpush1.bf16.msra.mxu0 0
          %505 = vmatprep.subr.bf16.mxu0 0
          %506 = vmatpush1.bf16.msra.mxu0 0
          %507 = vmatprep.subr.bf16.mxu0 0
          %508 = vmatpush1.bf16.msra.mxu0 0
          %509 = vmatprep.mubr.bf16.mxu0 0
          %510 = vmatmul.mubr.bf16.gmra.mrb[0].mxu0 %v475
          %v511 = vpop.f32.mrb[0].mxu0
          %v512 = vadd.f32 %v459, %v511
          %v513 = vpop.f32.mrb[0].mxu0
          %v514 = vpop.f32.mrb[0].mxu0
          %v515 = vpop.f32.mrb[0].mxu0
          %516 = vdwg.mxu0
          %v517 = vpack.c.bf16 %v512, %v512
          %vm518 = vcmask 519168
          %519 = vst.msk [vmem:[#allocation3] sm:$0xf] %vm518, %v517
        $region72: #{tpu_custom_call.1} parent=51 // pred_fallthru
          _
        %v520 = vld [vmem:[%s382] sm:$0xf]
        %v521 = vld [vmem:[#allocation10] sm:$0xf]
        %v522 = vld [vmem:[#allocation10 + $0x4] sm:$0xf]
        %v523 = vld [vmem:[#allocation10 + $0x8] sm:$0xf]
        %v524 = vld [vmem:[#allocation10 + $0xc] sm:$0xf]
        %v525 = vld [vmem:[%s3] sm:$0x1]
        %v527 = vlaneseq
        %v528 = vshrl.u32 %v527, 7
        %v529 = vsub.s32 0, %v528
        %v530 = vrot.slane %v525, %v529
        %v536 = vunpack.c.l.b16 %v521
        %v537 = vunpack.c.l.b16 %v522
        %v538 = vunpack.c.l.b16 %v523
        %v539 = vunpack.c.l.b16 %v524
        %v540 = vpack.c.b16 %v537, %v536
        %v541 = vpack.c.b16 %v539, %v538
        %vm544 = vcmask 261120
        %v546 = vsel %vm544, %v520, 0
        %548 = vmatprep.subr.bf16.mxu0 0
        %549 = vmatpush1.bf16.msra.mxu0 %v540
        %550 = vmatprep.subr.bf16.mxu0 0
        %551 = vmatpush1.bf16.msra.mxu0 %v541
        %552 = vmatprep.subr.bf16.mxu0 0
        %553 = vmatpush1.bf16.msra.mxu0 0
        %554 = vmatprep.subr.bf16.mxu0 0
        %555 = vmatpush1.bf16.msra.mxu0 0
        %556 = vmatprep.subr.bf16.mxu0 0
        %557 = vmatpush1.bf16.msra.mxu0 0
        %558 = vmatprep.subr.bf16.mxu0 0
        %559 = vmatpush1.bf16.msra.mxu0 0
        %560 = vmatprep.subr.bf16.mxu0 0
        %561 = vmatpush1.bf16.msra.mxu0 0
        %562 = vmatprep.subr.bf16.mxu0 0
        %563 = vmatpush1.bf16.msra.mxu0 0
        %564 = vmatprep.subr.bf16.mxu0 0
        %565 = vmatpush1.bf16.msra.mxu0 0
        %566 = vmatprep.subr.bf16.mxu0 0
        %567 = vmatpush1.bf16.msra.mxu0 0
        %568 = vmatprep.subr.bf16.mxu0 0
        %569 = vmatpush1.bf16.msra.mxu0 0
        %570 = vmatprep.subr.bf16.mxu0 0
        %571 = vmatpush1.bf16.msra.mxu0 0
        %572 = vmatprep.subr.bf16.mxu0 0
        %573 = vmatpush1.bf16.msra.mxu0 0
        %574 = vmatprep.subr.bf16.mxu0 0
        %575 = vmatpush1.bf16.msra.mxu0 0
        %576 = vmatprep.subr.bf16.mxu0 0
        %577 = vmatpush1.bf16.msra.mxu0 0
        %578 = vmatprep.subr.bf16.mxu0 0
        %579 = vmatpush1.bf16.msra.mxu0 0
        %580 = vmatprep.mubr.bf16.mxu0 0
        %581 = vmatmul.mubr.bf16.gmra.mrb[0].mxu0 %v546
        %v582 = vpop.f32.mrb[0].mxu0
        %v583 = vadd.f32 %v530, %v582
        %v584 = vpop.f32.mrb[0].mxu0
        %v585 = vpop.f32.mrb[0].mxu0
        %v586 = vpop.f32.mrb[0].mxu0
        %587 = vdwg.mxu0
        %v588 = vpack.c.bf16 %v583, %v583
        %vm589 = vcmask 257024
        %590 = vst.msk [vmem:[#allocation2] sm:$0xf] %vm589, %v588
        %v591 = vld [vmem:[#allocation2] sm:$0xf]
        %v592 = vld [vmem:[#allocation3] sm:$0xf]
        %vm593 = vcmask 64512
        %v595 = vsel %vm593, %v591, 0
        %v598 = vsel %vm593, %v592, 0
        %600 = vmatprep.subr.bf16.mxu0 0
        %601 = vmatpush1.bf16.xpose.msra.mxu0 %v598
        %602 = vmatprep.subr.bf16.mxu0 0
        %603 = vmatpush1.bf16.xpose.msra.mxu0 0
        %604 = vmatprep.subr.bf16.mxu0 0
        %605 = vmatpush1.bf16.xpose.msra.mxu0 0
        %606 = vmatprep.subr.bf16.mxu0 0
        %607 = vmatpush1.bf16.xpose.msra.mxu0 0
        %608 = vmatprep.subr.bf16.mxu0 0
        %609 = vmatpush1.bf16.xpose.msra.mxu0 0
        %610 = vmatprep.subr.bf16.mxu0 0
        %611 = vmatpush1.bf16.xpose.msra.mxu0 0
        %612 = vmatprep.subr.bf16.mxu0 0
        %613 = vmatpush1.bf16.xpose.msra.mxu0 0
        %614 = vmatprep.subr.bf16.mxu0 0
        %615 = vmatpush1.bf16.xpose.msra.mxu0 0
        %616 = vmatprep.subr.bf16.mxu0 0
        %617 = vmatpush1.bf16.xpose.msra.mxu0 0
        %618 = vmatprep.subr.bf16.mxu0 0
        %619 = vmatpush1.bf16.xpose.msra.mxu0 0
        %620 = vmatprep.subr.bf16.mxu0 0
        %621 = vmatpush1.bf16.xpose.msra.mxu0 0
        %622 = vmatprep.subr.bf16.mxu0 0
        %623 = vmatpush1.bf16.xpose.msra.mxu0 0
        %624 = vmatprep.subr.bf16.mxu0 0
        %625 = vmatpush1.bf16.xpose.msra.mxu0 0
        %626 = vmatprep.subr.bf16.mxu0 0
        %627 = vmatpush1.bf16.xpose.msra.mxu0 0
        %628 = vmatprep.subr.bf16.mxu0 0
        %629 = vmatpush1.bf16.xpose.msra.mxu0 0
        %630 = vmatprep.subr.bf16.mxu0 0
        %631 = vmatpush1.bf16.xpose.msra.mxu0 0
        %632 = vmatprep.mubr.bf16.mxu0 0
        %633 = vmatmul.mubr.bf16.gmra.mrb[0].mxu0 %v595
        %v634 = vpop.f32.mrb[0].mxu0
        %v635 = vadd.f32 0.0, %v634
        %v636 = vpop.f32.mrb[0].mxu0
        %v637 = vpop.f32.mrb[0].mxu0
        %v638 = vpop.f32.mrb[0].mxu0
        %639 = vdwg.mxu0
        %v640 = vsel %vm593, %v635, -inf
        %641 = vmax.xlane.f32.xlu0 %v640
        %v642 = vpop.xlane.xlu0 %641
        %v643 = vsub.f32 %v635, %v642
        %v644 = vmul.f32 %v643, 1.442695
        %v645 = vpow.pop %v644
        %v646 = vsel %vm593, %v645, 0.0
        %647 = vadd.xlane.f32.xlu0 %v646
        %v648 = vpop.xlane.xlu0 %647
        %v649 = vrcp.pop %v648
        %v650 = vmul.f32 1.0, %v649
        %v651 = vmul.f32 %v645, %v650
        %652 = vst.msk [vmem:[%s443] sm:$0xff] %vm593, %v651
        %v653 = vpack.c.bf16 %v651, %v651
        %v655 = vunpack.c.l.b16 %v592
        %v656 = vpack.c.b16 %v655, %v655
        %657 = vrot.lane.b32.xlu0 %v656, 96
        %v658 = vpop.permute.xlu0 %657
        %v660 = vsel %vm593, %v653, 0
        %vm662 = vcmask 1043456
        %v664 = vsel %vm662, %v658, 0
        %666 = vmatprep.subr.bf16.mxu0 0
        %667 = vmatpush1.bf16.msra.mxu0 %v664
        %668 = vmatprep.subr.bf16.mxu0 0
        %669 = vmatpush1.bf16.msra.mxu0 0
        %670 = vmatprep.subr.bf16.mxu0 0
        %671 = vmatpush1.bf16.msra.mxu0 0
        %672 = vmatprep.subr.bf16.mxu0 0
        %673 = vmatpush1.bf16.msra.mxu0 0
        %674 = vmatprep.subr.bf16.mxu0 0
        %675 = vmatpush1.bf16.msra.mxu0 0
        %676 = vmatprep.subr.bf16.mxu0 0
        %677 = vmatpush1.bf16.msra.mxu0 0
        %678 = vmatprep.subr.bf16.mxu0 0
        %679 = vmatpush1.bf16.msra.mxu0 0
        %680 = vmatprep.subr.bf16.mxu0 0
        %681 = vmatpush1.bf16.msra.mxu0 0
        %682 = vmatprep.subr.bf16.mxu0 0
        %683 = vmatpush1.bf16.msra.mxu0 0
        %684 = vmatprep.subr.bf16.mxu0 0
        %685 = vmatpush1.bf16.msra.mxu0 0
        %686 = vmatprep.subr.bf16.mxu0 0
        %687 = vmatpush1.bf16.msra.mxu0 0
        %688 = vmatprep.subr.bf16.mxu0 0
        %689 = vmatpush1.bf16.msra.mxu0 0
        %690 = vmatprep.subr.bf16.mxu0 0
        %691 = vmatpush1.bf16.msra.mxu0 0
        %692 = vmatprep.subr.bf16.mxu0 0
        %693 = vmatpush1.bf16.msra.mxu0 0
        %694 = vmatprep.subr.bf16.mxu0 0
        %695 = vmatpush1.bf16.msra.mxu0 0
        %696 = vmatprep.subr.bf16.mxu0 0
        %697 = vmatpush1.bf16.msra.mxu0 0
        %698 = vmatprep.mubr.bf16.mxu0 0
        %699 = vmatmul.mubr.bf16.gmra.mrb[0].mxu0 %v660
        %v700 = vpop.f32.mrb[0].mxu0
        %v701 = vadd.f32 0.0, %v700
        %v702 = vpop.f32.mrb[0].mxu0
        %v703 = vpop.f32.mrb[0].mxu0
        %v704 = vpop.f32.mrb[0].mxu0
        %705 = vdwg.mxu0
        %v706 = vld [vmem:[#allocation2] sm:$0xf]
        %v707 = vld [vmem:[#allocation3] sm:$0xf]
        %v709 = vunpack.c.l.b16 %v706
        %v710 = vpack.c.b16 %v709, %v709
        %711 = vrot.lane.b32.xlu0 %v710, 120
        %v712 = vpop.permute.xlu0 %711
        %v714 = vunpack.c.l.b16 %v707
        %v715 = vpack.c.b16 %v714, %v714
        %716 = vrot.lane.b32.xlu0 %v715, 120
        %v717 = vpop.permute.xlu0 %716
        %v719 = vsel %vm593, %v712, 0
        %v722 = vsel %vm593, %v717, 0
        %724 = vmatprep.subr.bf16.mxu0 0
        %725 = vmatpush1.bf16.xpose.msra.mxu0 %v722
        %726 = vmatprep.subr.bf16.mxu0 0
        %727 = vmatpush1.bf16.xpose.msra.mxu0 0
        %728 = vmatprep.subr.bf16.mxu0 0
        %729 = vmatpush1.bf16.xpose.msra.mxu0 0
        %730 = vmatprep.subr.bf16.mxu0 0
        %731 = vmatpush1.bf16.xpose.msra.mxu0 0
        %732 = vmatprep.subr.bf16.mxu0 0
        %733 = vmatpush1.bf16.xpose.msra.mxu0 0
        %734 = vmatprep.subr.bf16.mxu0 0
        %735 = vmatpush1.bf16.xpose.msra.mxu0 0
        %736 = vmatprep.subr.bf16.mxu0 0
        %737 = vmatpush1.bf16.xpose.msra.mxu0 0
        %738 = vmatprep.subr.bf16.mxu0 0
        %739 = vmatpush1.bf16.xpose.msra.mxu0 0
        %740 = vmatprep.subr.bf16.mxu0 0
        %741 = vmatpush1.bf16.xpose.msra.mxu0 0
        %742 = vmatprep.subr.bf16.mxu0 0
        %743 = vmatpush1.bf16.xpose.msra.mxu0 0
        %744 = vmatprep.subr.bf16.mxu0 0
        %745 = vmatpush1.bf16.xpose.msra.mxu0 0
        %746 = vmatprep.subr.bf16.mxu0 0
        %747 = vmatpush1.bf16.xpose.msra.mxu0 0
        %748 = vmatprep.subr.bf16.mxu0 0
        %749 = vmatpush1.bf16.xpose.msra.mxu0 0
        %750 = vmatprep.subr.bf16.mxu0 0
        %751 = vmatpush1.bf16.xpose.msra.mxu0 0
        %752 = vmatprep.subr.bf16.mxu0 0
        %753 = vmatpush1.bf16.xpose.msra.mxu0 0
        %754 = vmatprep.subr.bf16.mxu0 0
        %755 = vmatpush1.bf16.xpose.msra.mxu0 0
        %756 = vmatprep.mubr.bf16.mxu0 0
        %757 = vmatmul.mubr.bf16.gmra.mrb[0].mxu0 %v719
        %v758 = vpop.f32.mrb[0].mxu0
        %v759 = vadd.f32 0.0, %v758
        %v760 = vpop.f32.mrb[0].mxu0
        %v761 = vpop.f32.mrb[0].mxu0
        %v762 = vpop.f32.mrb[0].mxu0
        %763 = vdwg.mxu0
        %v764 = vsel %vm593, %v759, -inf
        %765 = vmax.xlane.f32.xlu0 %v764
        %v766 = vpop.xlane.xlu0 %765
        %v767 = vsub.f32 %v759, %v766
        %v768 = vmul.f32 %v767, 1.442695
        %v769 = vpow.pop %v768
        %v770 = vsel %vm593, %v769, 0.0
        %771 = vadd.xlane.f32.xlu0 %v770
        %v772 = vpop.xlane.xlu0 %771
        %v773 = vrcp.pop %v772
        %v774 = vmul.f32 1.0, %v773
        %v775 = vmul.f32 %v769, %v774
        %s776 = scalar_lea.vmem %s443, 8 [#allocation14]
        %777 = vst.msk [vmem:[%s776] sm:$0xff] %vm593, %v775
        %v778 = vpack.c.bf16 %v775, %v775
        %779 = vrot.lane.b32.xlu0 %v715, 88
        %v780 = vpop.permute.xlu0 %779
        %v782 = vsel %vm593, %v778, 0
        %v785 = vsel %vm662, %v780, 0
        %787 = vmatprep.subr.bf16.mxu0 0
        %788 = vmatpush1.bf16.msra.mxu0 %v785
        %789 = vmatprep.subr.bf16.mxu0 0
        %790 = vmatpush1.bf16.msra.mxu0 0
        %791 = vmatprep.subr.bf16.mxu0 0
        %792 = vmatpush1.bf16.msra.mxu0 0
        %793 = vmatprep.subr.bf16.mxu0 0
        %794 = vmatpush1.bf16.msra.mxu0 0
        %795 = vmatprep.subr.bf16.mxu0 0
        %796 = vmatpush1.bf16.msra.mxu0 0
        %797 = vmatprep.subr.bf16.mxu0 0
        %798 = vmatpush1.bf16.msra.mxu0 0
        %799 = vmatprep.subr.bf16.mxu0 0
        %800 = vmatpush1.bf16.msra.mxu0 0
        %801 = vmatprep.subr.bf16.mxu0 0
        %802 = vmatpush1.bf16.msra.mxu0 0
        %803 = vmatprep.subr.bf16.mxu0 0
        %804 = vmatpush1.bf16.msra.mxu0 0
        %805 = vmatprep.subr.bf16.mxu0 0
        %806 = vmatpush1.bf16.msra.mxu0 0
        %807 = vmatprep.subr.bf16.mxu0 0
        %808 = vmatpush1.bf16.msra.mxu0 0
        %809 = vmatprep.subr.bf16.mxu0 0
        %810 = vmatpush1.bf16.msra.mxu0 0
        %811 = vmatprep.subr.bf16.mxu0 0
        %812 = vmatpush1.bf16.msra.mxu0 0
        %813 = vmatprep.subr.bf16.mxu0 0
        %814 = vmatpush1.bf16.msra.mxu0 0
        %815 = vmatprep.subr.bf16.mxu0 0
        %816 = vmatpush1.bf16.msra.mxu0 0
        %817 = vmatprep.subr.bf16.mxu0 0
        %818 = vmatpush1.bf16.msra.mxu0 0
        %819 = vmatprep.mubr.bf16.mxu0 0
        %820 = vmatmul.mubr.bf16.gmra.mrb[0].mxu0 %v782
        %v821 = vpop.f32.mrb[0].mxu0
        %v822 = vadd.f32 0.0, %v821
        %v823 = vpop.f32.mrb[0].mxu0
        %v824 = vpop.f32.mrb[0].mxu0
        %v825 = vpop.f32.mrb[0].mxu0
        %826 = vdwg.mxu0
        %v827 = vld [vmem:[#allocation2] sm:$0xf]
        %v828 = vld [vmem:[#allocation3] sm:$0xf]
        %v830 = vunpack.c.l.b16 %v827
        %v831 = vpack.c.b16 %v830, %v830
        %832 = vrot.lane.b32.xlu0 %v831, 112
        %v833 = vpop.permute.xlu0 %832
        %v835 = vunpack.c.l.b16 %v828
        %v836 = vpack.c.b16 %v835, %v835
        %837 = vrot.lane.b32.xlu0 %v836, 112
        %v838 = vpop.permute.xlu0 %837
        %v840 = vsel %vm593, %v833, 0
        %v843 = vsel %vm593, %v838, 0
        %845 = vmatprep.subr.bf16.mxu0 0
        %846 = vmatpush1.bf16.xpose.msra.mxu0 %v843
        %847 = vmatprep.subr.bf16.mxu0 0
        %848 = vmatpush1.bf16.xpose.msra.mxu0 0
        %849 = vmatprep.subr.bf16.mxu0 0
        %850 = vmatpush1.bf16.xpose.msra.mxu0 0
        %851 = vmatprep.subr.bf16.mxu0 0
        %852 = vmatpush1.bf16.xpose.msra.mxu0 0
        %853 = vmatprep.subr.bf16.mxu0 0
        %854 = vmatpush1.bf16.xpose.msra.mxu0 0
        %855 = vmatprep.subr.bf16.mxu0 0
        %856 = vmatpush1.bf16.xpose.msra.mxu0 0
        %857 = vmatprep.subr.bf16.mxu0 0
        %858 = vmatpush1.bf16.xpose.msra.mxu0 0
        %859 = vmatprep.subr.bf16.mxu0 0
        %860 = vmatpush1.bf16.xpose.msra.mxu0 0
        %861 = vmatprep.subr.bf16.mxu0 0
        %862 = vmatpush1.bf16.xpose.msra.mxu0 0
        %863 = vmatprep.subr.bf16.mxu0 0
        %864 = vmatpush1.bf16.xpose.msra.mxu0 0
        %865 = vmatprep.subr.bf16.mxu0 0
        %866 = vmatpush1.bf16.xpose.msra.mxu0 0
        %867 = vmatprep.subr.bf16.mxu0 0
        %868 = vmatpush1.bf16.xpose.msra.mxu0 0
        %869 = vmatprep.subr.bf16.mxu0 0
        %870 = vmatpush1.bf16.xpose.msra.mxu0 0
        %871 = vmatprep.subr.bf16.mxu0 0
        %872 = vmatpush1.bf16.xpose.msra.mxu0 0
        %873 = vmatprep.subr.bf16.mxu0 0
        %874 = vmatpush1.bf16.xpose.msra.mxu0 0
        %875 = vmatprep.subr.bf16.mxu0 0
        %876 = vmatpush1.bf16.xpose.msra.mxu0 0
        %877 = vmatprep.mubr.bf16.mxu0 0
        %878 = vmatmul.mubr.bf16.gmra.mrb[0].mxu0 %v840
        %v879 = vpop.f32.mrb[0].mxu0
        %v880 = vadd.f32 0.0, %v879
        %v881 = vpop.f32.mrb[0].mxu0
        %v882 = vpop.f32.mrb[0].mxu0
        %v883 = vpop.f32.mrb[0].mxu0
        %884 = vdwg.mxu0
        %v885 = vsel %vm593, %v880, -inf
        %886 = vmax.xlane.f32.xlu0 %v885
        %v887 = vpop.xlane.xlu0 %886
        %v888 = vsub.f32 %v880, %v887
        %v889 = vmul.f32 %v888, 1.442695
        %v890 = vpow.pop %v889
        %v891 = vsel %vm593, %v890, 0.0
        %892 = vadd.xlane.f32.xlu0 %v891
        %v893 = vpop.xlane.xlu0 %892
        %v894 = vrcp.pop %v893
        %v895 = vmul.f32 1.0, %v894
        %v896 = vmul.f32 %v890, %v895
        %s897 = scalar_lea.vmem %s443, 16 [#allocation14]
        %898 = vst.msk [vmem:[%s897] sm:$0xff] %vm593, %v896
        %v899 = vpack.c.bf16 %v896, %v896
        %900 = vrot.lane.b32.xlu0 %v836, 80
        %v901 = vpop.permute.xlu0 %900
        %v903 = vsel %vm593, %v899, 0
        %v906 = vsel %vm662, %v901, 0
        %908 = vmatprep.subr.bf16.mxu0 0
        %909 = vmatpush1.bf16.msra.mxu0 %v906
        %910 = vmatprep.subr.bf16.mxu0 0
        %911 = vmatpush1.bf16.msra.mxu0 0
        %912 = vmatprep.subr.bf16.mxu0 0
        %913 = vmatpush1.bf16.msra.mxu0 0
        %914 = vmatprep.subr.bf16.mxu0 0
        %915 = vmatpush1.bf16.msra.mxu0 0
        %916 = vmatprep.subr.bf16.mxu0 0
        %917 = vmatpush1.bf16.msra.mxu0 0
        %918 = vmatprep.subr.bf16.mxu0 0
        %919 = vmatpush1.bf16.msra.mxu0 0
        %920 = vmatprep.subr.bf16.mxu0 0
        %921 = vmatpush1.bf16.msra.mxu0 0
        %922 = vmatprep.subr.bf16.mxu0 0
        %923 = vmatpush1.bf16.msra.mxu0 0
        %924 = vmatprep.subr.bf16.mxu0 0
        %925 = vmatpush1.bf16.msra.mxu0 0
        %926 = vmatprep.subr.bf16.mxu0 0
        %927 = vmatpush1.bf16.msra.mxu0 0
        %928 = vmatprep.subr.bf16.mxu0 0
        %929 = vmatpush1.bf16.msra.mxu0 0
        %930 = vmatprep.subr.bf16.mxu0 0
        %931 = vmatpush1.bf16.msra.mxu0 0
        %932 = vmatprep.subr.bf16.mxu0 0
        %933 = vmatpush1.bf16.msra.mxu0 0
        %934 = vmatprep.subr.bf16.mxu0 0
        %935 = vmatpush1.bf16.msra.mxu0 0
        %936 = vmatprep.subr.bf16.mxu0 0
        %937 = vmatpush1.bf16.msra.mxu0 0
        %938 = vmatprep.subr.bf16.mxu0 0
        %939 = vmatpush1.bf16.msra.mxu0 0
        %940 = vmatprep.mubr.bf16.mxu0 0
        %941 = vmatmul.mubr.bf16.gmra.mrb[0].mxu0 %v903
        %v942 = vpop.f32.mrb[0].mxu0
        %v943 = vadd.f32 0.0, %v942
        %v944 = vpop.f32.mrb[0].mxu0
        %v945 = vpop.f32.mrb[0].mxu0
        %v946 = vpop.f32.mrb[0].mxu0
        %947 = vdwg.mxu0
        %v948 = vld [vmem:[#allocation2] sm:$0xf]
        %v949 = vld [vmem:[#allocation3] sm:$0xf]
        %v951 = vunpack.c.l.b16 %v948
        %v952 = vpack.c.b16 %v951, %v951
        %953 = vrot.lane.b32.xlu0 %v952, 104
        %v954 = vpop.permute.xlu0 %953
        %v956 = vunpack.c.l.b16 %v949
        %v957 = vpack.c.b16 %v956, %v956
        %958 = vrot.lane.b32.xlu0 %v957, 104
        %v959 = vpop.permute.xlu0 %958
        %v961 = vsel %vm593, %v954, 0
        %v964 = vsel %vm593, %v959, 0
        %966 = vmatprep.subr.bf16.mxu0 0
        %967 = vmatpush1.bf16.xpose.msra.mxu0 %v964
        %968 = vmatprep.subr.bf16.mxu0 0
        %969 = vmatpush1.bf16.xpose.msra.mxu0 0
        %970 = vmatprep.subr.bf16.mxu0 0
        %971 = vmatpush1.bf16.xpose.msra.mxu0 0
        %972 = vmatprep.subr.bf16.mxu0 0
        %973 = vmatpush1.bf16.xpose.msra.mxu0 0
        %974 = vmatprep.subr.bf16.mxu0 0
        %975 = vmatpush1.bf16.xpose.msra.mxu0 0
        %976 = vmatprep.subr.bf16.mxu0 0
        %977 = vmatpush1.bf16.xpose.msra.mxu0 0
        %978 = vmatprep.subr.bf16.mxu0 0
        %979 = vmatpush1.bf16.xpose.msra.mxu0 0
        %980 = vmatprep.subr.bf16.mxu0 0
        %981 = vmatpush1.bf16.xpose.msra.mxu0 0
        %982 = vmatprep.subr.bf16.mxu0 0
        %983 = vmatpush1.bf16.xpose.msra.mxu0 0
        %984 = vmatprep.subr.bf16.mxu0 0
        %985 = vmatpush1.bf16.xpose.msra.mxu0 0
        %986 = vmatprep.subr.bf16.mxu0 0
        %987 = vmatpush1.bf16.xpose.msra.mxu0 0
        %988 = vmatprep.subr.bf16.mxu0 0
        %989 = vmatpush1.bf16.xpose.msra.mxu0 0
        %990 = vmatprep.subr.bf16.mxu0 0
        %991 = vmatpush1.bf16.xpose.msra.mxu0 0
        %992 = vmatprep.subr.bf16.mxu0 0
        %993 = vmatpush1.bf16.xpose.msra.mxu0 0
        %994 = vmatprep.subr.bf16.mxu0 0
        %995 = vmatpush1.bf16.xpose.msra.mxu0 0
        %996 = vmatprep.subr.bf16.mxu0 0
        %997 = vmatpush1.bf16.xpose.msra.mxu0 0
        %998 = vmatprep.mubr.bf16.mxu0 0
        %999 = vmatmul.mubr.bf16.gmra.mrb[0].mxu0 %v961
        %v1000 = vpop.f32.mrb[0].mxu0
        %v1001 = vadd.f32 0.0, %v1000
        %v1002 = vpop.f32.mrb[0].mxu0
        %v1003 = vpop.f32.mrb[0].mxu0
        %v1004 = vpop.f32.mrb[0].mxu0
        %1005 = vdwg.mxu0
        %v1006 = vsel %vm593, %v1001, -inf
        %1007 = vmax.xlane.f32.xlu0 %v1006
        %v1008 = vpop.xlane.xlu0 %1007
        %v1009 = vsub.f32 %v1001, %v1008
        %v1010 = vmul.f32 %v1009, 1.442695
        %v1011 = vpow.pop %v1010
        %v1012 = vsel %vm593, %v1011, 0.0
        %1013 = vadd.xlane.f32.xlu0 %v1012
        %v1014 = vpop.xlane.xlu0 %1013
        %v1015 = vrcp.pop %v1014
        %v1016 = vmul.f32 1.0, %v1015
        %v1017 = vmul.f32 %v1011, %v1016
        %s1018 = scalar_lea.vmem %s443, 24 [#allocation14]
        %1019 = vst.msk [vmem:[%s1018] sm:$0xff] %vm593, %v1017
        %v1020 = vpack.c.bf16 %v1017, %v1017
        %1021 = vrot.lane.b32.xlu0 %v957, 72
        %v1022 = vpop.permute.xlu0 %1021
        %v1024 = vsel %vm593, %v1020, 0
        %v1027 = vsel %vm662, %v1022, 0
        %1029 = vmatprep.subr.bf16.mxu0 0
        %1030 = vmatpush1.bf16.msra.mxu0 %v1027
        %1031 = vmatprep.subr.bf16.mxu0 0
        %1032 = vmatpush1.bf16.msra.mxu0 0
        %1033 = vmatprep.subr.bf16.mxu0 0
        %1034 = vmatpush1.bf16.msra.mxu0 0
        %1035 = vmatprep.subr.bf16.mxu0 0
        %1036 = vmatpush1.bf16.msra.mxu0 0
        %1037 = vmatprep.subr.bf16.mxu0 0
        %1038 = vmatpush1.bf16.msra.mxu0 0
        %1039 = vmatprep.subr.bf16.mxu0 0
        %1040 = vmatpush1.bf16.msra.mxu0 0
        %1041 = vmatprep.subr.bf16.mxu0 0
        %1042 = vmatpush1.bf16.msra.mxu0 0
        %1043 = vmatprep.subr.bf16.mxu0 0
        %1044 = vmatpush1.bf16.msra.mxu0 0
        %1045 = vmatprep.subr.bf16.mxu0 0
        %1046 = vmatpush1.bf16.msra.mxu0 0
        %1047 = vmatprep.subr.bf16.mxu0 0
        %1048 = vmatpush1.bf16.msra.mxu0 0
        %1049 = vmatprep.subr.bf16.mxu0 0
        %1050 = vmatpush1.bf16.msra.mxu0 0
        %1051 = vmatprep.subr.bf16.mxu0 0
        %1052 = vmatpush1.bf16.msra.mxu0 0
        %1053 = vmatprep.subr.bf16.mxu0 0
        %1054 = vmatpush1.bf16.msra.mxu0 0
        %1055 = vmatprep.subr.bf16.mxu0 0
        %1056 = vmatpush1.bf16.msra.mxu0 0
        %1057 = vmatprep.subr.bf16.mxu0 0
        %1058 = vmatpush1.bf16.msra.mxu0 0
        %1059 = vmatprep.subr.bf16.mxu0 0
        %1060 = vmatpush1.bf16.msra.mxu0 0
        %1061 = vmatprep.mubr.bf16.mxu0 0
        %1062 = vmatmul.mubr.bf16.gmra.mrb[0].mxu0 %v1024
        %v1063 = vpop.f32.mrb[0].mxu0
        %v1064 = vadd.f32 0.0, %v1063
        %v1065 = vpop.f32.mrb[0].mxu0
        %v1066 = vpop.f32.mrb[0].mxu0
        %v1067 = vpop.f32.mrb[0].mxu0
        %1068 = vdwg.mxu0
        %1070 = vrot.lane.b32.xlu0 %v822, 8
        %v1071 = vpop.permute.xlu0 %1070
        %1074 = vrot.lane.b32.xlu0 %v943, 16
        %v1075 = vpop.permute.xlu0 %1074
        %1078 = vrot.lane.b32.xlu0 %v1064, 24
        %v1079 = vpop.permute.xlu0 %1078
        %v1081 = vsel %vm593, %v701, %v1071
        %vm1082 = vcmask 130048
        %v1083 = vsel %vm1082, %v1081, %v1075
        %vm1084 = vcmask 195584
        %v1085 = vsel %vm1084, %v1083, %v1079
        %v1086 = vpack.c.bf16 %v1085, %v1085
        %1087 = vst.msk [vmem:[#allocation4] sm:$0xf] %vm589, %v1086
        %v1088 = vld [vmem:[#allocation4] sm:$0xf]
        %v1089 = vld [vmem:[%s6] sm:$0xf]
        %v1090 = vld [vmem:[%s6 + $0x4] sm:$0xf]
        %v1091 = vld [vmem:[%s6 + $0x8] sm:$0xf]
        %v1092 = vld [vmem:[%s6 + $0xc] sm:$0xf]
        %v1093 = vld [vmem:[%s7] sm:$0x1]
        %v1095 = vlaneseq
        %v1096 = vshrl.u32 %v1095, 7
        %v1097 = vsub.s32 0, %v1096
        %v1098 = vrot.slane %v1093, %v1097
        %v1104 = vunpack.c.l.b16 %v1089
        %v1105 = vunpack.c.l.b16 %v1090
        %v1106 = vunpack.c.l.b16 %v1091
        %v1107 = vunpack.c.l.b16 %v1092
        %v1108 = vpack.c.b16 %v1105, %v1104
        %v1109 = vpack.c.b16 %v1107, %v1106
        %v1113 = vsel %vm544, %v1088, 0
        %1115 = vmatprep.subr.bf16.mxu0 0
        %1116 = vmatpush1.bf16.msra.mxu0 %v1108
        %1117 = vmatprep.subr.bf16.mxu0 0
        %1118 = vmatpush1.bf16.msra.mxu0 %v1109
        %1119 = vmatprep.subr.bf16.mxu0 0
        %1120 = vmatpush1.bf16.msra.mxu0 0
        %1121 = vmatprep.subr.bf16.mxu0 0
        %1122 = vmatpush1.bf16.msra.mxu0 0
        %1123 = vmatprep.subr.bf16.mxu0 0
        %1124 = vmatpush1.bf16.msra.mxu0 0
        %1125 = vmatprep.subr.bf16.mxu0 0
        %1126 = vmatpush1.bf16.msra.mxu0 0
        %1127 = vmatprep.subr.bf16.mxu0 0
        %1128 = vmatpush1.bf16.msra.mxu0 0
        %1129 = vmatprep.subr.bf16.mxu0 0
        %1130 = vmatpush1.bf16.msra.mxu0 0
        %1131 = vmatprep.subr.bf16.mxu0 0
        %1132 = vmatpush1.bf16.msra.mxu0 0
        %1133 = vmatprep.subr.bf16.mxu0 0
        %1134 = vmatpush1.bf16.msra.mxu0 0
        %1135 = vmatprep.subr.bf16.mxu0 0
        %1136 = vmatpush1.bf16.msra.mxu0 0
        %1137 = vmatprep.subr.bf16.mxu0 0
        %1138 = vmatpush1.bf16.msra.mxu0 0
        %1139 = vmatprep.subr.bf16.mxu0 0
        %1140 = vmatpush1.bf16.msra.mxu0 0
        %1141 = vmatprep.subr.bf16.mxu0 0
        %1142 = vmatpush1.bf16.msra.mxu0 0
        %1143 = vmatprep.subr.bf16.mxu0 0
        %1144 = vmatpush1.bf16.msra.mxu0 0
        %1145 = vmatprep.subr.bf16.mxu0 0
        %1146 = vmatpush1.bf16.msra.mxu0 0
        %1147 = vmatprep.mubr.bf16.mxu0 0
        %1148 = vmatmul.mubr.bf16.gmra.mrb[0].mxu0 %v1113
        %v1149 = vpop.f32.mrb[0].mxu0
        %v1150 = vadd.f32 %v1098, %v1149
        %v1151 = vpop.f32.mrb[0].mxu0
        %v1152 = vpop.f32.mrb[0].mxu0
        %v1153 = vpop.f32.mrb[0].mxu0
        %1154 = vdwg.mxu0
        %1155 = vst.msk [vmem:[%s436] sm:$0xff] %vm544, %v1150
        %s1156 = sand.u32 %s236, 1
        %s1157 = scalar_lea.sflag [#allocation7], %s1156
        %s1158 = sand.u32 %s236, 1
        %s1159 = smul.addr %s1158, 8
        %s1160 = scalar_lea.vmem [#allocation13], %s1159
        %s1161 = sand.u32 %s264, 1
        %s1162 = scalar_lea.sflag [#allocation15], %s1161
        %s1163 = sand.u32 %s264, 1
        %s1164 = smul.addr %s1163, 32
        %s1165 = scalar_lea.vmem [#allocation14], %s1164
        // Predicated region
        $region73: #{tpu_custom_call.1} parent=51 // pred_check
          %p1166 = pneg %p246
        $region74: #{tpu_custom_call.1} parent=51 // pred_check_branch
          %1168 = sbr.rel (%p1166) target = $region76
        $region75: #{tpu_custom_call.1} parent=51 // pred_region
          %s1170 = ssub.s32 128, 128
          %1171 = vsyncadd %s1157, %s1170
          %s1172 = sadd.s32 %s39, %s38
          %s1173 = smul.addr %s1172, 128
          %s1174 = scalar_lea.hbm %s8, %s1173
          %s1176 = sshll.u32 %s1160, 4
          %s1177 = int_to_ptr.vmem [resolvable:$true] %s1176
          %1179 = dma.vmem_to_hbm [thread:$0]  %s1177, 128, %s1174, %s1157
        $region76: #{tpu_custom_call.1} parent=51 // pred_fallthru
          _
        // Predicated region
        $region77: #{tpu_custom_call.1} parent=51 // pred_check
          %p1180 = pneg %p274
        $region78: #{tpu_custom_call.1} parent=51 // pred_check_branch
          %1182 = sbr.rel (%p1180) target = $region80
        $region79: #{tpu_custom_call.1} parent=51 // pred_region
          %s1184 = ssub.s32 512, 512
          %1185 = vsyncadd %s1162, %s1184
          %s1186 = smul.addr %s38, 4
          %s1187 = sadd.s32 %s39, %s1186
          %s1188 = smul.addr %s1187, 128
          %s1189 = scalar_lea.hbm %s9, %s1188
          %s1190 = sshll.u32 %s1165, 4
          %s1191 = int_to_ptr.vmem [resolvable:$true] %s1190
          %1196 = dma.vmem_to_hbm [thread:$0]  %s1191, 512, %s1189, %s1162, 128, 128, 8
        $region80: #{tpu_custom_call.1} parent=51 // pred_fallthru
          _
      $region52: #{tpu_custom_call.1} parent=5 // pred_fallthru
        _
      %p1197 = scmp.le.s32.totalorder 2, %s29
      // Predicated region
      $region81: #{tpu_custom_call.1} parent=5 // pred_check
        %p1198 = pneg %p1197
      $region82: #{tpu_custom_call.1} parent=5 // pred_check_branch
        %1200 = sbr.rel (%p1198) target = $region84
      $region83: #{tpu_custom_call.1} parent=5 // pred_region
        %s1201 = ssub.s32 %s29, 2
        // Predicated region
        $region85: #{tpu_custom_call.1} parent=83 // pred_check
          %p1202 = pneg %p252
        $region86: #{tpu_custom_call.1} parent=83 // pred_check_branch
          %1204 = sbr.rel (%p1202) target = $region88
        $region87: #{tpu_custom_call.1} parent=83 // pred_region
          %s1205 = sand.u32 %s237, 1
          %s1206 = scalar_lea.sflag [#allocation7], %s1205
          %s1207 = sand.u32 %s237, 1
          %s1208 = smul.addr %s1207, 8
          %s1209 = scalar_lea.vmem [#allocation13], %s1208
          %1210 = dma.done %s1206, 128
        $region88: #{tpu_custom_call.1} parent=83 // pred_fallthru
          _
        // Predicated region
        $region89: #{tpu_custom_call.1} parent=83 // pred_check
          %p1211 = pneg %p280
        $region90: #{tpu_custom_call.1} parent=83 // pred_check_branch
          %1213 = sbr.rel (%p1211) target = $region92
        $region91: #{tpu_custom_call.1} parent=83 // pred_region
          %s1214 = sand.u32 %s265, 1
          %s1215 = scalar_lea.sflag [#allocation15], %s1214
          %s1216 = sand.u32 %s265, 1
          %s1217 = smul.addr %s1216, 32
          %s1218 = scalar_lea.vmem [#allocation14], %s1217
          %1219 = dma.done %s1215, 512
        $region92: #{tpu_custom_call.1} parent=83 // pred_fallthru
          _
      $region84: #{tpu_custom_call.1} parent=5 // pred_fallthru
        _
    $region6: #{tpu_custom_call.1} parent=1 // loop_footer
      %s33 = sadd.s32 1, %s29
    $region7: #{tpu_custom_call.1} parent=1 // loop_footer_branch
      %28 = sbr.rel target = $region3
    $region8: #{tpu_custom_call.1} parent=1 // loop_exit
      _
    %1220 = vsyncpa [#allocation6], 1
    %s1221 = scalar_lea.sflag [#allocation6], 1
    %1222 = vsyncpa %s1221, 1
    %1223 = vsyncpa [#allocation9], 1
    %s1224 = scalar_lea.sflag [#allocation9], 1
    %1225 = vsyncpa %s1224, 1
    %1226 = vsyncpa [#allocation12], 1
    %1227 = vsyncpa [#allocation7], 1
    %s1228 = scalar_lea.sflag [#allocation7], 1
    %1229 = vsyncpa %s1228, 1
    %1230 = vsyncpa [#allocation15], 1
    %s1231 = scalar_lea.sflag [#allocation15], 1
    %1232 = vsyncpa %s1231, 1

// kernel: tpu_custom_call.1
$region0: #{tpu_custom_call.1}
  #allocation0 [shape = 'u32[]', space=smem, size = 0x4, offset = 0x4, fixed_abs, tag = 'smem constant byte address 0x4 - core index']
  #allocation1 [shape = 'u32[144,128]{1,0:T(1,128)}', space=vmem, size = 0x12000, scoped, tag = 'internal scratch']
  #allocation2 [shape = 'bf16[8,32]{1,0:T(8,128)(2,1)}', space=vmem, size = 0x800, scoped, tag = 'scratch operand']
  #allocation3 [shape = 'bf16[8,64]{1,0:T(8,128)(2,1)}', space=vmem, size = 0x800, scoped, tag = 'scratch operand']
  #allocation4 [shape = 'bf16[8,32]{1,0:T(8,128)(2,1)}', space=vmem, size = 0x800, scoped, tag = 'scratch operand']
  %s0 = inlined_call_operand.hbm [shape: bf16[2,8,32], index: 0, kind: input, shape index: {}]
  %s1 = inlined_call_operand.hbm [shape: bf16[2,8,32], index: 1, kind: input, shape index: {}]
  %s2 = inlined_call_operand.hbm [shape: bf16[32,32], index: 2, kind: input, shape index: {}]
  %s3 = inlined_call_operand.vmem [shape: f32[1,32], index: 3, kind: input, shape index: {}]
  %s4 = inlined_call_operand.hbm [shape: bf16[32,64], index: 4, kind: input, shape index: {}]
  %s5 = inlined_call_operand.vmem [shape: f32[1,64], index: 5, kind: input, shape index: {}]
  %s6 = inlined_call_operand.vmem [shape: bf16[32,32], index: 6, kind: input, shape index: {}]
  %s7 = inlined_call_operand.vmem [shape: f32[1,32], index: 7, kind: input, shape index: {}]
  %s8 = inlined_call_operand.hbm [shape: f32[2,8,32], index: 8, kind: output, shape index: {0}]
  %s9 = inlined_call_operand.hbm [shape: f32[2,4,8,8], index: 9, kind: output, shape index: {1}]
  %10 = xla_tuple %s8, %s9
  %s11 = sld [smem:[#allocation0]]
  $region93: #{tpu_custom_call.1} parent=0
    _
  %s13 = ssub.s32 1, %s11
  %s14 = scalar_select 0, %s13, %s11
  $region1: #{tpu_custom_call.1} parent=0
    #allocation5 [shape = 'u8[4096]{0}', space=vmem, size = 0x1000, scoped, tag = 'input window, operand 0']
    #allocation6 [shape = 's32[2]{0}', space=sflag, size = 0x8, scoped, tag = 'scoped memory for tpu_custom_call.1']
    #allocation7 [shape = 's32[2]{0}', space=sflag, size = 0x8, scoped, tag = 'scoped memory for tpu_custom_call.1']
    #allocation8 [shape = 'u8[4096]{0}', space=vmem, size = 0x1000, scoped, tag = 'input window, operand 1']
    #allocation9 [shape = 's32[2]{0}', space=sflag, size = 0x8, scoped, tag = 'scoped memory for tpu_custom_call.1']
    #allocation10 [shape = 'u8[8192]{0}', space=vmem, size = 0x2000, scoped, tag = 'input window, operand 2, single buffered']
    #allocation11 [shape = 'u8[8192]{0}', space=vmem, size = 0x2000, scoped, tag = 'input window, operand 4, single buffered']
    #allocation12 [shape = 's32[1]{0}', space=sflag, size = 0x4, scoped, tag = 'scoped memory for tpu_custom_call.1']
    #allocation13 [shape = 'u8[8192]{0}', space=vmem, size = 0x2000, scoped, tag = 'output window, operand 0']
    #allocation14 [shape = 'u8[32768]{0}', space=vmem, size = 0x8000, scoped, tag = 'output window, operand 1']
    #allocation15 [shape = 's32[2]{0}', space=sflag, size = 0x8, scoped, tag = 'scoped memory for tpu_custom_call.1']
    %15 = vsyncpa [#allocation6], 0
    %s16 = scalar_lea.sflag [#allocation6], 1
    %17 = vsyncpa %s16, 0
    %18 = vsyncpa [#allocation9], 0
    %s19 = scalar_lea.sflag [#allocation9], 1
    %20 = vsyncpa %s19, 0
    %21 = vsyncpa [#allocation12], 0
    %22 = vsyncpa [#allocation7], 0
    %s23 = scalar_lea.sflag [#allocation7], 1
    %24 = vsyncpa %s23, 0
    %25 = vsyncpa [#allocation15], 0
    %s26 = scalar_lea.sflag [#allocation15], 1
    %27 = vsyncpa %s26, 0
    loop: start=0, step=1, limit=4
    $region2: #{tpu_custom_call.1} parent=1 // loop_pre_header
      _
    $region3: #{tpu_custom_call.1} parent=1 // loop_header
      %s29 = sphi 0, %s33
      %p30 = scmp.ge.s32.totalorder %s29, 4
      %s36 = sphi 0, %s48
      %s37 = sphi 0, %s44
      %s38 = sphi 0, %s36
      %s39 = sphi 0, %s37
      %s40 = sphi 0, %s38
      %s41 = sphi 0, %s39
      %s53 = sphi 0, %s55
      %s56 = sphi 0, %s53
      %s57 = sphi 0, %s56
      %s73 = sphi 0, %s57
      %s79 = sphi 0, %s81
      %s82 = sphi 0, %s79
      %s83 = sphi 0, %s82
      %s99 = sphi 0, %s83
      %s103 = sphi 0, %s103
      %s105 = sphi 0, %s103
      %s106 = sphi 0, %s105
      %s120 = sphi 0, %s106
      %s124 = sphi 0, %s124
      %s126 = sphi 0, %s124
      %s127 = sphi 0, %s126
      %s141 = sphi 0, %s127
      %s145 = sphi 0, %s145
      %s147 = sphi 0, %s145
      %s148 = sphi 0, %s147
      %s162 = sphi 0, %s148
      %s166 = sphi 0, %s166
      %s168 = sphi 0, %s166
      %s169 = sphi 0, %s168
      %s183 = sphi 0, %s169
      %s187 = sphi 0, %s187
      %s189 = sphi 0, %s187
      %s190 = sphi 0, %s189
      %s204 = sphi 0, %s190
      %s208 = sphi 0, %s208
      %s210 = sphi 0, %s208
      %s211 = sphi 0, %s210
      %s225 = sphi 0, %s211
      %s233 = sphi 0, %s235
      %s236 = sphi 0, %s233
      %s237 = sphi 0, %s236
      %s253 = sphi 0, %s237
      %s261 = sphi 0, %s263
      %s264 = sphi 0, %s261
      %s265 = sphi 0, %s264
      %s281 = sphi 0, %s265
    $region4: #{tpu_custom_call.1} parent=1 // loop_header_branch
      %32 = sbr.rel (%p30) target = $region8
    $region5: #{tpu_custom_call.1} parent=1 // loop_body
      %s34 = ssub.s32 %s29, 1
      %s35 = ssub.s32 %s29, 2
      %s42 = sadd.s32 1, %s37
      %p43 = scmp.ge.s32.totalorder %s42, 1
      %s44 = scalar_select %p43, 0, %s42
      %s45 = sadd.s32 1, %s36
      %s46 = scalar_select %p43, %s45, %s36
      %p47 = scmp.ge.s32.totalorder %s46, 2
      %s48 = scalar_select %p47, 0, %s46
      %s49 = ssub.s32 %s36, %s48
      %s50 = ssub.s32 %s37, %s44
      %s51 = sor.u32 %s49, %s50
      %p52 = scmp.eq.s32.totalorder %s51, 0
      %s54 = sadd.s32 %s53, 1
      %s55 = scalar_select %p52, %s53, %s54
      %p58 = pneg %p52
      %p59 = scmp.eq.s32.totalorder %s29, 1
      %p60 = por %p58, %p59
      %p61 = scmp.ne.s32.totalorder %s53, %s56
      %p62 = scmp.eq.s32.totalorder %s29, 0
      %p63 = por %p61, %p62
      %p64 = scmp.ne.s32.totalorder %s53, %s56
      %p65 = scmp.eq.s32.totalorder %s34, 1
      %p66 = por %p64, %p65
      %p67 = scmp.ne.s32.totalorder %s56, %s57
      %p68 = scmp.eq.s32.totalorder %s34, 0
      %p69 = por %p67, %p68
      %p70 = scmp.ne.s32.totalorder %s56, %s57
      %p71 = scmp.eq.s32.totalorder %s35, 1
      %p72 = por %p70, %p71
      %p74 = scmp.ne.s32.totalorder %s57, %s73
      %p75 = scmp.eq.s32.totalorder %s35, 0
      %p76 = por %p74, %p75
      %s77 = ssub.s32 %s36, %s48
      %p78 = scmp.eq.s32.totalorder %s77, 0
      %s80 = sadd.s32 %s79, 1
      %s81 = scalar_select %p78, %s79, %s80
      %p84 = pneg %p78
      %p85 = scmp.eq.s32.totalorder %s29, 1
      %p86 = por %p84, %p85
      %p87 = scmp.ne.s32.totalorder %s79, %s82
      %p88 = scmp.eq.s32.totalorder %s29, 0
      %p89 = por %p87, %p88
      %p90 = scmp.ne.s32.totalorder %s79, %s82
      %p91 = scmp.eq.s32.totalorder %s34, 1
      %p92 = por %p90, %p91
      %p93 = scmp.ne.s32.totalorder %s82, %s83
      %p94 = scmp.eq.s32.totalorder %s34, 0
      %p95 = por %p93, %p94
      %p96 = scmp.ne.s32.totalorder %s82, %s83
      %p97 = scmp.eq.s32.totalorder %s35, 1
      %p98 = por %p96, %p97
      %p100 = scmp.ne.s32.totalorder %s83, %s99
      %p101 = scmp.eq.s32.totalorder %s35, 0
      %p102 = por %p100, %p101
      %s104 = sadd.s32 %s103, 1
      %p107 = scmp.eq.s32.totalorder %s29, 1
      %p108 = scmp.ne.s32.totalorder %s103, %s105
      %p109 = scmp.eq.s32.totalorder %s29, 0
      %p110 = por %p108, %p109
      %p111 = scmp.ne.s32.totalorder %s103, %s105
      %p112 = scmp.eq.s32.totalorder %s34, 1
      %p113 = por %p111, %p112
      %p114 = scmp.ne.s32.totalorder %s105, %s106
      %p115 = scmp.eq.s32.totalorder %s34, 0
      %p116 = por %p114, %p115
      %p117 = scmp.ne.s32.totalorder %s105, %s106
      %p118 = scmp.eq.s32.totalorder %s35, 1
      %p119 = por %p117, %p118
      %p121 = scmp.ne.s32.totalorder %s106, %s120
      %p122 = scmp.eq.s32.totalorder %s35, 0
      %p123 = por %p121, %p122
      %s125 = sadd.s32 %s124, 1
      %p128 = scmp.eq.s32.totalorder %s29, 1
      %p129 = scmp.ne.s32.totalorder %s124, %s126
      %p130 = scmp.eq.s32.totalorder %s29, 0
      %p131 = por %p129, %p130
      %p132 = scmp.ne.s32.totalorder %s124, %s126
      %p133 = scmp.eq.s32.totalorder %s34, 1
      %p134 = por %p132, %p133
      %p135 = scmp.ne.s32.totalorder %s126, %s127
      %p136 = scmp.eq.s32.totalorder %s34, 0
      %p137 = por %p135, %p136
      %p138 = scmp.ne.s32.totalorder %s126, %s127
      %p139 = scmp.eq.s32.totalorder %s35, 1
      %p140 = por %p138, %p139
      %p142 = scmp.ne.s32.totalorder %s127, %s141
      %p143 = scmp.eq.s32.totalorder %s35, 0
      %p144 = por %p142, %p143
      %s146 = sadd.s32 %s145, 1
      %p149 = scmp.eq.s32.totalorder %s29, 1
      %p150 = scmp.ne.s32.totalorder %s145, %s147
      %p151 = scmp.eq.s32.totalorder %s29, 0
      %p152 = por %p150, %p151
      %p153 = scmp.ne.s32.totalorder %s145, %s147
      %p154 = scmp.eq.s32.totalorder %s34, 1
      %p155 = por %p153, %p154
      %p156 = scmp.ne.s32.totalorder %s147, %s148
      %p157 = scmp.eq.s32.totalorder %s34, 0
      %p158 = por %p156, %p157
      %p159 = scmp.ne.s32.totalorder %s147, %s148
      %p160 = scmp.eq.s32.totalorder %s35, 1
      %p161 = por %p159, %p160
      %p163 = scmp.ne.s32.totalorder %s148, %s162
      %p164 = scmp.eq.s32.totalorder %s35, 0
      %p165 = por %p163, %p164
      %s167 = sadd.s32 %s166, 1
      %p170 = scmp.eq.s32.totalorder %s29, 1
      %p171 = scmp.ne.s32.totalorder %s166, %s168
      %p172 = scmp.eq.s32.totalorder %s29, 0
      %p173 = por %p171, %p172
      %p174 = scmp.ne.s32.totalorder %s166, %s168
      %p175 = scmp.eq.s32.totalorder %s34, 1
      %p176 = por %p174, %p175
      %p177 = scmp.ne.s32.totalorder %s168, %s169
      %p178 = scmp.eq.s32.totalorder %s34, 0
      %p179 = por %p177, %p178
      %p180 = scmp.ne.s32.totalorder %s168, %s169
      %p181 = scmp.eq.s32.totalorder %s35, 1
      %p182 = por %p180, %p181
      %p184 = scmp.ne.s32.totalorder %s169, %s183
      %p185 = scmp.eq.s32.totalorder %s35, 0
      %p186 = por %p184, %p185
      %s188 = sadd.s32 %s187, 1
      %p191 = scmp.eq.s32.totalorder %s29, 1
      %p192 = scmp.ne.s32.totalorder %s187, %s189
      %p193 = scmp.eq.s32.totalorder %s29, 0
      %p194 = por %p192, %p193
      %p195 = scmp.ne.s32.totalorder %s187, %s189
      %p196 = scmp.eq.s32.totalorder %s34, 1
      %p197 = por %p195, %p196
      %p198 = scmp.ne.s32.totalorder %s189, %s190
      %p199 = scmp.eq.s32.totalorder %s34, 0
      %p200 = por %p198, %p199
      %p201 = scmp.ne.s32.totalorder %s189, %s190
      %p202 = scmp.eq.s32.totalorder %s35, 1
      %p203 = por %p201, %p202
      %p205 = scmp.ne.s32.totalorder %s190, %s204
      %p206 = scmp.eq.s32.totalorder %s35, 0
      %p207 = por %p205, %p206
      %s209 = sadd.s32 %s208, 1
      %p212 = scmp.eq.s32.totalorder %s29, 1
      %p213 = scmp.ne.s32.totalorder %s208, %s210
      %p214 = scmp.eq.s32.totalorder %s29, 0
      %p215 = por %p213, %p214
      %p216 = scmp.ne.s32.totalorder %s208, %s210
      %p217 = scmp.eq.s32.totalorder %s34, 1
      %p218 = por %p216, %p217
      %p219 = scmp.ne.s32.totalorder %s210, %s211
      %p220 = scmp.eq.s32.totalorder %s34, 0
      %p221 = por %p219, %p220
      %p222 = scmp.ne.s32.totalorder %s210, %s211
      %p223 = scmp.eq.s32.totalorder %s35, 1
      %p224 = por %p222, %p223
      %p226 = scmp.ne.s32.totalorder %s211, %s225
      %p227 = scmp.eq.s32.totalorder %s35, 0
      %p228 = por %p226, %p227
      %s229 = ssub.s32 %s36, %s48
      %s230 = ssub.s32 %s37, %s44
      %s231 = sor.u32 %s229, %s230
      %p232 = scmp.eq.s32.totalorder %s231, 0
      %s234 = sadd.s32 %s233, 1
      %s235 = scalar_select %p232, %s233, %s234
      %p238 = pneg %p232
      %p239 = scmp.eq.s32.totalorder %s29, 1
      %p240 = por %p238, %p239
      %p241 = scmp.ne.s32.totalorder %s233, %s236
      %p242 = scmp.eq.s32.totalorder %s29, 0
      %p243 = por %p241, %p242
      %p244 = scmp.ne.s32.totalorder %s233, %s236
      %p245 = scmp.eq.s32.totalorder %s34, 1
      %p246 = por %p244, %p245
      %p247 = scmp.ne.s32.totalorder %s236, %s237
      %p248 = scmp.eq.s32.totalorder %s34, 0
      %p249 = por %p247, %p248
      %p250 = scmp.ne.s32.totalorder %s236, %s237
      %p251 = scmp.eq.s32.totalorder %s35, 1
      %p252 = por %p250, %p251
      %p254 = scmp.ne.s32.totalorder %s237, %s253
      %p255 = scmp.eq.s32.totalorder %s35, 0
      %p256 = por %p254, %p255
      %s257 = ssub.s32 %s36, %s48
      %s258 = ssub.s32 %s37, %s44
      %s259 = sor.u32 %s257, %s258
      %p260 = scmp.eq.s32.totalorder %s259, 0
      %s262 = sadd.s32 %s261, 1
      %s263 = scalar_select %p260, %s261, %s262
      %p266 = pneg %p260
      %p267 = scmp.eq.s32.totalorder %s29, 1
      %p268 = por %p266, %p267
      %p269 = scmp.ne.s32.totalorder %s261, %s264
      %p270 = scmp.eq.s32.totalorder %s29, 0
      %p271 = por %p269, %p270
      %p272 = scmp.ne.s32.totalorder %s261, %s264
      %p273 = scmp.eq.s32.totalorder %s34, 1
      %p274 = por %p272, %p273
      %p275 = scmp.ne.s32.totalorder %s264, %s265
      %p276 = scmp.eq.s32.totalorder %s34, 0
      %p277 = por %p275, %p276
      %p278 = scmp.ne.s32.totalorder %s264, %s265
      %p279 = scmp.eq.s32.totalorder %s35, 1
      %p280 = por %p278, %p279
      %p282 = scmp.ne.s32.totalorder %s265, %s281
      %p283 = scmp.eq.s32.totalorder %s35, 0
      %p284 = por %p282, %p283
      %p285 = scmp.le.s32.totalorder 1, %s29
      %p286 = scmp.lt.s32.totalorder %s29, 3
      %p287 = pnand %p285, %p286
      %p288 = pneg %p287
      // Predicated region
      $region9: #{tpu_custom_call.1} parent=5 // pred_check
        _
      $region10: #{tpu_custom_call.1} parent=5 // pred_check_branch
        %290 = sbr.rel (%p287) target = $region12
      $region11: #{tpu_custom_call.1} parent=5 // pred_region
        %s291 = ssub.s32 %s29, 1
        // Predicated region
        $region13: #{tpu_custom_call.1} parent=11 // pred_check
          %p292 = pneg %p116
        $region14: #{tpu_custom_call.1} parent=11 // pred_check_branch
          %294 = sbr.rel (%p292) target = $region16
        $region15: #{tpu_custom_call.1} parent=11 // pred_region
          %s296 = ssub.s32 256, 256
          %297 = vsyncadd [#allocation9], %s296
          %s298 = sshll.u32 [#allocation10], 4
          %s299 = int_to_ptr.vmem [resolvable:$true] %s298
          %304 = dma.hbm_to_vmem [thread:$0]  %s2, 256, %s299, [#allocation9], 64, 64, 4
        $region16: #{tpu_custom_call.1} parent=11 // pred_fallthru
          _
        // Predicated region
        $region17: #{tpu_custom_call.1} parent=11 // pred_check
          %p305 = pneg %p137
        $region18: #{tpu_custom_call.1} parent=11 // pred_check_branch
          %307 = sbr.rel (%p305) target = $region20
        $region19: #{tpu_custom_call.1} parent=11 // pred_region
          _
        $region20: #{tpu_custom_call.1} parent=11 // pred_fallthru
          _
        // Predicated region
        $region21: #{tpu_custom_call.1} parent=11 // pred_check
          %p308 = pneg %p158
        $region22: #{tpu_custom_call.1} parent=11 // pred_check_branch
          %310 = sbr.rel (%p308) target = $region24
        $region23: #{tpu_custom_call.1} parent=11 // pred_region
          %s312 = ssub.s32 256, 256
          %313 = vsyncadd [#allocation12], %s312
          %s314 = sshll.u32 [#allocation11], 4
          %s315 = int_to_ptr.vmem [resolvable:$true] %s314
          %320 = dma.hbm_to_vmem [thread:$0]  %s4, 256, %s315, [#allocation12], 64, 64, 4
        $region24: #{tpu_custom_call.1} parent=11 // pred_fallthru
          _
        // Predicated region
        $region25: #{tpu_custom_call.1} parent=11 // pred_check
          %p321 = pneg %p179
        $region26: #{tpu_custom_call.1} parent=11 // pred_check_branch
          %323 = sbr.rel (%p321) target = $region28
        $region27: #{tpu_custom_call.1} parent=11 // pred_region
          _
        $region28: #{tpu_custom_call.1} parent=11 // pred_fallthru
          _
        // Predicated region
        $region29: #{tpu_custom_call.1} parent=11 // pred_check
          %p324 = pneg %p200
        $region30: #{tpu_custom_call.1} parent=11 // pred_check_branch
          %326 = sbr.rel (%p324) target = $region32
        $region31: #{tpu_custom_call.1} parent=11 // pred_region
          _
        $region32: #{tpu_custom_call.1} parent=11 // pred_fallthru
          _
        // Predicated region
        $region33: #{tpu_custom_call.1} parent=11 // pred_check
          %p327 = pneg %p221
        $region34: #{tpu_custom_call.1} parent=11 // pred_check_branch
          %329 = sbr.rel (%p327) target = $region36
        $region35: #{tpu_custom_call.1} parent=11 // pred_region
          _
        $region36: #{tpu_custom_call.1} parent=11 // pred_fallthru
          _
      $region12: #{tpu_custom_call.1} parent=5 // pred_fallthru
        _
      %p330 = scmp.lt.s32.totalorder %s29, 2
      // Predicated region
      $region37: #{tpu_custom_call.1} parent=5 // pred_check
        %p331 = pneg %p330
      $region38: #{tpu_custom_call.1} parent=5 // pred_check_branch
        %333 = sbr.rel (%p331) target = $region40
      $region39: #{tpu_custom_call.1} parent=5 // pred_region
        // Predicated region
        $region41: #{tpu_custom_call.1} parent=39 // pred_check
          %p334 = pneg %p63
        $region42: #{tpu_custom_call.1} parent=39 // pred_check_branch
          %336 = sbr.rel (%p334) target = $region44
        $region43: #{tpu_custom_call.1} parent=39 // pred_region
          %s337 = sand.u32 %s53, 1
          %s338 = scalar_lea.sflag [#allocation6], %s337
          %s339 = sand.u32 %s53, 1
          %s340 = smul.addr %s339, 4
          %s341 = scalar_lea.vmem [#allocation5], %s340
          %s343 = ssub.s32 64, 64
          %344 = vsyncadd %s338, %s343
          %s345 = sadd.s32 %s37, %s36
          %s346 = smul.addr %s345, 64
          %s347 = scalar_lea.hbm %s0, %s346
          %s349 = sshll.u32 %s341, 4
          %s350 = int_to_ptr.vmem [resolvable:$true] %s349
          %352 = dma.hbm_to_vmem [thread:$0]  %s347, 64, %s350, %s338
        $region44: #{tpu_custom_call.1} parent=39 // pred_fallthru
          _
        // Predicated region
        $region45: #{tpu_custom_call.1} parent=39 // pred_check
          %p353 = pneg %p89
        $region46: #{tpu_custom_call.1} parent=39 // pred_check_branch
          %355 = sbr.rel (%p353) target = $region48
        $region47: #{tpu_custom_call.1} parent=39 // pred_region
          %s356 = sand.u32 %s29, 1
          %s357 = scalar_lea.sflag [#allocation9], %s356
          %s358 = sand.u32 %s79, 1
          %s359 = smul.addr %s358, 4
          %s360 = scalar_lea.vmem [#allocation8], %s359
          %s362 = ssub.s32 64, 64
          %363 = vsyncadd %s357, %s362
          %s364 = smul.addr %s36, 64
          %s365 = scalar_lea.hbm %s1, %s364
          %s367 = sshll.u32 %s360, 4
          %s368 = int_to_ptr.vmem [resolvable:$true] %s367
          %370 = dma.hbm_to_vmem [thread:$0]  %s365, 64, %s368, %s357
        $region48: #{tpu_custom_call.1} parent=39 // pred_fallthru
          _
      $region40: #{tpu_custom_call.1} parent=5 // pred_fallthru
        _
      %p371 = scmp.le.s32.totalorder 1, %s29
      %p372 = scmp.lt.s32.totalorder %s29, 3
      %p373 = pnand %p371, %p372
      %p374 = pneg %p373
      // Predicated region
      $region49: #{tpu_custom_call.1} parent=5 // pred_check
        _
      $region50: #{tpu_custom_call.1} parent=5 // pred_check_branch
        %376 = sbr.rel (%p373) target = $region52
      $region51: #{tpu_custom_call.1} parent=5 // pred_region
        %s377 = ssub.s32 %s29, 1
        %s378 = sand.u32 %s56, 1
        %s379 = scalar_lea.sflag [#allocation6], %s378
        %s380 = sand.u32 %s56, 1
        %s381 = smul.addr %s380, 4
        %s382 = scalar_lea.vmem [#allocation5], %s381
        // Predicated region
        $region53: #{tpu_custom_call.1} parent=51 // pred_check
          %p383 = pneg %p69
        $region54: #{tpu_custom_call.1} parent=51 // pred_check_branch
          %385 = sbr.rel (%p383) target = $region56
        $region55: #{tpu_custom_call.1} parent=51 // pred_region
          %386 = dma.done %s379, 64
        $region56: #{tpu_custom_call.1} parent=51 // pred_fallthru
          _
        %s387 = sand.u32 %s34, 1
        %s388 = scalar_lea.sflag [#allocation9], %s387
        %s389 = sand.u32 %s82, 1
        %s390 = smul.addr %s389, 4
        %s391 = scalar_lea.vmem [#allocation8], %s390
        // Predicated region
        $region57: #{tpu_custom_call.1} parent=51 // pred_check
          %p392 = pneg %p95
        $region58: #{tpu_custom_call.1} parent=51 // pred_check_branch
          %394 = sbr.rel (%p392) target = $region60
        $region59: #{tpu_custom_call.1} parent=51 // pred_region
          %395 = dma.done %s388, 64
        $region60: #{tpu_custom_call.1} parent=51 // pred_fallthru
          _
        // Predicated region
        $region61: #{tpu_custom_call.1} parent=51 // pred_check
          %p396 = pneg %p116
        $region62: #{tpu_custom_call.1} parent=51 // pred_check_branch
          %398 = sbr.rel (%p396) target = $region64
        $region63: #{tpu_custom_call.1} parent=51 // pred_region
          %399 = dma.done [#allocation9], 256
        $region64: #{tpu_custom_call.1} parent=51 // pred_fallthru
          _
        // Predicated region
        $region65: #{tpu_custom_call.1} parent=51 // pred_check
          %p400 = pneg %p158
        $region66: #{tpu_custom_call.1} parent=51 // pred_check_branch
          %402 = sbr.rel (%p400) target = $region68
        $region67: #{tpu_custom_call.1} parent=51 // pred_region
          %403 = dma.done [#allocation12], 256
        $region68: #{tpu_custom_call.1} parent=51 // pred_fallthru
          _
        %s404 = sand.u32 %s56, 1
        %s405 = scalar_lea.sflag [#allocation6], %s404
        %s406 = sand.u32 %s56, 1
        %s407 = smul.addr %s406, 4
        %s408 = scalar_lea.vmem [#allocation5], %s407
        %p409 = pneg %p69
        %p410 = pneg %p66
        %s411 = sand.u32 %s34, 1
        %s412 = scalar_lea.sflag [#allocation9], %s411
        %s413 = sand.u32 %s82, 1
        %s414 = smul.addr %s413, 4
        %s415 = scalar_lea.vmem [#allocation8], %s414
        %p416 = pneg %p95
        %p417 = pneg %p92
        %p418 = pneg %p116
        %p419 = pneg %p113
        %p420 = pneg %p137
        %p421 = pneg %p134
        %p422 = pneg %p158
        %p423 = pneg %p155
        %p424 = pneg %p179
        %p425 = pneg %p176
        %p426 = pneg %p200
        %p427 = pneg %p197
        %p428 = pneg %p221
        %p429 = pneg %p218
        %p430 = pneg %p249
        %p431 = pneg %p246
        %s432 = sand.u32 %s236, 1
        %s433 = scalar_lea.sflag [#allocation7], %s432
        %s434 = sand.u32 %s236, 1
        %s435 = smul.addr %s434, 8
        %s436 = scalar_lea.vmem [#allocation13], %s435
        %p437 = pneg %p277
        %p438 = pneg %p274
        %s439 = sand.u32 %s264, 1
        %s440 = scalar_lea.sflag [#allocation15], %s439
        %s441 = sand.u32 %s264, 1
        %s442 = smul.addr %s441, 32
        %s443 = scalar_lea.vmem [#allocation14], %s442
        %p445 = scmp.eq.s32.totalorder %s39, 0
        // Predicated region
        $region69: #{tpu_custom_call.1} parent=51 // pred_check
          %p446 = pneg %p445
        $region70: #{tpu_custom_call.1} parent=51 // pred_check_branch
          %448 = sbr.rel (%p446) target = $region72
        $region71: #{tpu_custom_call.1} parent=51 // pred_region
          %v449 = vld [vmem:[%s391] sm:$0xf]
          %v450 = vld [vmem:[#allocation11] sm:$0xf]
          %v451 = vld [vmem:[#allocation11 + $0x4] sm:$0xf]
          %v452 = vld [vmem:[#allocation11 + $0x8] sm:$0xf]
          %v453 = vld [vmem:[#allocation11 + $0xc] sm:$0xf]
          %v454 = vld [vmem:[%s5] sm:$0x1]
          %v456 = vlaneseq
          %v457 = vshrl.u32 %v456, 7
          %v458 = vsub.s32 0, %v457
          %v459 = vrot.slane %v454, %v458
          %v465 = vunpack.c.l.b16 %v450
          %v466 = vunpack.c.l.b16 %v451
          %v467 = vunpack.c.l.b16 %v452
          %v468 = vunpack.c.l.b16 %v453
          %v469 = vpack.c.b16 %v466, %v465
          %v470 = vpack.c.b16 %v468, %v467
          %vm473 = vcmask 261120
          %v475 = vsel %vm473, %v449, 0
          %477 = vmatprep.subr.bf16.mxu0 0
          %478 = vmatpush1.bf16.msra.mxu0 %v469
          %479 = vmatprep.subr.bf16.mxu0 0
          %480 = vmatpush1.bf16.msra.mxu0 %v470
          %481 = vmatprep.subr.bf16.mxu0 0
          %482 = vmatpush1.bf16.msra.mxu0 0
          %483 = vmatprep.subr.bf16.mxu0 0
          %484 = vmatpush1.bf16.msra.mxu0 0
          %485 = vmatprep.subr.bf16.mxu0 0
          %486 = vmatpush1.bf16.msra.mxu0 0
          %487 = vmatprep.subr.bf16.mxu0 0
          %488 = vmatpush1.bf16.msra.mxu0 0
          %489 = vmatprep.subr.bf16.mxu0 0
          %490 = vmatpush1.bf16.msra.mxu0 0
          %491 = vmatprep.subr.bf16.mxu0 0
          %492 = vmatpush1.bf16.msra.mxu0 0
          %493 = vmatprep.subr.bf16.mxu0 0
          %494 = vmatpush1.bf16.msra.mxu0 0
          %495 = vmatprep.subr.bf16.mxu0 0
          %496 = vmatpush1.bf16.msra.mxu0 0
          %497 = vmatprep.subr.bf16.mxu0 0
          %498 = vmatpush1.bf16.msra.mxu0 0
          %499 = vmatprep.subr.bf16.mxu0 0
          %500 = vmatpush1.bf16.msra.mxu0 0
          %501 = vmatprep.subr.bf16.mxu0 0
          %502 = vmatpush1.bf16.msra.mxu0 0
          %503 = vmatprep.subr.bf16.mxu0 0
          %504 = vmatpush1.bf16.msra.mxu0 0
          %505 = vmatprep.subr.bf16.mxu0 0
          %506 = vmatpush1.bf16.msra.mxu0 0
          %507 = vmatprep.subr.bf16.mxu0 0
          %508 = vmatpush1.bf16.msra.mxu0 0
          %509 = vmatprep.mubr.bf16.mxu0 0
          %510 = vmatmul.mubr.bf16.gmra.mrb[0].mxu0 %v475
          %v511 = vpop.f32.mrb[0].mxu0
          %v512 = vadd.f32 %v459, %v511
          %v513 = vpop.f32.mrb[0].mxu0
          %v514 = vpop.f32.mrb[0].mxu0
          %v515 = vpop.f32.mrb[0].mxu0
          %516 = vdwg.mxu0
          %v517 = vpack.c.bf16 %v512, %v512
          %vm518 = vcmask 519168
          %519 = vst.msk [vmem:[#allocation3] sm:$0xf] %vm518, %v517
        $region72: #{tpu_custom_call.1} parent=51 // pred_fallthru
          _
        %v520 = vld [vmem:[%s382] sm:$0xf]
        %v521 = vld [vmem:[#allocation10] sm:$0xf]
        %v522 = vld [vmem:[#allocation10 + $0x4] sm:$0xf]
        %v523 = vld [vmem:[#allocation10 + $0x8] sm:$0xf]
        %v524 = vld [vmem:[#allocation10 + $0xc] sm:$0xf]
        %v525 = vld [vmem:[%s3] sm:$0x1]
        %v527 = vlaneseq
        %v528 = vshrl.u32 %v527, 7
        %v529 = vsub.s32 0, %v528
        %v530 = vrot.slane %v525, %v529
        %v536 = vunpack.c.l.b16 %v521
        %v537 = vunpack.c.l.b16 %v522
        %v538 = vunpack.c.l.b16 %v523
        %v539 = vunpack.c.l.b16 %v524
        %v540 = vpack.c.b16 %v537, %v536
        %v541 = vpack.c.b16 %v539, %v538
        %vm544 = vcmask 261120
        %v546 = vsel %vm544, %v520, 0
        %548 = vmatprep.subr.bf16.mxu0 0
        %549 = vmatpush1.bf16.msra.mxu0 %v540
        %550 = vmatprep.subr.bf16.mxu0 0
        %551 = vmatpush1.bf16.msra.mxu0 %v541
        %552 = vmatprep.subr.bf16.mxu0 0
        %553 = vmatpush1.bf16.msra.mxu0 0
        %554 = vmatprep.subr.bf16.mxu0 0
        %555 = vmatpush1.bf16.msra.mxu0 0
        %556 = vmatprep.subr.bf16.mxu0 0
        %557 = vmatpush1.bf16.msra.mxu0 0
        %558 = vmatprep.subr.bf16.mxu0 0
        %559 = vmatpush1.bf16.msra.mxu0 0
        %560 = vmatprep.subr.bf16.mxu0 0
        %561 = vmatpush1.bf16.msra.mxu0 0
        %562 = vmatprep.subr.bf16.mxu0 0
        %563 = vmatpush1.bf16.msra.mxu0 0
        %564 = vmatprep.subr.bf16.mxu0 0
        %565 = vmatpush1.bf16.msra.mxu0 0
        %566 = vmatprep.subr.bf16.mxu0 0
        %567 = vmatpush1.bf16.msra.mxu0 0
        %568 = vmatprep.subr.bf16.mxu0 0
        %569 = vmatpush1.bf16.msra.mxu0 0
        %570 = vmatprep.subr.bf16.mxu0 0
        %571 = vmatpush1.bf16.msra.mxu0 0
        %572 = vmatprep.subr.bf16.mxu0 0
        %573 = vmatpush1.bf16.msra.mxu0 0
        %574 = vmatprep.subr.bf16.mxu0 0
        %575 = vmatpush1.bf16.msra.mxu0 0
        %576 = vmatprep.subr.bf16.mxu0 0
        %577 = vmatpush1.bf16.msra.mxu0 0
        %578 = vmatprep.subr.bf16.mxu0 0
        %579 = vmatpush1.bf16.msra.mxu0 0
        %580 = vmatprep.mubr.bf16.mxu0 0
        %581 = vmatmul.mubr.bf16.gmra.mrb[0].mxu0 %v546
        %v582 = vpop.f32.mrb[0].mxu0
        %v583 = vadd.f32 %v530, %v582
        %v584 = vpop.f32.mrb[0].mxu0
        %v585 = vpop.f32.mrb[0].mxu0
        %v586 = vpop.f32.mrb[0].mxu0
        %587 = vdwg.mxu0
        %v588 = vpack.c.bf16 %v583, %v583
        %vm589 = vcmask 257024
        %590 = vst.msk [vmem:[#allocation2] sm:$0xf] %vm589, %v588
        %v591 = vld [vmem:[#allocation2] sm:$0xf]
        %v592 = vld [vmem:[#allocation3] sm:$0xf]
        %vm593 = vcmask 64512
        %v595 = vsel %vm593, %v591, 0
        %v598 = vsel %vm593, %v592, 0
        %600 = vmatprep.subr.bf16.mxu0 0
        %601 = vmatpush1.bf16.xpose.msra.mxu0 %v598
        %602 = vmatprep.subr.bf16.mxu0 0
        %603 = vmatpush1.bf16.xpose.msra.mxu0 0
        %604 = vmatprep.subr.bf16.mxu0 0
        %605 = vmatpush1.bf16.xpose.msra.mxu0 0
        %606 = vmatprep.subr.bf16.mxu0 0
        %607 = vmatpush1.bf16.xpose.msra.mxu0 0
        %608 = vmatprep.subr.bf16.mxu0 0
        %609 = vmatpush1.bf16.xpose.msra.mxu0 0
        %610 = vmatprep.subr.bf16.mxu0 0
        %611 = vmatpush1.bf16.xpose.msra.mxu0 0
        %612 = vmatprep.subr.bf16.mxu0 0
        %613 = vmatpush1.bf16.xpose.msra.mxu0 0
        %614 = vmatprep.subr.bf16.mxu0 0
        %615 = vmatpush1.bf16.xpose.msra.mxu0 0
        %616 = vmatprep.subr.bf16.mxu0 0
        %617 = vmatpush1.bf16.xpose.msra.mxu0 0
        %618 = vmatprep.subr.bf16.mxu0 0
        %619 = vmatpush1.bf16.xpose.msra.mxu0 0
        %620 = vmatprep.subr.bf16.mxu0 0
        %621 = vmatpush1.bf16.xpose.msra.mxu0 0
        %622 = vmatprep.subr.bf16.mxu0 0
        %623 = vmatpush1.bf16.xpose.msra.mxu0 0
        %624 = vmatprep.subr.bf16.mxu0 0
        %625 = vmatpush1.bf16.xpose.msra.mxu0 0
        %626 = vmatprep.subr.bf16.mxu0 0
        %627 = vmatpush1.bf16.xpose.msra.mxu0 0
        %628 = vmatprep.subr.bf16.mxu0 0
        %629 = vmatpush1.bf16.xpose.msra.mxu0 0
        %630 = vmatprep.subr.bf16.mxu0 0
        %631 = vmatpush1.bf16.xpose.msra.mxu0 0
        %632 = vmatprep.mubr.bf16.mxu0 0
        %633 = vmatmul.mubr.bf16.gmra.mrb[0].mxu0 %v595
        %v634 = vpop.f32.mrb[0].mxu0
        %v635 = vadd.f32 0.0, %v634
        %v636 = vpop.f32.mrb[0].mxu0
        %v637 = vpop.f32.mrb[0].mxu0
        %v638 = vpop.f32.mrb[0].mxu0
        %639 = vdwg.mxu0
        %v640 = vsel %vm593, %v635, -inf
        %641 = vmax.xlane.f32.xlu0 %v640
        %v642 = vpop.xlane.xlu0 %641
        %v643 = vsub.f32 %v635, %v642
        %v644 = vmul.f32 %v643, 1.442695
        %v645 = vpow.pop %v644
        %v646 = vsel %vm593, %v645, 0.0
        %647 = vadd.xlane.f32.xlu0 %v646
        %v648 = vpop.xlane.xlu0 %647
        %v649 = vrcp.pop %v648
        %v650 = vmul.f32 1.0, %v649
        %v651 = vmul.f32 %v645, %v650
        %652 = vst.msk [vmem:[%s443] sm:$0xff] %vm593, %v651
        %v653 = vpack.c.bf16 %v651, %v651
        %v655 = vunpack.c.l.b16 %v592
        %v656 = vpack.c.b16 %v655, %v655
        %657 = vrot.lane.b32.xlu0 %v656, 96
        %v658 = vpop.permute.xlu0 %657
        %v660 = vsel %vm593, %v653, 0
        %vm662 = vcmask 1043456
        %v664 = vsel %vm662, %v658, 0
        %666 = vmatprep.subr.bf16.mxu0 0
        %667 = vmatpush1.bf16.msra.mxu0 %v664
        %668 = vmatprep.subr.bf16.mxu0 0
        %669 = vmatpush1.bf16.msra.mxu0 0
        %670 = vmatprep.subr.bf16.mxu0 0
        %671 = vmatpush1.bf16.msra.mxu0 0
        %672 = vmatprep.subr.bf16.mxu0 0
        %673 = vmatpush1.bf16.msra.mxu0 0
        %674 = vmatprep.subr.bf16.mxu0 0
        %675 = vmatpush1.bf16.msra.mxu0 0
        %676 = vmatprep.subr.bf16.mxu0 0
        %677 = vmatpush1.bf16.msra.mxu0 0
        %678 = vmatprep.subr.bf16.mxu0 0
        %679 = vmatpush1.bf16.msra.mxu0 0
        %680 = vmatprep.subr.bf16.mxu0 0
        %681 = vmatpush1.bf16.msra.mxu0 0
        %682 = vmatprep.subr.bf16.mxu0 0
        %683 = vmatpush1.bf16.msra.mxu0 0
        %684 = vmatprep.subr.bf16.mxu0 0
        %685 = vmatpush1.bf16.msra.mxu0 0
        %686 = vmatprep.subr.bf16.mxu0 0
        %687 = vmatpush1.bf16.msra.mxu0 0
        %688 = vmatprep.subr.bf16.mxu0 0
        %689 = vmatpush1.bf16.msra.mxu0 0
        %690 = vmatprep.subr.bf16.mxu0 0
        %691 = vmatpush1.bf16.msra.mxu0 0
        %692 = vmatprep.subr.bf16.mxu0 0
        %693 = vmatpush1.bf16.msra.mxu0 0
        %694 = vmatprep.subr.bf16.mxu0 0
        %695 = vmatpush1.bf16.msra.mxu0 0
        %696 = vmatprep.subr.bf16.mxu0 0
        %697 = vmatpush1.bf16.msra.mxu0 0
        %698 = vmatprep.mubr.bf16.mxu0 0
        %699 = vmatmul.mubr.bf16.gmra.mrb[0].mxu0 %v660
        %v700 = vpop.f32.mrb[0].mxu0
        %v701 = vadd.f32 0.0, %v700
        %v702 = vpop.f32.mrb[0].mxu0
        %v703 = vpop.f32.mrb[0].mxu0
        %v704 = vpop.f32.mrb[0].mxu0
        %705 = vdwg.mxu0
        %v706 = vld [vmem:[#allocation2] sm:$0xf]
        %v707 = vld [vmem:[#allocation3] sm:$0xf]
        %v709 = vunpack.c.l.b16 %v706
        %v710 = vpack.c.b16 %v709, %v709
        %711 = vrot.lane.b32.xlu0 %v710, 120
        %v712 = vpop.permute.xlu0 %711
        %v714 = vunpack.c.l.b16 %v707
        %v715 = vpack.c.b16 %v714, %v714
        %716 = vrot.lane.b32.xlu0 %v715, 120
        %v717 = vpop.permute.xlu0 %716
        %v719 = vsel %vm593, %v712, 0
        %v722 = vsel %vm593, %v717, 0
        %724 = vmatprep.subr.bf16.mxu0 0
        %725 = vmatpush1.bf16.xpose.msra.mxu0 %v722
        %726 = vmatprep.subr.bf16.mxu0 0
        %727 = vmatpush1.bf16.xpose.msra.mxu0 0
        %728 = vmatprep.subr.bf16.mxu0 0
        %729 = vmatpush1.bf16.xpose.msra.mxu0 0
        %730 = vmatprep.subr.bf16.mxu0 0
        %731 = vmatpush1.bf16.xpose.msra.mxu0 0
        %732 = vmatprep.subr.bf16.mxu0 0
        %733 = vmatpush1.bf16.xpose.msra.mxu0 0
        %734 = vmatprep.subr.bf16.mxu0 0
        %735 = vmatpush1.bf16.xpose.msra.mxu0 0
        %736 = vmatprep.subr.bf16.mxu0 0
        %737 = vmatpush1.bf16.xpose.msra.mxu0 0
        %738 = vmatprep.subr.bf16.mxu0 0
        %739 = vmatpush1.bf16.xpose.msra.mxu0 0
        %740 = vmatprep.subr.bf16.mxu0 0
        %741 = vmatpush1.bf16.xpose.msra.mxu0 0
        %742 = vmatprep.subr.bf16.mxu0 0
        %743 = vmatpush1.bf16.xpose.msra.mxu0 0
        %744 = vmatprep.subr.bf16.mxu0 0
        %745 = vmatpush1.bf16.xpose.msra.mxu0 0
        %746 = vmatprep.subr.bf16.mxu0 0
        %747 = vmatpush1.bf16.xpose.msra.mxu0 0
        %748 = vmatprep.subr.bf16.mxu0 0
        %749 = vmatpush1.bf16.xpose.msra.mxu0 0
        %750 = vmatprep.subr.bf16.mxu0 0
        %751 = vmatpush1.bf16.xpose.msra.mxu0 0
        %752 = vmatprep.subr.bf16.mxu0 0
        %753 = vmatpush1.bf16.xpose.msra.mxu0 0
        %754 = vmatprep.subr.bf16.mxu0 0
        %755 = vmatpush1.bf16.xpose.msra.mxu0 0
        %756 = vmatprep.mubr.bf16.mxu0 0
        %757 = vmatmul.mubr.bf16.gmra.mrb[0].mxu0 %v719
        %v758 = vpop.f32.mrb[0].mxu0
        %v759 = vadd.f32 0.0, %v758
        %v760 = vpop.f32.mrb[0].mxu0
        %v761 = vpop.f32.mrb[0].mxu0
        %v762 = vpop.f32.mrb[0].mxu0
        %763 = vdwg.mxu0
        %v764 = vsel %vm593, %v759, -inf
        %765 = vmax.xlane.f32.xlu0 %v764
        %v766 = vpop.xlane.xlu0 %765
        %v767 = vsub.f32 %v759, %v766
        %v768 = vmul.f32 %v767, 1.442695
        %v769 = vpow.pop %v768
        %v770 = vsel %vm593, %v769, 0.0
        %771 = vadd.xlane.f32.xlu0 %v770
        %v772 = vpop.xlane.xlu0 %771
        %v773 = vrcp.pop %v772
        %v774 = vmul.f32 1.0, %v773
        %v775 = vmul.f32 %v769, %v774
        %s776 = scalar_lea.vmem %s443, 8 [#allocation14]
        %777 = vst.msk [vmem:[%s776] sm:$0xff] %vm593, %v775
        %v778 = vpack.c.bf16 %v775, %v775
        %779 = vrot.lane.b32.xlu0 %v715, 88
        %v780 = vpop.permute.xlu0 %779
        %v782 = vsel %vm593, %v778, 0
        %v785 = vsel %vm662, %v780, 0
        %787 = vmatprep.subr.bf16.mxu0 0
        %788 = vmatpush1.bf16.msra.mxu0 %v785
        %789 = vmatprep.subr.bf16.mxu0 0
        %790 = vmatpush1.bf16.msra.mxu0 0
        %791 = vmatprep.subr.bf16.mxu0 0
        %792 = vmatpush1.bf16.msra.mxu0 0
        %793 = vmatprep.subr.bf16.mxu0 0
        %794 = vmatpush1.bf16.msra.mxu0 0
        %795 = vmatprep.subr.bf16.mxu0 0
        %796 = vmatpush1.bf16.msra.mxu0 0
        %797 = vmatprep.subr.bf16.mxu0 0
        %798 = vmatpush1.bf16.msra.mxu0 0
        %799 = vmatprep.subr.bf16.mxu0 0
        %800 = vmatpush1.bf16.msra.mxu0 0
        %801 = vmatprep.subr.bf16.mxu0 0
        %802 = vmatpush1.bf16.msra.mxu0 0
        %803 = vmatprep.subr.bf16.mxu0 0
        %804 = vmatpush1.bf16.msra.mxu0 0
        %805 = vmatprep.subr.bf16.mxu0 0
        %806 = vmatpush1.bf16.msra.mxu0 0
        %807 = vmatprep.subr.bf16.mxu0 0
        %808 = vmatpush1.bf16.msra.mxu0 0
        %809 = vmatprep.subr.bf16.mxu0 0
        %810 = vmatpush1.bf16.msra.mxu0 0
        %811 = vmatprep.subr.bf16.mxu0 0
        %812 = vmatpush1.bf16.msra.mxu0 0
        %813 = vmatprep.subr.bf16.mxu0 0
        %814 = vmatpush1.bf16.msra.mxu0 0
        %815 = vmatprep.subr.bf16.mxu0 0
        %816 = vmatpush1.bf16.msra.mxu0 0
        %817 = vmatprep.subr.bf16.mxu0 0
        %818 = vmatpush1.bf16.msra.mxu0 0
        %819 = vmatprep.mubr.bf16.mxu0 0
        %820 = vmatmul.mubr.bf16.gmra.mrb[0].mxu0 %v782
        %v821 = vpop.f32.mrb[0].mxu0
        %v822 = vadd.f32 0.0, %v821
        %v823 = vpop.f32.mrb[0].mxu0
        %v824 = vpop.f32.mrb[0].mxu0
        %v825 = vpop.f32.mrb[0].mxu0
        %826 = vdwg.mxu0
        %v827 = vld [vmem:[#allocation2] sm:$0xf]
        %v828 = vld [vmem:[#allocation3] sm:$0xf]
        %v830 = vunpack.c.l.b16 %v827
        %v831 = vpack.c.b16 %v830, %v830
        %832 = vrot.lane.b32.xlu0 %v831, 112
        %v833 = vpop.permute.xlu0 %832
        %v835 = vunpack.c.l.b16 %v828
        %v836 = vpack.c.b16 %v835, %v835
        %837 = vrot.lane.b32.xlu0 %v836, 112
        %v838 = vpop.permute.xlu0 %837
        %v840 = vsel %vm593, %v833, 0
        %v843 = vsel %vm593, %v838, 0
        %845 = vmatprep.subr.bf16.mxu0 0
        %846 = vmatpush1.bf16.xpose.msra.mxu0 %v843
        %847 = vmatprep.subr.bf16.mxu0 0
        %848 = vmatpush1.bf16.xpose.msra.mxu0 0
        %849 = vmatprep.subr.bf16.mxu0 0
        %850 = vmatpush1.bf16.xpose.msra.mxu0 0
        %851 = vmatprep.subr.bf16.mxu0 0
        %852 = vmatpush1.bf16.xpose.msra.mxu0 0
        %853 = vmatprep.subr.bf16.mxu0 0
        %854 = vmatpush1.bf16.xpose.msra.mxu0 0
        %855 = vmatprep.subr.bf16.mxu0 0
        %856 = vmatpush1.bf16.xpose.msra.mxu0 0
        %857 = vmatprep.subr.bf16.mxu0 0
        %858 = vmatpush1.bf16.xpose.msra.mxu0 0
        %859 = vmatprep.subr.bf16.mxu0 0
        %860 = vmatpush1.bf16.xpose.msra.mxu0 0
        %861 = vmatprep.subr.bf16.mxu0 0
        %862 = vmatpush1.bf16.xpose.msra.mxu0 0
        %863 = vmatprep.subr.bf16.mxu0 0
        %864 = vmatpush1.bf16.xpose.msra.mxu0 0
        %865 = vmatprep.subr.bf16.mxu0 0
        %866 = vmatpush1.bf16.xpose.msra.mxu0 0
        %867 = vmatprep.subr.bf16.mxu0 0
        %868 = vmatpush1.bf16.xpose.msra.mxu0 0
        %869 = vmatprep.subr.bf16.mxu0 0
        %870 = vmatpush1.bf16.xpose.msra.mxu0 0
        %871 = vmatprep.subr.bf16.mxu0 0
        %872 = vmatpush1.bf16.xpose.msra.mxu0 0
        %873 = vmatprep.subr.bf16.mxu0 0
        %874 = vmatpush1.bf16.xpose.msra.mxu0 0
        %875 = vmatprep.subr.bf16.mxu0 0
        %876 = vmatpush1.bf16.xpose.msra.mxu0 0
        %877 = vmatprep.mubr.bf16.mxu0 0
        %878 = vmatmul.mubr.bf16.gmra.mrb[0].mxu0 %v840
        %v879 = vpop.f32.mrb[0].mxu0
        %v880 = vadd.f32 0.0, %v879
        %v881 = vpop.f32.mrb[0].mxu0
        %v882 = vpop.f32.mrb[0].mxu0
        %v883 = vpop.f32.mrb[0].mxu0
        %884 = vdwg.mxu0
        %v885 = vsel %vm593, %v880, -inf
        %886 = vmax.xlane.f32.xlu0 %v885
        %v887 = vpop.xlane.xlu0 %886
        %v888 = vsub.f32 %v880, %v887
        %v889 = vmul.f32 %v888, 1.442695
        %v890 = vpow.pop %v889
        %v891 = vsel %vm593, %v890, 0.0
        %892 = vadd.xlane.f32.xlu0 %v891
        %v893 = vpop.xlane.xlu0 %892
        %v894 = vrcp.pop %v893
        %v895 = vmul.f32 1.0, %v894
        %v896 = vmul.f32 %v890, %v895
        %s897 = scalar_lea.vmem %s443, 16 [#allocation14]
        %898 = vst.msk [vmem:[%s897] sm:$0xff] %vm593, %v896
        %v899 = vpack.c.bf16 %v896, %v896
        %900 = vrot.lane.b32.xlu0 %v836, 80
        %v901 = vpop.permute.xlu0 %900
        %v903 = vsel %vm593, %v899, 0
        %v906 = vsel %vm662, %v901, 0
        %908 = vmatprep.subr.bf16.mxu0 0
        %909 = vmatpush1.bf16.msra.mxu0 %v906
        %910 = vmatprep.subr.bf16.mxu0 0
        %911 = vmatpush1.bf16.msra.mxu0 0
        %912 = vmatprep.subr.bf16.mxu0 0
        %913 = vmatpush1.bf16.msra.mxu0 0
        %914 = vmatprep.subr.bf16.mxu0 0
        %915 = vmatpush1.bf16.msra.mxu0 0
        %916 = vmatprep.subr.bf16.mxu0 0
        %917 = vmatpush1.bf16.msra.mxu0 0
        %918 = vmatprep.subr.bf16.mxu0 0
        %919 = vmatpush1.bf16.msra.mxu0 0
        %920 = vmatprep.subr.bf16.mxu0 0
        %921 = vmatpush1.bf16.msra.mxu0 0
        %922 = vmatprep.subr.bf16.mxu0 0
        %923 = vmatpush1.bf16.msra.mxu0 0
        %924 = vmatprep.subr.bf16.mxu0 0
        %925 = vmatpush1.bf16.msra.mxu0 0
        %926 = vmatprep.subr.bf16.mxu0 0
        %927 = vmatpush1.bf16.msra.mxu0 0
        %928 = vmatprep.subr.bf16.mxu0 0
        %929 = vmatpush1.bf16.msra.mxu0 0
        %930 = vmatprep.subr.bf16.mxu0 0
        %931 = vmatpush1.bf16.msra.mxu0 0
        %932 = vmatprep.subr.bf16.mxu0 0
        %933 = vmatpush1.bf16.msra.mxu0 0
        %934 = vmatprep.subr.bf16.mxu0 0
        %935 = vmatpush1.bf16.msra.mxu0 0
        %936 = vmatprep.subr.bf16.mxu0 0
        %937 = vmatpush1.bf16.msra.mxu0 0
        %938 = vmatprep.subr.bf16.mxu0 0
        %939 = vmatpush1.bf16.msra.mxu0 0
        %940 = vmatprep.mubr.bf16.mxu0 0
        %941 = vmatmul.mubr.bf16.gmra.mrb[0].mxu0 %v903
        %v942 = vpop.f32.mrb[0].mxu0
        %v943 = vadd.f32 0.0, %v942
        %v944 = vpop.f32.mrb[0].mxu0
        %v945 = vpop.f32.mrb[0].mxu0
        %v946 = vpop.f32.mrb[0].mxu0
        %947 = vdwg.mxu0
        %v948 = vld [vmem:[#allocation2] sm:$0xf]
        %v949 = vld [vmem:[#allocation3] sm:$0xf]
        %v951 = vunpack.c.l.b16 %v948
        %v952 = vpack.c.b16 %v951, %v951
        %953 = vrot.lane.b32.xlu0 %v952, 104
        %v954 = vpop.permute.xlu0 %953
        %v956 = vunpack.c.l.b16 %v949
        %v957 = vpack.c.b16 %v956, %v956
        %958 = vrot.lane.b32.xlu0 %v957, 104
        %v959 = vpop.permute.xlu0 %958
        %v961 = vsel %vm593, %v954, 0
        %v964 = vsel %vm593, %v959, 0
        %966 = vmatprep.subr.bf16.mxu0 0
        %967 = vmatpush1.bf16.xpose.msra.mxu0 %v964
        %968 = vmatprep.subr.bf16.mxu0 0
        %969 = vmatpush1.bf16.xpose.msra.mxu0 0
        %970 = vmatprep.subr.bf16.mxu0 0
        %971 = vmatpush1.bf16.xpose.msra.mxu0 0
        %972 = vmatprep.subr.bf16.mxu0 0
        %973 = vmatpush1.bf16.xpose.msra.mxu0 0
        %974 = vmatprep.subr.bf16.mxu0 0
        %975 = vmatpush1.bf16.xpose.msra.mxu0 0
        %976 = vmatprep.subr.bf16.mxu0 0
        %977 = vmatpush1.bf16.xpose.msra.mxu0 0
        %978 = vmatprep.subr.bf16.mxu0 0
        %979 = vmatpush1.bf16.xpose.msra.mxu0 0
        %980 = vmatprep.subr.bf16.mxu0 0
        %981 = vmatpush1.bf16.xpose.msra.mxu0 0
        %982 = vmatprep.subr.bf16.mxu0 0
        %983 = vmatpush1.bf16.xpose.msra.mxu0 0
        %984 = vmatprep.subr.bf16.mxu0 0
        %985 = vmatpush1.bf16.xpose.msra.mxu0 0
        %986 = vmatprep.subr.bf16.mxu0 0
        %987 = vmatpush1.bf16.xpose.msra.mxu0 0
        %988 = vmatprep.subr.bf16.mxu0 0
        %989 = vmatpush1.bf16.xpose.msra.mxu0 0
        %990 = vmatprep.subr.bf16.mxu0 0
        %991 = vmatpush1.bf16.xpose.msra.mxu0 0
        %992 = vmatprep.subr.bf16.mxu0 0
        %993 = vmatpush1.bf16.xpose.msra.mxu0 0
        %994 = vmatprep.subr.bf16.mxu0 0
        %995 = vmatpush1.bf16.xpose.msra.mxu0 0
        %996 = vmatprep.subr.bf16.mxu0 0
        %997 = vmatpush1.bf16.xpose.msra.mxu0 0
        %998 = vmatprep.mubr.bf16.mxu0 0
        %999 = vmatmul.mubr.bf16.gmra.mrb[0].mxu0 %v961
        %v1000 = vpop.f32.mrb[0].mxu0
        %v1001 = vadd.f32 0.0, %v1000
        %v1002 = vpop.f32.mrb[0].mxu0
        %v1003 = vpop.f32.mrb[0].mxu0
        %v1004 = vpop.f32.mrb[0].mxu0
        %1005 = vdwg.mxu0
        %v1006 = vsel %vm593, %v1001, -inf
        %1007 = vmax.xlane.f32.xlu0 %v1006
        %v1008 = vpop.xlane.xlu0 %1007
        %v1009 = vsub.f32 %v1001, %v1008
        %v1010 = vmul.f32 %v1009, 1.442695
        %v1011 = vpow.pop %v1010
        %v1012 = vsel %vm593, %v1011, 0.0
        %1013 = vadd.xlane.f32.xlu0 %v1012
        %v1014 = vpop.xlane.xlu0 %1013
        %v1015 = vrcp.pop %v1014
        %v1016 = vmul.f32 1.0, %v1015
        %v1017 = vmul.f32 %v1011, %v1016
        %s1018 = scalar_lea.vmem %s443, 24 [#allocation14]
        %1019 = vst.msk [vmem:[%s1018] sm:$0xff] %vm593, %v1017
        %v1020 = vpack.c.bf16 %v1017, %v1017
        %1021 = vrot.lane.b32.xlu0 %v957, 72
        %v1022 = vpop.permute.xlu0 %1021
        %v1024 = vsel %vm593, %v1020, 0
        %v1027 = vsel %vm662, %v1022, 0
        %1029 = vmatprep.subr.bf16.mxu0 0
        %1030 = vmatpush1.bf16.msra.mxu0 %v1027
        %1031 = vmatprep.subr.bf16.mxu0 0
        %1032 = vmatpush1.bf16.msra.mxu0 0
        %1033 = vmatprep.subr.bf16.mxu0 0
        %1034 = vmatpush1.bf16.msra.mxu0 0
        %1035 = vmatprep.subr.bf16.mxu0 0
        %1036 = vmatpush1.bf16.msra.mxu0 0
        %1037 = vmatprep.subr.bf16.mxu0 0
        %1038 = vmatpush1.bf16.msra.mxu0 0
        %1039 = vmatprep.subr.bf16.mxu0 0
        %1040 = vmatpush1.bf16.msra.mxu0 0
        %1041 = vmatprep.subr.bf16.mxu0 0
        %1042 = vmatpush1.bf16.msra.mxu0 0
        %1043 = vmatprep.subr.bf16.mxu0 0
        %1044 = vmatpush1.bf16.msra.mxu0 0
        %1045 = vmatprep.subr.bf16.mxu0 0
        %1046 = vmatpush1.bf16.msra.mxu0 0
        %1047 = vmatprep.subr.bf16.mxu0 0
        %1048 = vmatpush1.bf16.msra.mxu0 0
        %1049 = vmatprep.subr.bf16.mxu0 0
        %1050 = vmatpush1.bf16.msra.mxu0 0
        %1051 = vmatprep.subr.bf16.mxu0 0
        %1052 = vmatpush1.bf16.msra.mxu0 0
        %1053 = vmatprep.subr.bf16.mxu0 0
        %1054 = vmatpush1.bf16.msra.mxu0 0
        %1055 = vmatprep.subr.bf16.mxu0 0
        %1056 = vmatpush1.bf16.msra.mxu0 0
        %1057 = vmatprep.subr.bf16.mxu0 0
        %1058 = vmatpush1.bf16.msra.mxu0 0
        %1059 = vmatprep.subr.bf16.mxu0 0
        %1060 = vmatpush1.bf16.msra.mxu0 0
        %1061 = vmatprep.mubr.bf16.mxu0 0
        %1062 = vmatmul.mubr.bf16.gmra.mrb[0].mxu0 %v1024
        %v1063 = vpop.f32.mrb[0].mxu0
        %v1064 = vadd.f32 0.0, %v1063
        %v1065 = vpop.f32.mrb[0].mxu0
        %v1066 = vpop.f32.mrb[0].mxu0
        %v1067 = vpop.f32.mrb[0].mxu0
        %1068 = vdwg.mxu0
        %1070 = vrot.lane.b32.xlu0 %v822, 8
        %v1071 = vpop.permute.xlu0 %1070
        %1074 = vrot.lane.b32.xlu0 %v943, 16
        %v1075 = vpop.permute.xlu0 %1074
        %1078 = vrot.lane.b32.xlu0 %v1064, 24
        %v1079 = vpop.permute.xlu0 %1078
        %v1081 = vsel %vm593, %v701, %v1071
        %vm1082 = vcmask 130048
        %v1083 = vsel %vm1082, %v1081, %v1075
        %vm1084 = vcmask 195584
        %v1085 = vsel %vm1084, %v1083, %v1079
        %v1086 = vpack.c.bf16 %v1085, %v1085
        %1087 = vst.msk [vmem:[#allocation4] sm:$0xf] %vm589, %v1086
        %v1088 = vld [vmem:[#allocation4] sm:$0xf]
        %v1089 = vld [vmem:[%s6] sm:$0xf]
        %v1090 = vld [vmem:[%s6 + $0x4] sm:$0xf]
        %v1091 = vld [vmem:[%s6 + $0x8] sm:$0xf]
        %v1092 = vld [vmem:[%s6 + $0xc] sm:$0xf]
        %v1093 = vld [vmem:[%s7] sm:$0x1]
        %v1095 = vlaneseq
        %v1096 = vshrl.u32 %v1095, 7
        %v1097 = vsub.s32 0, %v1096
        %v1098 = vrot.slane %v1093, %v1097
        %v1104 = vunpack.c.l.b16 %v1089
        %v1105 = vunpack.c.l.b16 %v1090
        %v1106 = vunpack.c.l.b16 %v1091
        %v1107 = vunpack.c.l.b16 %v1092
        %v1108 = vpack.c.b16 %v1105, %v1104
        %v1109 = vpack.c.b16 %v1107, %v1106
        %v1113 = vsel %vm544, %v1088, 0
        %1115 = vmatprep.subr.bf16.mxu0 0
        %1116 = vmatpush1.bf16.msra.mxu0 %v1108
        %1117 = vmatprep.subr.bf16.mxu0 0
        %1118 = vmatpush1.bf16.msra.mxu0 %v1109
        %1119 = vmatprep.subr.bf16.mxu0 0
        %1120 = vmatpush1.bf16.msra.mxu0 0
        %1121 = vmatprep.subr.bf16.mxu0 0
        %1122 = vmatpush1.bf16.msra.mxu0 0
        %1123 = vmatprep.subr.bf16.mxu0 0
        %1124 = vmatpush1.bf16.msra.mxu0 0
        %1125 = vmatprep.subr.bf16.mxu0 0
        %1126 = vmatpush1.bf16.msra.mxu0 0
        %1127 = vmatprep.subr.bf16.mxu0 0
        %1128 = vmatpush1.bf16.msra.mxu0 0
        %1129 = vmatprep.subr.bf16.mxu0 0
        %1130 = vmatpush1.bf16.msra.mxu0 0
        %1131 = vmatprep.subr.bf16.mxu0 0
        %1132 = vmatpush1.bf16.msra.mxu0 0
        %1133 = vmatprep.subr.bf16.mxu0 0
        %1134 = vmatpush1.bf16.msra.mxu0 0
        %1135 = vmatprep.subr.bf16.mxu0 0
        %1136 = vmatpush1.bf16.msra.mxu0 0
        %1137 = vmatprep.subr.bf16.mxu0 0
        %1138 = vmatpush1.bf16.msra.mxu0 0
        %1139 = vmatprep.subr.bf16.mxu0 0
        %1140 = vmatpush1.bf16.msra.mxu0 0
        %1141 = vmatprep.subr.bf16.mxu0 0
        %1142 = vmatpush1.bf16.msra.mxu0 0
        %1143 = vmatprep.subr.bf16.mxu0 0
        %1144 = vmatpush1.bf16.msra.mxu0 0
        %1145 = vmatprep.subr.bf16.mxu0 0
        %1146 = vmatpush1.bf16.msra.mxu0 0
        %1147 = vmatprep.mubr.bf16.mxu0 0
        %1148 = vmatmul.mubr.bf16.gmra.mrb[0].mxu0 %v1113
        %v1149 = vpop.f32.mrb[0].mxu0
        %v1150 = vadd.f32 %v1098, %v1149
        %v1151 = vpop.f32.mrb[0].mxu0
        %v1152 = vpop.f32.mrb[0].mxu0
        %v1153 = vpop.f32.mrb[0].mxu0
        %1154 = vdwg.mxu0
        %1155 = vst.msk [vmem:[%s436] sm:$0xff] %vm544, %v1150
        %s1156 = sand.u32 %s236, 1
        %s1157 = scalar_lea.sflag [#allocation7], %s1156
        %s1158 = sand.u32 %s236, 1
        %s1159 = smul.addr %s1158, 8
        %s1160 = scalar_lea.vmem [#allocation13], %s1159
        %s1161 = sand.u32 %s264, 1
        %s1162 = scalar_lea.sflag [#allocation15], %s1161
        %s1163 = sand.u32 %s264, 1
        %s1164 = smul.addr %s1163, 32
        %s1165 = scalar_lea.vmem [#allocation14], %s1164
        // Predicated region
        $region73: #{tpu_custom_call.1} parent=51 // pred_check
          %p1166 = pneg %p246
        $region74: #{tpu_custom_call.1} parent=51 // pred_check_branch
          %1168 = sbr.rel (%p1166) target = $region76
        $region75: #{tpu_custom_call.1} parent=51 // pred_region
          %s1170 = ssub.s32 128, 128
          %1171 = vsyncadd %s1157, %s1170
          %s1172 = sadd.s32 %s39, %s38
          %s1173 = smul.addr %s1172, 128
          %s1174 = scalar_lea.hbm %s8, %s1173
          %s1176 = sshll.u32 %s1160, 4
          %s1177 = int_to_ptr.vmem [resolvable:$true] %s1176
          %1179 = dma.vmem_to_hbm [thread:$0]  %s1177, 128, %s1174, %s1157
        $region76: #{tpu_custom_call.1} parent=51 // pred_fallthru
          _
        // Predicated region
        $region77: #{tpu_custom_call.1} parent=51 // pred_check
          %p1180 = pneg %p274
        $region78: #{tpu_custom_call.1} parent=51 // pred_check_branch
          %1182 = sbr.rel (%p1180) target = $region80
        $region79: #{tpu_custom_call.1} parent=51 // pred_region
          %s1184 = ssub.s32 512, 512
          %1185 = vsyncadd %s1162, %s1184
          %s1186 = smul.addr %s38, 4
          %s1187 = sadd.s32 %s39, %s1186
          %s1188 = smul.addr %s1187, 128
          %s1189 = scalar_lea.hbm %s9, %s1188
          %s1190 = sshll.u32 %s1165, 4
          %s1191 = int_to_ptr.vmem [resolvable:$true] %s1190
          %1196 = dma.vmem_to_hbm [thread:$0]  %s1191, 512, %s1189, %s1162, 128, 128, 8
        $region80: #{tpu_custom_call.1} parent=51 // pred_fallthru
          _
      $region52: #{tpu_custom_call.1} parent=5 // pred_fallthru
        _
      %p1197 = scmp.le.s32.totalorder 2, %s29
      // Predicated region
      $region81: #{tpu_custom_call.1} parent=5 // pred_check
        %p1198 = pneg %p1197
      $region82: #{tpu_custom_call.1} parent=5 // pred_check_branch
        %1200 = sbr.rel (%p1198) target = $region84
      $region83: #{tpu_custom_call.1} parent=5 // pred_region
        %s1201 = ssub.s32 %s29, 2
        // Predicated region
        $region85: #{tpu_custom_call.1} parent=83 // pred_check
          %p1202 = pneg %p252
        $region86: #{tpu_custom_call.1} parent=83 // pred_check_branch
          %1204 = sbr.rel (%p1202) target = $region88
        $region87: #{tpu_custom_call.1} parent=83 // pred_region
          %s1205 = sand.u32 %s237, 1
          %s1206 = scalar_lea.sflag [#allocation7], %s1205
          %s1207 = sand.u32 %s237, 1
          %s1208 = smul.addr %s1207, 8
          %s1209 = scalar_lea.vmem [#allocation13], %s1208
          %1210 = dma.done %s1206, 128
        $region88: #{tpu_custom_call.1} parent=83 // pred_fallthru
          _
        // Predicated region
        $region89: #{tpu_custom_call.1} parent=83 // pred_check
          %p1211 = pneg %p280
        $region90: #{tpu_custom_call.1} parent=83 // pred_check_branch
          %1213 = sbr.rel (%p1211) target = $region92
        $region91: #{tpu_custom_call.1} parent=83 // pred_region
          %s1214 = sand.u32 %s265, 1
          %s1215 = scalar_lea.sflag [#allocation15], %s1214
          %s1216 = sand.u32 %s265, 1
          %s1217 = smul.addr %s1216, 32
          %s1218 = scalar_lea.vmem [#allocation14], %s1217
          %1219 = dma.done %s1215, 512
        $region92: #{tpu_custom_call.1} parent=83 // pred_fallthru
          _
      $region84: #{tpu_custom_call.1} parent=5 // pred_fallthru
        _
    $region6: #{tpu_custom_call.1} parent=1 // loop_footer
      %s33 = sadd.s32 1, %s29
    $region7: #{tpu_custom_call.1} parent=1 // loop_footer_branch
      %28 = sbr.rel target = $region3
    $region8: #{tpu_custom_call.1} parent=1 // loop_exit
      _
    %1220 = vsyncpa [#allocation6], 1
    %s1221 = scalar_lea.sflag [#allocation6], 1
    %1222 = vsyncpa %s1221, 1
    %1223 = vsyncpa [#allocation9], 1
    %s1224 = scalar_lea.sflag [#allocation9], 1
    %1225 = vsyncpa %s1224, 1
    %1226 = vsyncpa [#allocation12], 1
    %1227 = vsyncpa [#allocation7], 1
    %s1228 = scalar_lea.sflag [#allocation7], 1
    %1229 = vsyncpa %s1228, 1
    %1230 = vsyncpa [#allocation15], 1
    %s1231 = scalar_lea.sflag [#allocation15], 1
    %1232 = vsyncpa %s1231, 1

</llo_original>
